<compile_context>
chip_gen: v5e
topology: v5e:2x2
jax: 0.10.0
libtpu: 0.0.40
codegen_flags: <defaults>
</compile_context>

<pallas_src>
import functools

import jax
import jax.numpy as jnp
import numpy as np
from jax.experimental import pallas as pl
from jax.experimental.pallas import tpu as pltpu

_PAD = 128  # lane-aligned halo width of the packed conv scratch


# ----------------------------------------------------------------------------
# Fused kernel: whole BasicBlock_MC forward for NB batch elements, in VMEM.
# ----------------------------------------------------------------------------
def _fused_block_kernel(params_ref, bmask_ref, sp_ref, mem1_ref, mem2_ref,
                        mask_ref, w1_ref, w2_ref,
                        out_ref, mem1_new_ref, mem2_new_ref,
                        ops1_ref, ops2_ref,
                        xpad_ref, *, H, W, NB):
    f32 = jnp.float32
    HW = H * W
    L = NB * HW

    leak1 = params_ref[0]
    leak2 = params_ref[1]
    th1 = params_ref[2]
    th2 = params_ref[3]

    C = xpad_ref.shape[0]
    # Zero only the two 128-lane halos.  Every out-of-image window read is
    # masked below; zeroing just prevents 0*NaN from uninitialized VMEM.
    xpad_ref[:, 0:_PAD] = jnp.zeros((C, _PAD), f32)
    xpad_ref[:, _PAD + L:_PAD + L + _PAD] = jnp.zeros((C, _PAD), f32)

    # Periodic image-boundary masks over the packed lane coordinate
    # p = b*HW + y*W + x (precomputed in the wrapper, resident in VMEM).
    not_first_row = bmask_ref[0:1, :]     # y != 0      (dy = -1 taps)
    not_last_row = bmask_ref[1:2, :]      # y != H-1    (dy = +1 taps)
    not_first_col = bmask_ref[2:3, :]     # x != 0      (dx = -1 taps)
    not_last_col = bmask_ref[3:4, :]      # x != W-1    (dx = +1 taps)

    def conv3x3(w_ref):
        # Reads the packed activation living in xpad_ref[:, _PAD:_PAD+L].
        # 9 shifted-window taps -> 9 MXU matmuls, tree-summed.
        parts = []
        for dy in (-1, 0, 1):
            for dx in (-1, 0, 1):
                k = (dy + 1) * 3 + (dx + 1)
                off = _PAD + dy * W + dx
                tap = xpad_ref[:, off:off + L]           # (Cin, L) window
                if dy == -1:
                    tap = tap * not_first_row
                elif dy == 1:
                    tap = tap * not_last_row
                if dx == -1:
                    tap = tap * not_first_col
                elif dx == 1:
                    tap = tap * not_last_col
                parts.append(jax.lax.dot_general(
                    w_ref[k], tap,
                    dimension_numbers=(((1,), (0,)), ((), ())),
                    preferred_element_type=f32))
        # balanced tree sum -> no serial VPU add chain behind each MXU pop
        while len(parts) > 1:
            nxt = [parts[i] + parts[i + 1] for i in range(0, len(parts) - 1, 2)]
            if len(parts) % 2:
                nxt.append(parts[-1])
            parts = nxt
        return parts[0]                                  # (Cout, L) f32

    # ---------------- stage 1 : layer `pos` ----------------
    ops1 = jnp.float32(0.0)
    for b in range(NB):
        s0 = sp_ref[0, b]                                # (Cin, HW) spike bit 0
        s1 = sp_ref[1, b]                                # (Cin, HW) spike bit 1
        ops1 = ops1 + jnp.sum(s0) + jnp.sum(s1)          # ops[pos] += sum(inp)
        # bit-weighted merge, packed along lanes (lane-aligned store)
        xpad_ref[:, _PAD + b * HW:_PAD + (b + 1) * HW] = s0 + 2.0 * s1
    ops1_ref[...] = jnp.broadcast_to(ops1, ops1_ref.shape).astype(f32)

    delta1 = conv3x3(w1_ref)                             # residual[0], (C, L)

    ops2 = jnp.float32(0.0)
    for b in range(NB):
        d1 = delta1[:, b * HW:(b + 1) * HW]              # lane-aligned slice
        m1 = leak1 * mem1_ref[b] + d1
        # same division form as the reference: m/th and m/(2*th)
        b0 = jnp.logical_and(m1 / th1 - 1.0 > 0.0,
                             1.0 - m1 / (2.0 * th1) >= 0.0).astype(f32)
        b1 = (m1 / (2.0 * th1) - 1.0 > 0.0).astype(f32)
        mem1_new_ref[b] = m1 - (b0 + 2.0 * b1) * th1     # soft reset
        msk = mask_ref[b]
        sp0 = b0 * msk
        sp1 = b1 * msk
        ops2 = ops2 + jnp.sum(sp0) + jnp.sum(sp1)        # ops[pos+1] += sum(out)
        # merged stage-1 output overwrites the packed conv operand
        xpad_ref[:, _PAD + b * HW:_PAD + (b + 1) * HW] = sp0 + 2.0 * sp1
    ops2_ref[...] = jnp.broadcast_to(ops2, ops2_ref.shape).astype(f32)

    # ---------------- stage 2 : layer `pos + 1` ----------------
    delta2 = conv3x3(w2_ref)                             # residual[3], (C, L)
    for b in range(NB):
        # identity shortcut is a pass-through (stride=1, in_planes == planes);
        # recomputed per element from the still-resident spike block.
        ident = sp_ref[0, b] + 2.0 * sp_ref[1, b]
        m2 = leak2 * mem2_ref[b] + delta2[:, b * HW:(b + 1) * HW] + ident
        c0 = jnp.logical_and(m2 / th2 - 1.0 > 0.0,
                             1.0 - m2 / (2.0 * th2) >= 0.0).astype(f32)
        c1 = (m2 / (2.0 * th2) - 1.0 > 0.0).astype(f32)
        mem2_new_ref[b] = m2 - (c0 + 2.0 * c1) * th2
        out_ref[0, b] = c0
        out_ref[1, b] = c1


def _pick_nb(n, target=8):
    """Largest divisor of n <= target keeping >= 2 grid steps (v7x megacore)."""
    nb = 1
    for d in range(1, min(n, target) + 1):
        if n % d == 0 and (n // d >= 2 or n == 1):
            nb = d
    return nb


def _fused_block_call(sp, mem1, mem2, mask, w1p, w2p, params, H, W, nb=None):
    N, C, HW = mem1.shape
    Cin = sp.shape[2]
    f32 = jnp.float32

    NB = _pick_nb(N) if nb is None else nb
    assert N % NB == 0
    G = N // NB
    L = NB * HW

    # Periodic boundary masks (exact integer arithmetic), computed once per
    # call in XLA and kept resident in VMEM (constant index_map).
    q = jnp.arange(HW, dtype=jnp.int32)
    xcol = q % W
    yrow = q // W
    base = jnp.stack([yrow != 0, yrow != H - 1,
                      xcol != 0, xcol != W - 1]).astype(f32)   # (4, HW)
    bmask = jnp.tile(base, (1, NB))                            # (4, L)

    kern = functools.partial(_fused_block_kernel, H=H, W=W, NB=NB)

    in_specs = [
        pl.BlockSpec(memory_space=pltpu.MemorySpace.SMEM),        # leak/thresh
        pl.BlockSpec((4, L), lambda g: (0, 0)),                   # boundary masks
        pl.BlockSpec((2, NB, Cin, HW), lambda g: (0, g, 0, 0)),   # spikes in
        pl.BlockSpec((NB, C, HW), lambda g: (g, 0, 0)),           # mem[pos]
        pl.BlockSpec((NB, C, HW), lambda g: (g, 0, 0)),           # mem[pos+1]
        pl.BlockSpec((NB, C, HW), lambda g: (g, 0, 0)),           # mask[pos]
        pl.BlockSpec((9, C, Cin), lambda g: (0, 0, 0)),           # w1 (9,Cout,Cin)
        pl.BlockSpec((9, C, C), lambda g: (0, 0, 0)),             # w2 (9,Cout,Cin)
    ]
    out_specs = (
        pl.BlockSpec((2, NB, C, HW), lambda g: (0, g, 0, 0)),     # spikes out
        pl.BlockSpec((NB, C, HW), lambda g: (g, 0, 0)),           # new mem[pos]
        pl.BlockSpec((NB, C, HW), lambda g: (g, 0, 0)),           # new mem[pos+1]
        pl.BlockSpec((1, 1, 128), lambda g: (g, 0, 0)),           # ops[pos] part.
        pl.BlockSpec((1, 1, 128), lambda g: (g, 0, 0)),           # ops[pos+1] part.
    )
    out_shape = (
        jax.ShapeDtypeStruct((2, N, C, HW), f32),
        jax.ShapeDtypeStruct((N, C, HW), f32),
        jax.ShapeDtypeStruct((N, C, HW), f32),
        jax.ShapeDtypeStruct((G, 1, 128), f32),
        jax.ShapeDtypeStruct((G, 1, 128), f32),
    )
    return pl.pallas_call(
        kern,
        out_shape=out_shape,
        grid=(G,),
        in_specs=in_specs,
        out_specs=out_specs,
        scratch_shapes=[pltpu.VMEM((C, L + 2 * _PAD), f32)],
        # membranes (largest persistent SNN state) are updated in place
        # (inputs: 0 params, 1 bmask, 2 sp, 3 mem1, 4 mem2, 5 mask, 6 w1, 7 w2)
        input_output_aliases={3: 1, 4: 2},
        compiler_params=pltpu.CompilerParams(
            dimension_semantics=("parallel",)),   # v7x: batch grid across 2 TCs
    )(params, bmask, sp, mem1, mem2, mask, w1p, w2p)


# ----------------------------------------------------------------------------
# One-time preprocessing (hoisted out of the per-timestep forward).
# ----------------------------------------------------------------------------
def prepare_conv_weight(w_oihw):
    """PyTorch OIHW (Cout, Cin, 3, 3) -> (9, Cout, Cin); do this once."""
    cout, cin = w_oihw.shape[0], w_oihw.shape[1]
    return jnp.transpose(w_oihw, (2, 3, 0, 1)).reshape(9, cout, cin)


# ----------------------------------------------------------------------------
# Public forward (same semantics as BasicBlock_MC.forward for this config).
# ----------------------------------------------------------------------------
def basic_block_mc_forward(out_prev, mem_pos, mem_pos1, mask_pos,
                           w1_prep, w2_prep, params, ops_pos, ops_pos1,
                           nb=None):
    """
    out_prev : (2, N, Cin, H, W)  spike-bit channels x NCHW
    mem_*    : (N, planes, H, W)  membrane potentials for layers pos / pos+1
    mask_pos : (N, planes, H, W)  dropout-style mask applied to layer-pos spikes
    w*_prep  : (9, planes, Cin)   from prepare_conv_weight (one-time)
    params   : (4,) f32 [leak_pos, leak_pos1, th_pos, th_pos1]  (SMEM scalars;
               changing them does not retrace/recompile)
    Returns  : (out_prev_new, max_mem, new_mem_pos, new_mem_pos1, ops_pos, ops_pos1)
    """
    two, N, Cin, H, W = out_prev.shape
    planes = mem_pos.shape[1]
    assert two == 2 and Cin == planes, (
        "only the stride=1 / in_planes == planes (identity pass-through) "
        "configuration is implemented")
    HW = H * W

    # NCHW <-> (C, H*W) is a pure reshape: no transposes, no copies.
    sp = out_prev.reshape(2, N, Cin, HW)
    m1 = mem_pos.reshape(N, planes, HW)
    m2 = mem_pos1.reshape(N, planes, HW)
    mk = mask_pos.reshape(N, planes, HW)

    out_sp, new_m1, new_m2, ops_a, ops_b = _fused_block_call(
        sp, m1, m2, mk, w1_prep, w2_prep, params, H, W, nb=nb)

    max_mem = jnp.float32(0.0)
    # TODO(synk): find_max_mem / percentile (kthvalue) branch not implemented.
    return (out_sp.reshape(2, N, planes, H, W),
            max_mem,
            new_m1.reshape(N, planes, H, W),
            new_m2.reshape(N, planes, H, W),
            ops_pos + jnp.sum(ops_a[:, 0, 0]),
            ops_pos1 + jnp.sum(ops_b[:, 0, 0]))


# ----------------------------------------------------------------------------
# Pure-JAX reference (mirrors the PyTorch forward for this configuration).
# ----------------------------------------------------------------------------
def _reference_forward(out_prev, mem1, mem2, mask, w1, w2,
                       leak1, leak2, th1, th2, ops1, ops2):
    conv = lambda x, w: jax.lax.conv_general_dilated(
        x, w, window_strides=(1, 1), padding=((1, 1), (1, 1)),
        dimension_numbers=('NCHW', 'OIHW', 'NCHW'))
    merged_inp = out_prev[0] + 2.0 * out_prev[1]
    ops1 = ops1 + jnp.sum(out_prev)
    m1 = leak1 * mem1 + conv(merged_inp, w1)
    q = m1 / (2.0 * th1)
    s0 = jnp.logical_and(m1 / th1 - 1.0 > 0.0, 1.0 - q >= 0.0).astype(jnp.float32)
    s1 = (q - 1.0 > 0.0).astype(jnp.float32)
    new_m1 = m1 - (s0 + 2.0 * s1) * th1
    sp0, sp1 = s0 * mask, s1 * mask
    ops2 = ops2 + jnp.sum(sp0) + jnp.sum(sp1)
    merged_out = sp0 + 2.0 * sp1
    m2 = leak2 * mem2 + conv(merged_out, w2) + merged_inp
    q2 = m2 / (2.0 * th2)
    o0 = jnp.logical_and(m2 / th2 - 1.0 > 0.0, 1.0 - q2 >= 0.0).astype(jnp.float32)
    o1 = (q2 - 1.0 > 0.0).astype(jnp.float32)
    new_m2 = m2 - (o0 + 2.0 * o1) * th2
    return jnp.stack([o0, o1], axis=0), new_m1, new_m2, ops1, ops2


if __name__ == "__main__":
    # small, module-consistent shapes (stride=1, in_planes == planes)
    N, Cin, planes, H, W = 2, 4, 4, 16, 16
    key = jax.random.PRNGKey(0)
    k1, k2, k3, k4, k5, k6 = jax.random.split(key, 6)

    out_prev = jax.random.bernoulli(k1, 0.3, (2, N, Cin, H, W)).astype(jnp.float32)
    mem_pos = 0.5 * jax.random.normal(k2, (N, planes, H, W), jnp.float32)
    mem_pos1 = 0.5 * jax.random.normal(k3, (N, planes, H, W), jnp.float32)
    mask_pos = (jax.random.bernoulli(k4, 0.8, (N, planes, H, W)).astype(jnp.float32)
                / 0.8)
    w1 = 0.1 * jax.random.normal(k5, (planes, Cin, 3, 3), jnp.float32)      # OIHW
    w2 = 0.1 * jax.random.normal(k6, (planes, planes, 3, 3), jnp.float32)   # OIHW

    leak_pos, leak_pos1, th_pos, th_pos1 = 1.0, 1.0, 1.0, 1.0
    ops_pos = jnp.float32(0.0)
    ops_pos1 = jnp.float32(0.0)

    # one-time preprocessing (hoisted out of the per-timestep forward)
    w1_prep = prepare_conv_weight(w1)
    w2_prep = prepare_conv_weight(w2)
    params = jnp.array([leak_pos, leak_pos1, th_pos, th_pos1], jnp.float32)

    fwd = jax.jit(basic_block_mc_forward)
    outs = fwd(out_prev, mem_pos, mem_pos1, mask_pos, w1_prep, w2_prep,
               params, ops_pos, ops_pos1)
    outs = jax.block_until_ready(outs)
    out_prev_new, max_mem, new_mem_pos, new_mem_pos1, ops_a, ops_b = outs

    assert out_prev_new.shape == (2, N, planes, H, W)
    assert new_mem_pos.shape == (N, planes, H, W)
    assert new_mem_pos1.shape == (N, planes, H, W)

    # correctness check against a pure-JAX reference of the same semantics
    ref_out, ref_m1, ref_m2, ref_ops1, ref_ops2 = _reference_forward(
        out_prev, mem_pos, mem_pos1, mask_pos, w1, w2,
        leak_pos, leak_pos1, th_pos, th_pos1, ops_pos, ops_pos1)
    np.testing.assert_allclose(np.asarray(out_prev_new), np.asarray(ref_out),
                               atol=1e-3, rtol=1e-3)
    np.testing.assert_allclose(np.asarray(new_mem_pos), np.asarray(ref_m1),
                               atol=1e-3, rtol=1e-3)
    np.testing.assert_allclose(np.asarray(new_mem_pos1), np.asarray(ref_m2),
                               atol=1e-3, rtol=1e-3)
    np.testing.assert_allclose(float(ops_a), float(ref_ops1), atol=1e-2, rtol=1e-4)
    np.testing.assert_allclose(float(ops_b), float(ref_ops2), atol=1e-2, rtol=1e-4)

    print("KERNEL_OK")
</pallas_src>

<mosaic_0001>
module attributes {stable_mosaic.version = 11 : i64} {
  func.func @_fused_block_kernel(%arg0: i32, %arg1: memref<4xf32, #tpu.memory_space<smem>>, %arg2: memref<4x256xf32, #tpu.memory_space<vmem>>, %arg3: memref<2x1x4x256xf32, #tpu.memory_space<vmem>>, %arg4: memref<1x4x256xf32, #tpu.memory_space<vmem>>, %arg5: memref<1x4x256xf32, #tpu.memory_space<vmem>>, %arg6: memref<1x4x256xf32, #tpu.memory_space<vmem>>, %arg7: memref<9x4x4xf32, #tpu.memory_space<vmem>>, %arg8: memref<9x4x4xf32, #tpu.memory_space<vmem>>, %arg9: memref<2x1x4x256xf32, #tpu.memory_space<vmem>>, %arg10: memref<1x4x256xf32, #tpu.memory_space<vmem>>, %arg11: memref<1x4x256xf32, #tpu.memory_space<vmem>>, %arg12: memref<1x1x128xf32, #tpu.memory_space<vmem>>, %arg13: memref<1x1x128xf32, #tpu.memory_space<vmem>>, %arg14: memref<4x512xf32, #tpu.memory_space<vmem>>) attributes {dimension_semantics = [#tpu.dimension_semantics<parallel>], iteration_bounds = array<i64: 2>, scalar_prefetch = 0 : i64, scratch_operands = 1 : i64, tpu.core_type = #tpu.core_type<tc>, window_params = [{transform_indices = @transform_0, window_bounds = array<i64: 4>}, {pipeline_mode = #tpu.pipeline_mode<synchronous>, transform_indices = @transform_1, window_bounds = array<i64: 4, 256>}, {transform_indices = @transform_2, window_bounds = array<i64: 2, 1, 4, 256>}, {transform_indices = @transform_3, window_bounds = array<i64: 1, 4, 256>}, {transform_indices = @transform_4, window_bounds = array<i64: 1, 4, 256>}, {transform_indices = @transform_5, window_bounds = array<i64: 1, 4, 256>}, {pipeline_mode = #tpu.pipeline_mode<synchronous>, transform_indices = @transform_6, window_bounds = array<i64: 9, 4, 4>}, {pipeline_mode = #tpu.pipeline_mode<synchronous>, transform_indices = @transform_7, window_bounds = array<i64: 9, 4, 4>}, {transform_indices = @transform_8, window_bounds = array<i64: 2, 1, 4, 256>}, {transform_indices = @transform_9, window_bounds = array<i64: 1, 4, 256>}, {transform_indices = @transform_10, window_bounds = array<i64: 1, 4, 256>}, {transform_indices = @transform_11, window_bounds = array<i64: 1, 1, 128>}, {transform_indices = @transform_12, window_bounds = array<i64: 1, 1, 128>}]} {
    %c0 = arith.constant 0 : index
    %0 = memref.load %arg1[%c0] : memref<4xf32, #tpu.memory_space<smem>>
    %c1 = arith.constant 1 : index
    %1 = memref.load %arg1[%c1] : memref<4xf32, #tpu.memory_space<smem>>
    %c2 = arith.constant 2 : index
    %2 = memref.load %arg1[%c2] : memref<4xf32, #tpu.memory_space<smem>>
    %c3 = arith.constant 3 : index
    %3 = memref.load %arg1[%c3] : memref<4xf32, #tpu.memory_space<smem>>
    %cst = arith.constant 0.000000e+00 : f32
    %4 = vector.broadcast %cst : f32 to vector<4x128xf32>
    %c0_0 = arith.constant 0 : index
    %c0_1 = arith.constant 0 : index
    %5 = vector.load %arg14[%c0_0, %c0_1] : memref<4x512xf32, #tpu.memory_space<vmem>>, vector<4x128xf32>
    tpu.vector_store %arg14[%c0_0, %c0_1], %4 {strides = array<i32>} : memref<4x512xf32, #tpu.memory_space<vmem>>, vector<4x128xf32>,
    %cst_2 = arith.constant 0.000000e+00 : f32
    %6 = vector.broadcast %cst_2 : f32 to vector<4x128xf32>
    %c0_3 = arith.constant 0 : index
    %c384 = arith.constant 384 : index
    %7 = vector.load %arg14[%c0_3, %c384] : memref<4x512xf32, #tpu.memory_space<vmem>>, vector<4x128xf32>
    tpu.vector_store %arg14[%c0_3, %c384], %6 {strides = array<i32>} : memref<4x512xf32, #tpu.memory_space<vmem>>, vector<4x128xf32>,
    %c0_4 = arith.constant 0 : index
    %c0_5 = arith.constant 0 : index
    %8 = vector.load %arg2[%c0_4, %c0_5] : memref<4x256xf32, #tpu.memory_space<vmem>>, vector<1x256xf32>
    %c1_6 = arith.constant 1 : index
    %c0_7 = arith.constant 0 : index
    %9 = vector.load %arg2[%c1_6, %c0_7] : memref<4x256xf32, #tpu.memory_space<vmem>>, vector<1x256xf32>
    %c2_8 = arith.constant 2 : index
    %c0_9 = arith.constant 0 : index
    %10 = vector.load %arg2[%c2_8, %c0_9] : memref<4x256xf32, #tpu.memory_space<vmem>>, vector<1x256xf32>
    %c3_10 = arith.constant 3 : index
    %c0_11 = arith.constant 0 : index
    %11 = vector.load %arg2[%c3_10, %c0_11] : memref<4x256xf32, #tpu.memory_space<vmem>>, vector<1x256xf32>
    %c0_12 = arith.constant 0 : index
    %c0_13 = arith.constant 0 : index
    %c0_14 = arith.constant 0 : index
    %c0_15 = arith.constant 0 : index
    %12 = vector.load %arg3[%c0_12, %c0_13, %c0_14, %c0_15] : memref<2x1x4x256xf32, #tpu.memory_space<vmem>>, vector<1x1x4x256xf32>
    %13 = vector.shape_cast %12 : vector<1x1x4x256xf32> to vector<4x256xf32>
    %c1_16 = arith.constant 1 : index
    %c0_17 = arith.constant 0 : index
    %c0_18 = arith.constant 0 : index
    %c0_19 = arith.constant 0 : index
    %14 = vector.load %arg3[%c1_16, %c0_17, %c0_18, %c0_19] : memref<2x1x4x256xf32, #tpu.memory_space<vmem>>, vector<1x1x4x256xf32>
    %15 = vector.shape_cast %14 : vector<1x1x4x256xf32> to vector<4x256xf32>
    %16 = vector.shape_cast %13 : vector<4x256xf32> to vector<1x4x256xf32>
    %cst_20 = arith.constant dense<0.000000e+00> : vector<1xf32>
    %17 = vector.multi_reduction <add>, %16, %cst_20 [1, 2] : vector<1x4x256xf32> to vector<1xf32>
    %18 = vector.shape_cast %17 : vector<1xf32> to vector<1x1x1xf32>
    %19 = vector.extract %18[0, 0, 0] : f32 from vector<1x1x1xf32>
    %cst_21 = arith.constant 0.000000e+00 : f32
    %20 = arith.addf %cst_21, %19 : f32
    %21 = vector.shape_cast %15 : vector<4x256xf32> to vector<1x4x256xf32>
    %cst_22 = arith.constant dense<0.000000e+00> : vector<1xf32>
    %22 = vector.multi_reduction <add>, %21, %cst_22 [1, 2] : vector<1x4x256xf32> to vector<1xf32>
    %23 = vector.shape_cast %22 : vector<1xf32> to vector<1x1x1xf32>
    %24 = vector.extract %23[0, 0, 0] : f32 from vector<1x1x1xf32>
    %25 = arith.addf %20, %24 : f32
    %cst_23 = arith.constant 2.000000e+00 : f32
    %26 = vector.broadcast %cst_23 : f32 to vector<4x256xf32>
    %27 = arith.mulf %26, %15 : vector<4x256xf32>
    %28 = arith.addf %13, %27 : vector<4x256xf32>
    %c0_24 = arith.constant 0 : index
    %c128 = arith.constant 128 : index
    %29 = vector.load %arg14[%c0_24, %c128] : memref<4x512xf32, #tpu.memory_space<vmem>>, vector<4x256xf32>
    tpu.vector_store %arg14[%c0_24, %c128], %28 {strides = array<i32>} : memref<4x512xf32, #tpu.memory_space<vmem>>, vector<4x256xf32>,
    %30 = vector.broadcast %25 : f32 to vector<1x1x128xf32>
    %c0_25 = arith.constant 0 : index
    %c0_26 = arith.constant 0 : index
    %c0_27 = arith.constant 0 : index
    %31 = vector.load %arg12[%c0_25, %c0_26, %c0_27] : memref<1x1x128xf32, #tpu.memory_space<vmem>>, vector<1x1x128xf32>
    tpu.vector_store %arg12[%c0_25, %c0_26, %c0_27], %30 {strides = array<i32>} : memref<1x1x128xf32, #tpu.memory_space<vmem>>, vector<1x1x128xf32>,
    %c0_28 = arith.constant 0 : index
    %c111 = arith.constant 111 : index
    %32 = vector.load %arg14[%c0_28, %c111] : memref<4x512xf32, #tpu.memory_space<vmem>>, vector<4x256xf32>
    %33 = vector.broadcast %8 : vector<1x256xf32> to vector<4x256xf32>
    %34 = arith.mulf %32, %33 : vector<4x256xf32>
    %35 = vector.broadcast %10 : vector<1x256xf32> to vector<4x256xf32>
    %36 = arith.mulf %34, %35 : vector<4x256xf32>
    %c0_29 = arith.constant 0 : index
    %c0_30 = arith.constant 0 : index
    %c0_31 = arith.constant 0 : index
    %37 = vector.load %arg7[%c0_29, %c0_30, %c0_31] : memref<9x4x4xf32, #tpu.memory_space<vmem>>, vector<1x4x4xf32>
    %38 = vector.shape_cast %37 : vector<1x4x4xf32> to vector<4x4xf32>
    %cst_32 = arith.constant dense<0.000000e+00> : vector<4x256xf32>
    %39 = tpu.matmul %38, %36, %cst_32 {dimension_numbers = #tpu.dot_dimension_numbers<[1], [0], [0], [1], [0, 0, 1, 1], [], []>} : vector<4x4xf32>, vector<4x256xf32>, vector<4x256xf32> -> vector<4x256xf32>
    %c0_33 = arith.constant 0 : index
    %c112 = arith.constant 112 : index
    %40 = vector.load %arg14[%c0_33, %c112] : memref<4x512xf32, #tpu.memory_space<vmem>>, vector<4x256xf32>
    %41 = vector.broadcast %8 : vector<1x256xf32> to vector<4x256xf32>
    %42 = arith.mulf %40, %41 : vector<4x256xf32>
    %c1_34 = arith.constant 1 : index
    %c0_35 = arith.constant 0 : index
    %c0_36 = arith.constant 0 : index
    %43 = vector.load %arg7[%c1_34, %c0_35, %c0_36] : memref<9x4x4xf32, #tpu.memory_space<vmem>>, vector<1x4x4xf32>
    %44 = vector.shape_cast %43 : vector<1x4x4xf32> to vector<4x4xf32>
    %cst_37 = arith.constant dense<0.000000e+00> : vector<4x256xf32>
    %45 = tpu.matmul %44, %42, %cst_37 {dimension_numbers = #tpu.dot_dimension_numbers<[1], [0], [0], [1], [0, 0, 1, 1], [], []>} : vector<4x4xf32>, vector<4x256xf32>, vector<4x256xf32> -> vector<4x256xf32>
    %c0_38 = arith.constant 0 : index
    %c113 = arith.constant 113 : index
    %46 = vector.load %arg14[%c0_38, %c113] : memref<4x512xf32, #tpu.memory_space<vmem>>, vector<4x256xf32>
    %47 = vector.broadcast %8 : vector<1x256xf32> to vector<4x256xf32>
    %48 = arith.mulf %46, %47 : vector<4x256xf32>
    %49 = vector.broadcast %11 : vector<1x256xf32> to vector<4x256xf32>
    %50 = arith.mulf %48, %49 : vector<4x256xf32>
    %c2_39 = arith.constant 2 : index
    %c0_40 = arith.constant 0 : index
    %c0_41 = arith.constant 0 : index
    %51 = vector.load %arg7[%c2_39, %c0_40, %c0_41] : memref<9x4x4xf32, #tpu.memory_space<vmem>>, vector<1x4x4xf32>
    %52 = vector.shape_cast %51 : vector<1x4x4xf32> to vector<4x4xf32>
    %cst_42 = arith.constant dense<0.000000e+00> : vector<4x256xf32>
    %53 = tpu.matmul %52, %50, %cst_42 {dimension_numbers = #tpu.dot_dimension_numbers<[1], [0], [0], [1], [0, 0, 1, 1], [], []>} : vector<4x4xf32>, vector<4x256xf32>, vector<4x256xf32> -> vector<4x256xf32>
    %c0_43 = arith.constant 0 : index
    %c127 = arith.constant 127 : index
    %54 = vector.load %arg14[%c0_43, %c127] : memref<4x512xf32, #tpu.memory_space<vmem>>, vector<4x256xf32>
    %55 = vector.broadcast %10 : vector<1x256xf32> to vector<4x256xf32>
    %56 = arith.mulf %54, %55 : vector<4x256xf32>
    %c3_44 = arith.constant 3 : index
    %c0_45 = arith.constant 0 : index
    %c0_46 = arith.constant 0 : index
    %57 = vector.load %arg7[%c3_44, %c0_45, %c0_46] : memref<9x4x4xf32, #tpu.memory_space<vmem>>, vector<1x4x4xf32>
    %58 = vector.shape_cast %57 : vector<1x4x4xf32> to vector<4x4xf32>
    %cst_47 = arith.constant dense<0.000000e+00> : vector<4x256xf32>
    %59 = tpu.matmul %58, %56, %cst_47 {dimension_numbers = #tpu.dot_dimension_numbers<[1], [0], [0], [1], [0, 0, 1, 1], [], []>} : vector<4x4xf32>, vector<4x256xf32>, vector<4x256xf32> -> vector<4x256xf32>
    %c0_48 = arith.constant 0 : index
    %c128_49 = arith.constant 128 : index
    %60 = vector.load %arg14[%c0_48, %c128_49] : memref<4x512xf32, #tpu.memory_space<vmem>>, vector<4x256xf32>
    %c4 = arith.constant 4 : index
    %c0_50 = arith.constant 0 : index
    %c0_51 = arith.constant 0 : index
    %61 = vector.load %arg7[%c4, %c0_50, %c0_51] : memref<9x4x4xf32, #tpu.memory_space<vmem>>, vector<1x4x4xf32>
    %62 = vector.shape_cast %61 : vector<1x4x4xf32> to vector<4x4xf32>
    %cst_52 = arith.constant dense<0.000000e+00> : vector<4x256xf32>
    %63 = tpu.matmul %62, %60, %cst_52 {dimension_numbers = #tpu.dot_dimension_numbers<[1], [0], [0], [1], [0, 0, 1, 1], [], []>} : vector<4x4xf32>, vector<4x256xf32>, vector<4x256xf32> -> vector<4x256xf32>
    %c0_53 = arith.constant 0 : index
    %c129 = arith.constant 129 : index
    %64 = vector.load %arg14[%c0_53, %c129] : memref<4x512xf32, #tpu.memory_space<vmem>>, vector<4x256xf32>
    %65 = vector.broadcast %11 : vector<1x256xf32> to vector<4x256xf32>
    %66 = arith.mulf %64, %65 : vector<4x256xf32>
    %c5 = arith.constant 5 : index
    %c0_54 = arith.constant 0 : index
    %c0_55 = arith.constant 0 : index
    %67 = vector.load %arg7[%c5, %c0_54, %c0_55] : memref<9x4x4xf32, #tpu.memory_space<vmem>>, vector<1x4x4xf32>
    %68 = vector.shape_cast %67 : vector<1x4x4xf32> to vector<4x4xf32>
    %cst_56 = arith.constant dense<0.000000e+00> : vector<4x256xf32>
    %69 = tpu.matmul %68, %66, %cst_56 {dimension_numbers = #tpu.dot_dimension_numbers<[1], [0], [0], [1], [0, 0, 1, 1], [], []>} : vector<4x4xf32>, vector<4x256xf32>, vector<4x256xf32> -> vector<4x256xf32>
    %c0_57 = arith.constant 0 : index
    %c143 = arith.constant 143 : index
    %70 = vector.load %arg14[%c0_57, %c143] : memref<4x512xf32, #tpu.memory_space<vmem>>, vector<4x256xf32>
    %71 = vector.broadcast %9 : vector<1x256xf32> to vector<4x256xf32>
    %72 = arith.mulf %70, %71 : vector<4x256xf32>
    %73 = vector.broadcast %10 : vector<1x256xf32> to vector<4x256xf32>
    %74 = arith.mulf %72, %73 : vector<4x256xf32>
    %c6 = arith.constant 6 : index
    %c0_58 = arith.constant 0 : index
    %c0_59 = arith.constant 0 : index
    %75 = vector.load %arg7[%c6, %c0_58, %c0_59] : memref<9x4x4xf32, #tpu.memory_space<vmem>>, vector<1x4x4xf32>
    %76 = vector.shape_cast %75 : vector<1x4x4xf32> to vector<4x4xf32>
    %cst_60 = arith.constant dense<0.000000e+00> : vector<4x256xf32>
    %77 = tpu.matmul %76, %74, %cst_60 {dimension_numbers = #tpu.dot_dimension_numbers<[1], [0], [0], [1], [0, 0, 1, 1], [], []>} : vector<4x4xf32>, vector<4x256xf32>, vector<4x256xf32> -> vector<4x256xf32>
    %c0_61 = arith.constant 0 : index
    %c144 = arith.constant 144 : index
    %78 = vector.load %arg14[%c0_61, %c144] : memref<4x512xf32, #tpu.memory_space<vmem>>, vector<4x256xf32>
    %79 = vector.broadcast %9 : vector<1x256xf32> to vector<4x256xf32>
    %80 = arith.mulf %78, %79 : vector<4x256xf32>
    %c7 = arith.constant 7 : index
    %c0_62 = arith.constant 0 : index
    %c0_63 = arith.constant 0 : index
    %81 = vector.load %arg7[%c7, %c0_62, %c0_63] : memref<9x4x4xf32, #tpu.memory_space<vmem>>, vector<1x4x4xf32>
    %82 = vector.shape_cast %81 : vector<1x4x4xf32> to vector<4x4xf32>
    %cst_64 = arith.constant dense<0.000000e+00> : vector<4x256xf32>
    %83 = tpu.matmul %82, %80, %cst_64 {dimension_numbers = #tpu.dot_dimension_numbers<[1], [0], [0], [1], [0, 0, 1, 1], [], []>} : vector<4x4xf32>, vector<4x256xf32>, vector<4x256xf32> -> vector<4x256xf32>
    %c0_65 = arith.constant 0 : index
    %c145 = arith.constant 145 : index
    %84 = vector.load %arg14[%c0_65, %c145] : memref<4x512xf32, #tpu.memory_space<vmem>>, vector<4x256xf32>
    %85 = vector.broadcast %9 : vector<1x256xf32> to vector<4x256xf32>
    %86 = arith.mulf %84, %85 : vector<4x256xf32>
    %87 = vector.broadcast %11 : vector<1x256xf32> to vector<4x256xf32>
    %88 = arith.mulf %86, %87 : vector<4x256xf32>
    %c8 = arith.constant 8 : index
    %c0_66 = arith.constant 0 : index
    %c0_67 = arith.constant 0 : index
    %89 = vector.load %arg7[%c8, %c0_66, %c0_67] : memref<9x4x4xf32, #tpu.memory_space<vmem>>, vector<1x4x4xf32>
    %90 = vector.shape_cast %89 : vector<1x4x4xf32> to vector<4x4xf32>
    %cst_68 = arith.constant dense<0.000000e+00> : vector<4x256xf32>
    %91 = tpu.matmul %90, %88, %cst_68 {dimension_numbers = #tpu.dot_dimension_numbers<[1], [0], [0], [1], [0, 0, 1, 1], [], []>} : vector<4x4xf32>, vector<4x256xf32>, vector<4x256xf32> -> vector<4x256xf32>
    %92 = arith.addf %39, %45 : vector<4x256xf32>
    %93 = arith.addf %53, %59 : vector<4x256xf32>
    %94 = arith.addf %63, %69 : vector<4x256xf32>
    %95 = arith.addf %77, %83 : vector<4x256xf32>
    %96 = arith.addf %92, %93 : vector<4x256xf32>
    %97 = arith.addf %94, %95 : vector<4x256xf32>
    %98 = arith.addf %96, %97 : vector<4x256xf32>
    %99 = arith.addf %98, %91 : vector<4x256xf32>
    %c0_69 = arith.constant 0 : index
    %c0_70 = arith.constant 0 : index
    %c0_71 = arith.constant 0 : index
    %100 = vector.load %arg4[%c0_69, %c0_70, %c0_71] : memref<1x4x256xf32, #tpu.memory_space<vmem>>, vector<1x4x256xf32>
    %101 = vector.shape_cast %100 : vector<1x4x256xf32> to vector<4x256xf32>
    %102 = vector.broadcast %0 : f32 to vector<4x256xf32>
    %103 = arith.mulf %102, %101 : vector<4x256xf32>
    %104 = arith.addf %103, %99 : vector<4x256xf32>
    %105 = vector.broadcast %2 : f32 to vector<4x256xf32>
    %106 = arith.divf %104, %105 : vector<4x256xf32>
    %cst_72 = arith.constant 1.000000e+00 : f32
    %107 = vector.broadcast %cst_72 : f32 to vector<4x256xf32>
    %108 = arith.subf %106, %107 : vector<4x256xf32>
    %cst_73 = arith.constant 0.000000e+00 : f32
    %109 = vector.broadcast %cst_73 : f32 to vector<4x256xf32>
    %110 = arith.cmpf ogt, %108, %109 : vector<4x256xf32>
    %cst_74 = arith.constant 2.000000e+00 : f32
    %111 = arith.mulf %cst_74, %2 : f32
    %112 = vector.broadcast %111 : f32 to vector<4x256xf32>
    %113 = arith.divf %104, %112 : vector<4x256xf32>
    %cst_75 = arith.constant 1.000000e+00 : f32
    %114 = vector.broadcast %cst_75 : f32 to vector<4x256xf32>
    %115 = arith.subf %114, %113 : vector<4x256xf32>
    %cst_76 = arith.constant 0.000000e+00 : f32
    %116 = vector.broadcast %cst_76 : f32 to vector<4x256xf32>
    %117 = arith.cmpf oge, %115, %116 : vector<4x256xf32>
    %118 = arith.andi %110, %117 : vector<4x256xi1>
    %119 = arith.extui %118 : vector<4x256xi1> to vector<4x256xi32>
    %120 = arith.sitofp %119 : vector<4x256xi32> to vector<4x256xf32>
    %cst_77 = arith.constant 2.000000e+00 : f32
    %121 = arith.mulf %cst_77, %2 : f32
    %122 = vector.broadcast %121 : f32 to vector<4x256xf32>
    %123 = arith.divf %104, %122 : vector<4x256xf32>
    %cst_78 = arith.constant 1.000000e+00 : f32
    %124 = vector.broadcast %cst_78 : f32 to vector<4x256xf32>
    %125 = arith.subf %123, %124 : vector<4x256xf32>
    %cst_79 = arith.constant 0.000000e+00 : f32
    %126 = vector.broadcast %cst_79 : f32 to vector<4x256xf32>
    %127 = arith.cmpf ogt, %125, %126 : vector<4x256xf32>
    %128 = arith.extui %127 : vector<4x256xi1> to vector<4x256xi32>
    %129 = arith.sitofp %128 : vector<4x256xi32> to vector<4x256xf32>
    %cst_80 = arith.constant 2.000000e+00 : f32
    %130 = vector.broadcast %cst_80 : f32 to vector<4x256xf32>
    %131 = arith.mulf %130, %129 : vector<4x256xf32>
    %132 = arith.addf %120, %131 : vector<4x256xf32>
    %133 = vector.broadcast %2 : f32 to vector<4x256xf32>
    %134 = arith.mulf %132, %133 : vector<4x256xf32>
    %135 = arith.subf %104, %134 : vector<4x256xf32>
    %c0_81 = arith.constant 0 : index
    %c0_82 = arith.constant 0 : index
    %c0_83 = arith.constant 0 : index
    %136 = vector.load %arg10[%c0_81, %c0_82, %c0_83] : memref<1x4x256xf32, #tpu.memory_space<vmem>>, vector<1x4x256xf32>
    %137 = vector.shape_cast %136 : vector<1x4x256xf32> to vector<4x256xf32>
    %138 = vector.shape_cast %135 : vector<4x256xf32> to vector<1x4x256xf32>
    tpu.vector_store %arg10[%c0_81, %c0_82, %c0_83], %138 {strides = array<i32>} : memref<1x4x256xf32, #tpu.memory_space<vmem>>, vector<1x4x256xf32>,
    %c0_84 = arith.constant 0 : index
    %c0_85 = arith.constant 0 : index
    %c0_86 = arith.constant 0 : index
    %139 = vector.load %arg6[%c0_84, %c0_85, %c0_86] : memref<1x4x256xf32, #tpu.memory_space<vmem>>, vector<1x4x256xf32>
    %140 = vector.shape_cast %139 : vector<1x4x256xf32> to vector<4x256xf32>
    %141 = arith.mulf %120, %140 : vector<4x256xf32>
    %142 = arith.mulf %129, %140 : vector<4x256xf32>
    %143 = vector.shape_cast %141 : vector<4x256xf32> to vector<1x4x256xf32>
    %cst_87 = arith.constant dense<0.000000e+00> : vector<1xf32>
    %144 = vector.multi_reduction <add>, %143, %cst_87 [1, 2] : vector<1x4x256xf32> to vector<1xf32>
    %145 = vector.shape_cast %144 : vector<1xf32> to vector<1x1x1xf32>
    %146 = vector.extract %145[0, 0, 0] : f32 from vector<1x1x1xf32>
    %cst_88 = arith.constant 0.000000e+00 : f32
    %147 = arith.addf %cst_88, %146 : f32
    %148 = vector.shape_cast %142 : vector<4x256xf32> to vector<1x4x256xf32>
    %cst_89 = arith.constant dense<0.000000e+00> : vector<1xf32>
    %149 = vector.multi_reduction <add>, %148, %cst_89 [1, 2] : vector<1x4x256xf32> to vector<1xf32>
    %150 = vector.shape_cast %149 : vector<1xf32> to vector<1x1x1xf32>
    %151 = vector.extract %150[0, 0, 0] : f32 from vector<1x1x1xf32>
    %152 = arith.addf %147, %151 : f32
    %cst_90 = arith.constant 2.000000e+00 : f32
    %153 = vector.broadcast %cst_90 : f32 to vector<4x256xf32>
    %154 = arith.mulf %153, %142 : vector<4x256xf32>
    %155 = arith.addf %141, %154 : vector<4x256xf32>
    %c0_91 = arith.constant 0 : index
    %c128_92 = arith.constant 128 : index
    %156 = vector.load %arg14[%c0_91, %c128_92] : memref<4x512xf32, #tpu.memory_space<vmem>>, vector<4x256xf32>
    tpu.vector_store %arg14[%c0_91, %c128_92], %155 {strides = array<i32>} : memref<4x512xf32, #tpu.memory_space<vmem>>, vector<4x256xf32>,
    %157 = vector.broadcast %152 : f32 to vector<1x1x128xf32>
    %c0_93 = arith.constant 0 : index
    %c0_94 = arith.constant 0 : index
    %c0_95 = arith.constant 0 : index
    %158 = vector.load %arg13[%c0_93, %c0_94, %c0_95] : memref<1x1x128xf32, #tpu.memory_space<vmem>>, vector<1x1x128xf32>
    tpu.vector_store %arg13[%c0_93, %c0_94, %c0_95], %157 {strides = array<i32>} : memref<1x1x128xf32, #tpu.memory_space<vmem>>, vector<1x1x128xf32>,
    %c0_96 = arith.constant 0 : index
    %c111_97 = arith.constant 111 : index
    %159 = vector.load %arg14[%c0_96, %c111_97] : memref<4x512xf32, #tpu.memory_space<vmem>>, vector<4x256xf32>
    %160 = vector.broadcast %8 : vector<1x256xf32> to vector<4x256xf32>
    %161 = arith.mulf %159, %160 : vector<4x256xf32>
    %162 = vector.broadcast %10 : vector<1x256xf32> to vector<4x256xf32>
    %163 = arith.mulf %161, %162 : vector<4x256xf32>
    %c0_98 = arith.constant 0 : index
    %c0_99 = arith.constant 0 : index
    %c0_100 = arith.constant 0 : index
    %164 = vector.load %arg8[%c0_98, %c0_99, %c0_100] : memref<9x4x4xf32, #tpu.memory_space<vmem>>, vector<1x4x4xf32>
    %165 = vector.shape_cast %164 : vector<1x4x4xf32> to vector<4x4xf32>
    %cst_101 = arith.constant dense<0.000000e+00> : vector<4x256xf32>
    %166 = tpu.matmul %165, %163, %cst_101 {dimension_numbers = #tpu.dot_dimension_numbers<[1], [0], [0], [1], [0, 0, 1, 1], [], []>} : vector<4x4xf32>, vector<4x256xf32>, vector<4x256xf32> -> vector<4x256xf32>
    %c0_102 = arith.constant 0 : index
    %c112_103 = arith.constant 112 : index
    %167 = vector.load %arg14[%c0_102, %c112_103] : memref<4x512xf32, #tpu.memory_space<vmem>>, vector<4x256xf32>
    %168 = vector.broadcast %8 : vector<1x256xf32> to vector<4x256xf32>
    %169 = arith.mulf %167, %168 : vector<4x256xf32>
    %c1_104 = arith.constant 1 : index
    %c0_105 = arith.constant 0 : index
    %c0_106 = arith.constant 0 : index
    %170 = vector.load %arg8[%c1_104, %c0_105, %c0_106] : memref<9x4x4xf32, #tpu.memory_space<vmem>>, vector<1x4x4xf32>
    %171 = vector.shape_cast %170 : vector<1x4x4xf32> to vector<4x4xf32>
    %cst_107 = arith.constant dense<0.000000e+00> : vector<4x256xf32>
    %172 = tpu.matmul %171, %169, %cst_107 {dimension_numbers = #tpu.dot_dimension_numbers<[1], [0], [0], [1], [0, 0, 1, 1], [], []>} : vector<4x4xf32>, vector<4x256xf32>, vector<4x256xf32> -> vector<4x256xf32>
    %c0_108 = arith.constant 0 : index
    %c113_109 = arith.constant 113 : index
    %173 = vector.load %arg14[%c0_108, %c113_109] : memref<4x512xf32, #tpu.memory_space<vmem>>, vector<4x256xf32>
    %174 = vector.broadcast %8 : vector<1x256xf32> to vector<4x256xf32>
    %175 = arith.mulf %173, %174 : vector<4x256xf32>
    %176 = vector.broadcast %11 : vector<1x256xf32> to vector<4x256xf32>
    %177 = arith.mulf %175, %176 : vector<4x256xf32>
    %c2_110 = arith.constant 2 : index
    %c0_111 = arith.constant 0 : index
    %c0_112 = arith.constant 0 : index
    %178 = vector.load %arg8[%c2_110, %c0_111, %c0_112] : memref<9x4x4xf32, #tpu.memory_space<vmem>>, vector<1x4x4xf32>
    %179 = vector.shape_cast %178 : vector<1x4x4xf32> to vector<4x4xf32>
    %cst_113 = arith.constant dense<0.000000e+00> : vector<4x256xf32>
    %180 = tpu.matmul %179, %177, %cst_113 {dimension_numbers = #tpu.dot_dimension_numbers<[1], [0], [0], [1], [0, 0, 1, 1], [], []>} : vector<4x4xf32>, vector<4x256xf32>, vector<4x256xf32> -> vector<4x256xf32>
    %c0_114 = arith.constant 0 : index
    %c127_115 = arith.constant 127 : index
    %181 = vector.load %arg14[%c0_114, %c127_115] : memref<4x512xf32, #tpu.memory_space<vmem>>, vector<4x256xf32>
    %182 = vector.broadcast %10 : vector<1x256xf32> to vector<4x256xf32>
    %183 = arith.mulf %181, %182 : vector<4x256xf32>
    %c3_116 = arith.constant 3 : index
    %c0_117 = arith.constant 0 : index
    %c0_118 = arith.constant 0 : index
    %184 = vector.load %arg8[%c3_116, %c0_117, %c0_118] : memref<9x4x4xf32, #tpu.memory_space<vmem>>, vector<1x4x4xf32>
    %185 = vector.shape_cast %184 : vector<1x4x4xf32> to vector<4x4xf32>
    %cst_119 = arith.constant dense<0.000000e+00> : vector<4x256xf32>
    %186 = tpu.matmul %185, %183, %cst_119 {dimension_numbers = #tpu.dot_dimension_numbers<[1], [0], [0], [1], [0, 0, 1, 1], [], []>} : vector<4x4xf32>, vector<4x256xf32>, vector<4x256xf32> -> vector<4x256xf32>
    %c0_120 = arith.constant 0 : index
    %c128_121 = arith.constant 128 : index
    %187 = vector.load %arg14[%c0_120, %c128_121] : memref<4x512xf32, #tpu.memory_space<vmem>>, vector<4x256xf32>
    %c4_122 = arith.constant 4 : index
    %c0_123 = arith.constant 0 : index
    %c0_124 = arith.constant 0 : index
    %188 = vector.load %arg8[%c4_122, %c0_123, %c0_124] : memref<9x4x4xf32, #tpu.memory_space<vmem>>, vector<1x4x4xf32>
    %189 = vector.shape_cast %188 : vector<1x4x4xf32> to vector<4x4xf32>
    %cst_125 = arith.constant dense<0.000000e+00> : vector<4x256xf32>
    %190 = tpu.matmul %189, %187, %cst_125 {dimension_numbers = #tpu.dot_dimension_numbers<[1], [0], [0], [1], [0, 0, 1, 1], [], []>} : vector<4x4xf32>, vector<4x256xf32>, vector<4x256xf32> -> vector<4x256xf32>
    %c0_126 = arith.constant 0 : index
    %c129_127 = arith.constant 129 : index
    %191 = vector.load %arg14[%c0_126, %c129_127] : memref<4x512xf32, #tpu.memory_space<vmem>>, vector<4x256xf32>
    %192 = vector.broadcast %11 : vector<1x256xf32> to vector<4x256xf32>
    %193 = arith.mulf %191, %192 : vector<4x256xf32>
    %c5_128 = arith.constant 5 : index
    %c0_129 = arith.constant 0 : index
    %c0_130 = arith.constant 0 : index
    %194 = vector.load %arg8[%c5_128, %c0_129, %c0_130] : memref<9x4x4xf32, #tpu.memory_space<vmem>>, vector<1x4x4xf32>
    %195 = vector.shape_cast %194 : vector<1x4x4xf32> to vector<4x4xf32>
    %cst_131 = arith.constant dense<0.000000e+00> : vector<4x256xf32>
    %196 = tpu.matmul %195, %193, %cst_131 {dimension_numbers = #tpu.dot_dimension_numbers<[1], [0], [0], [1], [0, 0, 1, 1], [], []>} : vector<4x4xf32>, vector<4x256xf32>, vector<4x256xf32> -> vector<4x256xf32>
    %c0_132 = arith.constant 0 : index
    %c143_133 = arith.constant 143 : index
    %197 = vector.load %arg14[%c0_132, %c143_133] : memref<4x512xf32, #tpu.memory_space<vmem>>, vector<4x256xf32>
    %198 = vector.broadcast %9 : vector<1x256xf32> to vector<4x256xf32>
    %199 = arith.mulf %197, %198 : vector<4x256xf32>
    %200 = vector.broadcast %10 : vector<1x256xf32> to vector<4x256xf32>
    %201 = arith.mulf %199, %200 : vector<4x256xf32>
    %c6_134 = arith.constant 6 : index
    %c0_135 = arith.constant 0 : index
    %c0_136 = arith.constant 0 : index
    %202 = vector.load %arg8[%c6_134, %c0_135, %c0_136] : memref<9x4x4xf32, #tpu.memory_space<vmem>>, vector<1x4x4xf32>
    %203 = vector.shape_cast %202 : vector<1x4x4xf32> to vector<4x4xf32>
    %cst_137 = arith.constant dense<0.000000e+00> : vector<4x256xf32>
    %204 = tpu.matmul %203, %201, %cst_137 {dimension_numbers = #tpu.dot_dimension_numbers<[1], [0], [0], [1], [0, 0, 1, 1], [], []>} : vector<4x4xf32>, vector<4x256xf32>, vector<4x256xf32> -> vector<4x256xf32>
    %c0_138 = arith.constant 0 : index
    %c144_139 = arith.constant 144 : index
    %205 = vector.load %arg14[%c0_138, %c144_139] : memref<4x512xf32, #tpu.memory_space<vmem>>, vector<4x256xf32>
    %206 = vector.broadcast %9 : vector<1x256xf32> to vector<4x256xf32>
    %207 = arith.mulf %205, %206 : vector<4x256xf32>
    %c7_140 = arith.constant 7 : index
    %c0_141 = arith.constant 0 : index
    %c0_142 = arith.constant 0 : index
    %208 = vector.load %arg8[%c7_140, %c0_141, %c0_142] : memref<9x4x4xf32, #tpu.memory_space<vmem>>, vector<1x4x4xf32>
    %209 = vector.shape_cast %208 : vector<1x4x4xf32> to vector<4x4xf32>
    %cst_143 = arith.constant dense<0.000000e+00> : vector<4x256xf32>
    %210 = tpu.matmul %209, %207, %cst_143 {dimension_numbers = #tpu.dot_dimension_numbers<[1], [0], [0], [1], [0, 0, 1, 1], [], []>} : vector<4x4xf32>, vector<4x256xf32>, vector<4x256xf32> -> vector<4x256xf32>
    %c0_144 = arith.constant 0 : index
    %c145_145 = arith.constant 145 : index
    %211 = vector.load %arg14[%c0_144, %c145_145] : memref<4x512xf32, #tpu.memory_space<vmem>>, vector<4x256xf32>
    %212 = vector.broadcast %9 : vector<1x256xf32> to vector<4x256xf32>
    %213 = arith.mulf %211, %212 : vector<4x256xf32>
    %214 = vector.broadcast %11 : vector<1x256xf32> to vector<4x256xf32>
    %215 = arith.mulf %213, %214 : vector<4x256xf32>
    %c8_146 = arith.constant 8 : index
    %c0_147 = arith.constant 0 : index
    %c0_148 = arith.constant 0 : index
    %216 = vector.load %arg8[%c8_146, %c0_147, %c0_148] : memref<9x4x4xf32, #tpu.memory_space<vmem>>, vector<1x4x4xf32>
    %217 = vector.shape_cast %216 : vector<1x4x4xf32> to vector<4x4xf32>
    %cst_149 = arith.constant dense<0.000000e+00> : vector<4x256xf32>
    %218 = tpu.matmul %217, %215, %cst_149 {dimension_numbers = #tpu.dot_dimension_numbers<[1], [0], [0], [1], [0, 0, 1, 1], [], []>} : vector<4x4xf32>, vector<4x256xf32>, vector<4x256xf32> -> vector<4x256xf32>
    %219 = arith.addf %166, %172 : vector<4x256xf32>
    %220 = arith.addf %180, %186 : vector<4x256xf32>
    %221 = arith.addf %190, %196 : vector<4x256xf32>
    %222 = arith.addf %204, %210 : vector<4x256xf32>
    %223 = arith.addf %219, %220 : vector<4x256xf32>
    %224 = arith.addf %221, %222 : vector<4x256xf32>
    %225 = arith.addf %223, %224 : vector<4x256xf32>
    %226 = arith.addf %225, %218 : vector<4x256xf32>
    %c0_150 = arith.constant 0 : index
    %c0_151 = arith.constant 0 : index
    %c0_152 = arith.constant 0 : index
    %c0_153 = arith.constant 0 : index
    %227 = vector.load %arg3[%c0_150, %c0_151, %c0_152, %c0_153] : memref<2x1x4x256xf32, #tpu.memory_space<vmem>>, vector<1x1x4x256xf32>
    %228 = vector.shape_cast %227 : vector<1x1x4x256xf32> to vector<4x256xf32>
    %c1_154 = arith.constant 1 : index
    %c0_155 = arith.constant 0 : index
    %c0_156 = arith.constant 0 : index
    %c0_157 = arith.constant 0 : index
    %229 = vector.load %arg3[%c1_154, %c0_155, %c0_156, %c0_157] : memref<2x1x4x256xf32, #tpu.memory_space<vmem>>, vector<1x1x4x256xf32>
    %230 = vector.shape_cast %229 : vector<1x1x4x256xf32> to vector<4x256xf32>
    %cst_158 = arith.constant 2.000000e+00 : f32
    %231 = vector.broadcast %cst_158 : f32 to vector<4x256xf32>
    %232 = arith.mulf %231, %230 : vector<4x256xf32>
    %233 = arith.addf %228, %232 : vector<4x256xf32>
    %c0_159 = arith.constant 0 : index
    %c0_160 = arith.constant 0 : index
    %c0_161 = arith.constant 0 : index
    %234 = vector.load %arg5[%c0_159, %c0_160, %c0_161] : memref<1x4x256xf32, #tpu.memory_space<vmem>>, vector<1x4x256xf32>
    %235 = vector.shape_cast %234 : vector<1x4x256xf32> to vector<4x256xf32>
    %236 = vector.broadcast %1 : f32 to vector<4x256xf32>
    %237 = arith.mulf %236, %235 : vector<4x256xf32>
    %238 = arith.addf %237, %226 : vector<4x256xf32>
    %239 = arith.addf %238, %233 : vector<4x256xf32>
    %240 = vector.broadcast %3 : f32 to vector<4x256xf32>
    %241 = arith.divf %239, %240 : vector<4x256xf32>
    %cst_162 = arith.constant 1.000000e+00 : f32
    %242 = vector.broadcast %cst_162 : f32 to vector<4x256xf32>
    %243 = arith.subf %241, %242 : vector<4x256xf32>
    %cst_163 = arith.constant 0.000000e+00 : f32
    %244 = vector.broadcast %cst_163 : f32 to vector<4x256xf32>
    %245 = arith.cmpf ogt, %243, %244 : vector<4x256xf32>
    %cst_164 = arith.constant 2.000000e+00 : f32
    %246 = arith.mulf %cst_164, %3 : f32
    %247 = vector.broadcast %246 : f32 to vector<4x256xf32>
    %248 = arith.divf %239, %247 : vector<4x256xf32>
    %cst_165 = arith.constant 1.000000e+00 : f32
    %249 = vector.broadcast %cst_165 : f32 to vector<4x256xf32>
    %250 = arith.subf %249, %248 : vector<4x256xf32>
    %cst_166 = arith.constant 0.000000e+00 : f32
    %251 = vector.broadcast %cst_166 : f32 to vector<4x256xf32>
    %252 = arith.cmpf oge, %250, %251 : vector<4x256xf32>
    %253 = arith.andi %245, %252 : vector<4x256xi1>
    %254 = arith.extui %253 : vector<4x256xi1> to vector<4x256xi32>
    %255 = arith.sitofp %254 : vector<4x256xi32> to vector<4x256xf32>
    %cst_167 = arith.constant 2.000000e+00 : f32
    %256 = arith.mulf %cst_167, %3 : f32
    %257 = vector.broadcast %256 : f32 to vector<4x256xf32>
    %258 = arith.divf %239, %257 : vector<4x256xf32>
    %cst_168 = arith.constant 1.000000e+00 : f32
    %259 = vector.broadcast %cst_168 : f32 to vector<4x256xf32>
    %260 = arith.subf %258, %259 : vector<4x256xf32>
    %cst_169 = arith.constant 0.000000e+00 : f32
    %261 = vector.broadcast %cst_169 : f32 to vector<4x256xf32>
    %262 = arith.cmpf ogt, %260, %261 : vector<4x256xf32>
    %263 = arith.extui %262 : vector<4x256xi1> to vector<4x256xi32>
    %264 = arith.sitofp %263 : vector<4x256xi32> to vector<4x256xf32>
    %cst_170 = arith.constant 2.000000e+00 : f32
    %265 = vector.broadcast %cst_170 : f32 to vector<4x256xf32>
    %266 = arith.mulf %265, %264 : vector<4x256xf32>
    %267 = arith.addf %255, %266 : vector<4x256xf32>
    %268 = vector.broadcast %3 : f32 to vector<4x256xf32>
    %269 = arith.mulf %267, %268 : vector<4x256xf32>
    %270 = arith.subf %239, %269 : vector<4x256xf32>
    %c0_171 = arith.constant 0 : index
    %c0_172 = arith.constant 0 : index
    %c0_173 = arith.constant 0 : index
    %271 = vector.load %arg11[%c0_171, %c0_172, %c0_173] : memref<1x4x256xf32, #tpu.memory_space<vmem>>, vector<1x4x256xf32>
    %272 = vector.shape_cast %271 : vector<1x4x256xf32> to vector<4x256xf32>
    %273 = vector.shape_cast %270 : vector<4x256xf32> to vector<1x4x256xf32>
    tpu.vector_store %arg11[%c0_171, %c0_172, %c0_173], %273 {strides = array<i32>} : memref<1x4x256xf32, #tpu.memory_space<vmem>>, vector<1x4x256xf32>,
    %c0_174 = arith.constant 0 : index
    %c0_175 = arith.constant 0 : index
    %c0_176 = arith.constant 0 : index
    %c0_177 = arith.constant 0 : index
    %274 = vector.load %arg9[%c0_174, %c0_175, %c0_176, %c0_177] : memref<2x1x4x256xf32, #tpu.memory_space<vmem>>, vector<1x1x4x256xf32>
    %275 = vector.shape_cast %274 : vector<1x1x4x256xf32> to vector<4x256xf32>
    %276 = vector.shape_cast %255 : vector<4x256xf32> to vector<1x1x4x256xf32>
    tpu.vector_store %arg9[%c0_174, %c0_175, %c0_176, %c0_177], %276 {strides = array<i32>} : memref<2x1x4x256xf32, #tpu.memory_space<vmem>>, vector<1x1x4x256xf32>,
    %c1_178 = arith.constant 1 : index
    %c0_179 = arith.constant 0 : index
    %c0_180 = arith.constant 0 : index
    %c0_181 = arith.constant 0 : index
    %277 = vector.load %arg9[%c1_178, %c0_179, %c0_180, %c0_181] : memref<2x1x4x256xf32, #tpu.memory_space<vmem>>, vector<1x1x4x256xf32>
    %278 = vector.shape_cast %277 : vector<1x1x4x256xf32> to vector<4x256xf32>
    %279 = vector.shape_cast %264 : vector<4x256xf32> to vector<1x1x4x256xf32>
    tpu.vector_store %arg9[%c1_178, %c0_179, %c0_180, %c0_181], %279 {strides = array<i32>} : memref<2x1x4x256xf32, #tpu.memory_space<vmem>>, vector<1x1x4x256xf32>,
    return
  }
  func.func @transform_0(%arg0: i32) -> i32 {
    %c0_i32 = arith.constant 0 : i32
    %c0_i32_0 = arith.constant 0 : i32
    return %c0_i32 : i32
  }
  func.func @transform_1(%arg0: i32) -> (i32, i32) {
    %c0_i32 = arith.constant 0 : i32
    %c0_i32_0 = arith.constant 0 : i32
    %c0_i32_1 = arith.constant 0 : i32
    return %c0_i32, %c0_i32_0 : i32, i32
  }
  func.func @transform_2(%arg0: i32) -> (i32, i32, i32, i32) {
    %c0_i32 = arith.constant 0 : i32
    %c0_i32_0 = arith.constant 0 : i32
    %c0_i32_1 = arith.constant 0 : i32
    %c0_i32_2 = arith.constant 0 : i32
    return %c0_i32, %arg0, %c0_i32_0, %c0_i32_1 : i32, i32, i32, i32
  }
  func.func @transform_3(%arg0: i32) -> (i32, i32, i32) {
    %c0_i32 = arith.constant 0 : i32
    %c0_i32_0 = arith.constant 0 : i32
    %c0_i32_1 = arith.constant 0 : i32
    return %arg0, %c0_i32, %c0_i32_0 : i32, i32, i32
  }
  func.func @transform_4(%arg0: i32) -> (i32, i32, i32) {
    %c0_i32 = arith.constant 0 : i32
    %c0_i32_0 = arith.constant 0 : i32
    %c0_i32_1 = arith.constant 0 : i32
    return %arg0, %c0_i32, %c0_i32_0 : i32, i32, i32
  }
  func.func @transform_5(%arg0: i32) -> (i32, i32, i32) {
    %c0_i32 = arith.constant 0 : i32
    %c0_i32_0 = arith.constant 0 : i32
    %c0_i32_1 = arith.constant 0 : i32
    return %arg0, %c0_i32, %c0_i32_0 : i32, i32, i32
  }
  func.func @transform_6(%arg0: i32) -> (i32, i32, i32) {
    %c0_i32 = arith.constant 0 : i32
    %c0_i32_0 = arith.constant 0 : i32
    %c0_i32_1 = arith.constant 0 : i32
    %c0_i32_2 = arith.constant 0 : i32
    return %c0_i32, %c0_i32_0, %c0_i32_1 : i32, i32, i32
  }
  func.func @transform_7(%arg0: i32) -> (i32, i32, i32) {
    %c0_i32 = arith.constant 0 : i32
    %c0_i32_0 = arith.constant 0 : i32
    %c0_i32_1 = arith.constant 0 : i32
    %c0_i32_2 = arith.constant 0 : i32
    return %c0_i32, %c0_i32_0, %c0_i32_1 : i32, i32, i32
  }
  func.func @transform_8(%arg0: i32) -> (i32, i32, i32, i32) {
    %c0_i32 = arith.constant 0 : i32
    %c0_i32_0 = arith.constant 0 : i32
    %c0_i32_1 = arith.constant 0 : i32
    %c0_i32_2 = arith.constant 0 : i32
    return %c0_i32, %arg0, %c0_i32_0, %c0_i32_1 : i32, i32, i32, i32
  }
  func.func @transform_9(%arg0: i32) -> (i32, i32, i32) {
    %c0_i32 = arith.constant 0 : i32
    %c0_i32_0 = arith.constant 0 : i32
    %c0_i32_1 = arith.constant 0 : i32
    return %arg0, %c0_i32, %c0_i32_0 : i32, i32, i32
  }
  func.func @transform_10(%arg0: i32) -> (i32, i32, i32) {
    %c0_i32 = arith.constant 0 : i32
    %c0_i32_0 = arith.constant 0 : i32
    %c0_i32_1 = arith.constant 0 : i32
    return %arg0, %c0_i32, %c0_i32_0 : i32, i32, i32
  }
  func.func @transform_11(%arg0: i32) -> (i32, i32, i32) {
    %c0_i32 = arith.constant 0 : i32
    %c0_i32_0 = arith.constant 0 : i32
    %c0_i32_1 = arith.constant 0 : i32
    return %arg0, %c0_i32, %c0_i32_0 : i32, i32, i32
  }
  func.func @transform_12(%arg0: i32) -> (i32, i32, i32) {
    %c0_i32 = arith.constant 0 : i32
    %c0_i32_0 = arith.constant 0 : i32
    %c0_i32_1 = arith.constant 0 : i32
    return %arg0, %c0_i32, %c0_i32_0 : i32, i32, i32
  }
}

</mosaic_0001>

<llo_original>
// kernel: basic_block_mc_forward.1
$region0: #{basic_block_mc_forward.1}
  #allocation0 [shape = 'u32[]', space=smem, size = 0x4, offset = 0x4, fixed_abs, tag = 'smem constant byte address 0x4 - core index']
  #allocation1 [shape = 'u32[72,128]{1,0:T(1,128)}', space=vmem, size = 0x9000, scoped, tag = 'internal scratch']
  #allocation2 [shape = 'f32[4,512]{1,0:T(4,128)}', space=vmem, size = 0x2000, scoped, tag = 'scratch operand']
  %s0 = inlined_call_operand.vmem [shape: f32[4], index: 0, kind: input, shape index: {}]
  %s1 = inlined_call_operand.vmem [shape: f32[4,256], index: 1, kind: input, shape index: {}]
  %s2 = inlined_call_operand.vmem [shape: f32[2,2,4,256], index: 2, kind: input, shape index: {}]
  %s3 = inlined_call_operand.vmem [shape: f32[2,4,256], index: 3, kind: input, shape index: {}, may-alias: {3,9}]
  %s4 = inlined_call_operand.vmem [shape: f32[2,4,256], index: 4, kind: input, shape index: {}, may-alias: {4,10}]
  %s5 = inlined_call_operand.vmem [shape: f32[2,4,256], index: 5, kind: input, shape index: {}]
  %s6 = inlined_call_operand.vmem [shape: f32[9,4,4], index: 6, kind: input, shape index: {}]
  %s7 = inlined_call_operand.vmem [shape: f32[9,4,4], index: 7, kind: input, shape index: {}]
  %s8 = inlined_call_operand.vmem [shape: f32[2,2,4,256], index: 8, kind: output, shape index: {0}]
  %s9 = inlined_call_operand.vmem [shape: f32[2,4,256], index: 9, kind: output, shape index: {1}, may-alias: {3,9}]
  %s10 = inlined_call_operand.vmem [shape: f32[2,4,256], index: 10, kind: output, shape index: {2}, may-alias: {4,10}]
  %s11 = inlined_call_operand.vmem [shape: f32[2,1,128], index: 11, kind: output, shape index: {3}]
  %s12 = inlined_call_operand.vmem [shape: f32[2,1,128], index: 12, kind: output, shape index: {4}]
  %13 = xla_tuple %s8, %s9, %s10, %s11, %s12
  %s14 = sld [smem:[#allocation0]]
  $region173: #{basic_block_mc_forward.1} parent=0
    _
  %s16 = ssub.s32 1, %s14
  %s17 = scalar_select 0, %s16, %s14
  $region1: #{basic_block_mc_forward.1} parent=0
    #allocation3 [shape = 'u8[512]{0}', space=smem, size = 0x200, scoped, tag = 'input window, operand 0, single buffered']
    #allocation4 [shape = 's32[2]{0}', space=sflag, size = 0x8, scoped, tag = 'scoped memory for basic_block_mc_forward.1']
    #allocation5 [shape = 'u8[16384]{0}', space=vmem, size = 0x4000, scoped, tag = 'input window, operand 2']
    #allocation6 [shape = 'u8[16384]{0}', space=vmem, size = 0x4000, scoped, tag = 'output window, operand 0']
    %18 = vsyncpa [#allocation4], 0
    loop: start=0, step=1, limit=4
    $region2: #{basic_block_mc_forward.1} parent=1 // loop_pre_header
      _
    $region3: #{basic_block_mc_forward.1} parent=1 // loop_header
      %s20 = sphi 0, %s24
      %p21 = scmp.ge.s32.totalorder %s20, 4
      %s28 = sphi 0, %s28
      %s30 = sphi 0, %s28
      %s31 = sphi 0, %s30
      %s45 = sphi 0, %s31
      %s49 = sphi 0, %s49
      %s51 = sphi 0, %s49
      %s52 = sphi 0, %s51
      %s66 = sphi 0, %s52
      %s72 = sphi 0, %s74
      %s75 = sphi 0, %s72
      %s76 = sphi 0, %s75
      %s92 = sphi 0, %s76
      %s98 = sphi 0, %s100
      %s101 = sphi 0, %s98
      %s102 = sphi 0, %s101
      %s118 = sphi 0, %s102
      %s124 = sphi 0, %s126
      %s127 = sphi 0, %s124
      %s128 = sphi 0, %s127
      %s144 = sphi 0, %s128
      %s150 = sphi 0, %s152
      %s153 = sphi 0, %s150
      %s154 = sphi 0, %s153
      %s170 = sphi 0, %s154
      %s174 = sphi 0, %s174
      %s176 = sphi 0, %s174
      %s177 = sphi 0, %s176
      %s191 = sphi 0, %s177
      %s195 = sphi 0, %s195
      %s197 = sphi 0, %s195
      %s198 = sphi 0, %s197
      %s212 = sphi 0, %s198
      %s218 = sphi 0, %s220
      %s221 = sphi 0, %s218
      %s222 = sphi 0, %s221
      %s238 = sphi 0, %s222
      %s244 = sphi 0, %s246
      %s247 = sphi 0, %s244
      %s248 = sphi 0, %s247
      %s264 = sphi 0, %s248
      %s270 = sphi 0, %s272
      %s273 = sphi 0, %s270
      %s274 = sphi 0, %s273
      %s290 = sphi 0, %s274
      %s296 = sphi 0, %s298
      %s299 = sphi 0, %s296
      %s300 = sphi 0, %s299
      %s316 = sphi 0, %s300
      %s322 = sphi 0, %s324
      %s325 = sphi 0, %s322
      %s326 = sphi 0, %s325
      %s342 = sphi 0, %s326
    $region4: #{basic_block_mc_forward.1} parent=1 // loop_header_branch
      %23 = sbr.rel (%p21) target = $region8
    $region5: #{basic_block_mc_forward.1} parent=1 // loop_body
      %s25 = ssub.s32 %s20, 1
      %s26 = ssub.s32 %s20, 2
      %s27 = sadd.s32 %s20, 1
      %s29 = sadd.s32 %s28, 1
      %p32 = scmp.eq.s32.totalorder %s20, 1
      %p33 = scmp.ne.s32.totalorder %s28, %s30
      %p34 = scmp.eq.s32.totalorder %s20, 0
      %p35 = por %p33, %p34
      %p36 = scmp.ne.s32.totalorder %s28, %s30
      %p37 = scmp.eq.s32.totalorder %s25, 1
      %p38 = por %p36, %p37
      %p39 = scmp.ne.s32.totalorder %s30, %s31
      %p40 = scmp.eq.s32.totalorder %s25, 0
      %p41 = por %p39, %p40
      %p42 = scmp.ne.s32.totalorder %s30, %s31
      %p43 = scmp.eq.s32.totalorder %s26, 1
      %p44 = por %p42, %p43
      %p46 = scmp.ne.s32.totalorder %s31, %s45
      %p47 = scmp.eq.s32.totalorder %s26, 0
      %p48 = por %p46, %p47
      %s50 = sadd.s32 %s49, 1
      %p53 = scmp.eq.s32.totalorder %s20, 1
      %p54 = scmp.ne.s32.totalorder %s49, %s51
      %p55 = scmp.eq.s32.totalorder %s20, 0
      %p56 = por %p54, %p55
      %p57 = scmp.ne.s32.totalorder %s49, %s51
      %p58 = scmp.eq.s32.totalorder %s25, 1
      %p59 = por %p57, %p58
      %p60 = scmp.ne.s32.totalorder %s51, %s52
      %p61 = scmp.eq.s32.totalorder %s25, 0
      %p62 = por %p60, %p61
      %p63 = scmp.ne.s32.totalorder %s51, %s52
      %p64 = scmp.eq.s32.totalorder %s26, 1
      %p65 = por %p63, %p64
      %p67 = scmp.ne.s32.totalorder %s52, %s66
      %p68 = scmp.eq.s32.totalorder %s26, 0
      %p69 = por %p67, %p68
      %s70 = ssub.s32 %s20, %s27
      %p71 = scmp.eq.s32.totalorder %s70, 0
      %s73 = sadd.s32 %s72, 1
      %s74 = scalar_select %p71, %s72, %s73
      %p77 = pneg %p71
      %p78 = scmp.eq.s32.totalorder %s20, 1
      %p79 = por %p77, %p78
      %p80 = scmp.ne.s32.totalorder %s72, %s75
      %p81 = scmp.eq.s32.totalorder %s20, 0
      %p82 = por %p80, %p81
      %p83 = scmp.ne.s32.totalorder %s72, %s75
      %p84 = scmp.eq.s32.totalorder %s25, 1
      %p85 = por %p83, %p84
      %p86 = scmp.ne.s32.totalorder %s75, %s76
      %p87 = scmp.eq.s32.totalorder %s25, 0
      %p88 = por %p86, %p87
      %p89 = scmp.ne.s32.totalorder %s75, %s76
      %p90 = scmp.eq.s32.totalorder %s26, 1
      %p91 = por %p89, %p90
      %p93 = scmp.ne.s32.totalorder %s76, %s92
      %p94 = scmp.eq.s32.totalorder %s26, 0
      %p95 = por %p93, %p94
      %s96 = ssub.s32 %s20, %s27
      %p97 = scmp.eq.s32.totalorder %s96, 0
      %s99 = sadd.s32 %s98, 1
      %s100 = scalar_select %p97, %s98, %s99
      %p103 = pneg %p97
      %p104 = scmp.eq.s32.totalorder %s20, 1
      %p105 = por %p103, %p104
      %p106 = scmp.ne.s32.totalorder %s98, %s101
      %p107 = scmp.eq.s32.totalorder %s20, 0
      %p108 = por %p106, %p107
      %p109 = scmp.ne.s32.totalorder %s98, %s101
      %p110 = scmp.eq.s32.totalorder %s25, 1
      %p111 = por %p109, %p110
      %p112 = scmp.ne.s32.totalorder %s101, %s102
      %p113 = scmp.eq.s32.totalorder %s25, 0
      %p114 = por %p112, %p113
      %p115 = scmp.ne.s32.totalorder %s101, %s102
      %p116 = scmp.eq.s32.totalorder %s26, 1
      %p117 = por %p115, %p116
      %p119 = scmp.ne.s32.totalorder %s102, %s118
      %p120 = scmp.eq.s32.totalorder %s26, 0
      %p121 = por %p119, %p120
      %s122 = ssub.s32 %s20, %s27
      %p123 = scmp.eq.s32.totalorder %s122, 0
      %s125 = sadd.s32 %s124, 1
      %s126 = scalar_select %p123, %s124, %s125
      %p129 = pneg %p123
      %p130 = scmp.eq.s32.totalorder %s20, 1
      %p131 = por %p129, %p130
      %p132 = scmp.ne.s32.totalorder %s124, %s127
      %p133 = scmp.eq.s32.totalorder %s20, 0
      %p134 = por %p132, %p133
      %p135 = scmp.ne.s32.totalorder %s124, %s127
      %p136 = scmp.eq.s32.totalorder %s25, 1
      %p137 = por %p135, %p136
      %p138 = scmp.ne.s32.totalorder %s127, %s128
      %p139 = scmp.eq.s32.totalorder %s25, 0
      %p140 = por %p138, %p139
      %p141 = scmp.ne.s32.totalorder %s127, %s128
      %p142 = scmp.eq.s32.totalorder %s26, 1
      %p143 = por %p141, %p142
      %p145 = scmp.ne.s32.totalorder %s128, %s144
      %p146 = scmp.eq.s32.totalorder %s26, 0
      %p147 = por %p145, %p146
      %s148 = ssub.s32 %s20, %s27
      %p149 = scmp.eq.s32.totalorder %s148, 0
      %s151 = sadd.s32 %s150, 1
      %s152 = scalar_select %p149, %s150, %s151
      %p155 = pneg %p149
      %p156 = scmp.eq.s32.totalorder %s20, 1
      %p157 = por %p155, %p156
      %p158 = scmp.ne.s32.totalorder %s150, %s153
      %p159 = scmp.eq.s32.totalorder %s20, 0
      %p160 = por %p158, %p159
      %p161 = scmp.ne.s32.totalorder %s150, %s153
      %p162 = scmp.eq.s32.totalorder %s25, 1
      %p163 = por %p161, %p162
      %p164 = scmp.ne.s32.totalorder %s153, %s154
      %p165 = scmp.eq.s32.totalorder %s25, 0
      %p166 = por %p164, %p165
      %p167 = scmp.ne.s32.totalorder %s153, %s154
      %p168 = scmp.eq.s32.totalorder %s26, 1
      %p169 = por %p167, %p168
      %p171 = scmp.ne.s32.totalorder %s154, %s170
      %p172 = scmp.eq.s32.totalorder %s26, 0
      %p173 = por %p171, %p172
      %s175 = sadd.s32 %s174, 1
      %p178 = scmp.eq.s32.totalorder %s20, 1
      %p179 = scmp.ne.s32.totalorder %s174, %s176
      %p180 = scmp.eq.s32.totalorder %s20, 0
      %p181 = por %p179, %p180
      %p182 = scmp.ne.s32.totalorder %s174, %s176
      %p183 = scmp.eq.s32.totalorder %s25, 1
      %p184 = por %p182, %p183
      %p185 = scmp.ne.s32.totalorder %s176, %s177
      %p186 = scmp.eq.s32.totalorder %s25, 0
      %p187 = por %p185, %p186
      %p188 = scmp.ne.s32.totalorder %s176, %s177
      %p189 = scmp.eq.s32.totalorder %s26, 1
      %p190 = por %p188, %p189
      %p192 = scmp.ne.s32.totalorder %s177, %s191
      %p193 = scmp.eq.s32.totalorder %s26, 0
      %p194 = por %p192, %p193
      %s196 = sadd.s32 %s195, 1
      %p199 = scmp.eq.s32.totalorder %s20, 1
      %p200 = scmp.ne.s32.totalorder %s195, %s197
      %p201 = scmp.eq.s32.totalorder %s20, 0
      %p202 = por %p200, %p201
      %p203 = scmp.ne.s32.totalorder %s195, %s197
      %p204 = scmp.eq.s32.totalorder %s25, 1
      %p205 = por %p203, %p204
      %p206 = scmp.ne.s32.totalorder %s197, %s198
      %p207 = scmp.eq.s32.totalorder %s25, 0
      %p208 = por %p206, %p207
      %p209 = scmp.ne.s32.totalorder %s197, %s198
      %p210 = scmp.eq.s32.totalorder %s26, 1
      %p211 = por %p209, %p210
      %p213 = scmp.ne.s32.totalorder %s198, %s212
      %p214 = scmp.eq.s32.totalorder %s26, 0
      %p215 = por %p213, %p214
      %s216 = ssub.s32 %s20, %s27
      %p217 = scmp.eq.s32.totalorder %s216, 0
      %s219 = sadd.s32 %s218, 1
      %s220 = scalar_select %p217, %s218, %s219
      %p223 = pneg %p217
      %p224 = scmp.eq.s32.totalorder %s20, 1
      %p225 = por %p223, %p224
      %p226 = scmp.ne.s32.totalorder %s218, %s221
      %p227 = scmp.eq.s32.totalorder %s20, 0
      %p228 = por %p226, %p227
      %p229 = scmp.ne.s32.totalorder %s218, %s221
      %p230 = scmp.eq.s32.totalorder %s25, 1
      %p231 = por %p229, %p230
      %p232 = scmp.ne.s32.totalorder %s221, %s222
      %p233 = scmp.eq.s32.totalorder %s25, 0
      %p234 = por %p232, %p233
      %p235 = scmp.ne.s32.totalorder %s221, %s222
      %p236 = scmp.eq.s32.totalorder %s26, 1
      %p237 = por %p235, %p236
      %p239 = scmp.ne.s32.totalorder %s222, %s238
      %p240 = scmp.eq.s32.totalorder %s26, 0
      %p241 = por %p239, %p240
      %s242 = ssub.s32 %s20, %s27
      %p243 = scmp.eq.s32.totalorder %s242, 0
      %s245 = sadd.s32 %s244, 1
      %s246 = scalar_select %p243, %s244, %s245
      %p249 = pneg %p243
      %p250 = scmp.eq.s32.totalorder %s20, 1
      %p251 = por %p249, %p250
      %p252 = scmp.ne.s32.totalorder %s244, %s247
      %p253 = scmp.eq.s32.totalorder %s20, 0
      %p254 = por %p252, %p253
      %p255 = scmp.ne.s32.totalorder %s244, %s247
      %p256 = scmp.eq.s32.totalorder %s25, 1
      %p257 = por %p255, %p256
      %p258 = scmp.ne.s32.totalorder %s247, %s248
      %p259 = scmp.eq.s32.totalorder %s25, 0
      %p260 = por %p258, %p259
      %p261 = scmp.ne.s32.totalorder %s247, %s248
      %p262 = scmp.eq.s32.totalorder %s26, 1
      %p263 = por %p261, %p262
      %p265 = scmp.ne.s32.totalorder %s248, %s264
      %p266 = scmp.eq.s32.totalorder %s26, 0
      %p267 = por %p265, %p266
      %s268 = ssub.s32 %s20, %s27
      %p269 = scmp.eq.s32.totalorder %s268, 0
      %s271 = sadd.s32 %s270, 1
      %s272 = scalar_select %p269, %s270, %s271
      %p275 = pneg %p269
      %p276 = scmp.eq.s32.totalorder %s20, 1
      %p277 = por %p275, %p276
      %p278 = scmp.ne.s32.totalorder %s270, %s273
      %p279 = scmp.eq.s32.totalorder %s20, 0
      %p280 = por %p278, %p279
      %p281 = scmp.ne.s32.totalorder %s270, %s273
      %p282 = scmp.eq.s32.totalorder %s25, 1
      %p283 = por %p281, %p282
      %p284 = scmp.ne.s32.totalorder %s273, %s274
      %p285 = scmp.eq.s32.totalorder %s25, 0
      %p286 = por %p284, %p285
      %p287 = scmp.ne.s32.totalorder %s273, %s274
      %p288 = scmp.eq.s32.totalorder %s26, 1
      %p289 = por %p287, %p288
      %p291 = scmp.ne.s32.totalorder %s274, %s290
      %p292 = scmp.eq.s32.totalorder %s26, 0
      %p293 = por %p291, %p292
      %s294 = ssub.s32 %s20, %s27
      %p295 = scmp.eq.s32.totalorder %s294, 0
      %s297 = sadd.s32 %s296, 1
      %s298 = scalar_select %p295, %s296, %s297
      %p301 = pneg %p295
      %p302 = scmp.eq.s32.totalorder %s20, 1
      %p303 = por %p301, %p302
      %p304 = scmp.ne.s32.totalorder %s296, %s299
      %p305 = scmp.eq.s32.totalorder %s20, 0
      %p306 = por %p304, %p305
      %p307 = scmp.ne.s32.totalorder %s296, %s299
      %p308 = scmp.eq.s32.totalorder %s25, 1
      %p309 = por %p307, %p308
      %p310 = scmp.ne.s32.totalorder %s299, %s300
      %p311 = scmp.eq.s32.totalorder %s25, 0
      %p312 = por %p310, %p311
      %p313 = scmp.ne.s32.totalorder %s299, %s300
      %p314 = scmp.eq.s32.totalorder %s26, 1
      %p315 = por %p313, %p314
      %p317 = scmp.ne.s32.totalorder %s300, %s316
      %p318 = scmp.eq.s32.totalorder %s26, 0
      %p319 = por %p317, %p318
      %s320 = ssub.s32 %s20, %s27
      %p321 = scmp.eq.s32.totalorder %s320, 0
      %s323 = sadd.s32 %s322, 1
      %s324 = scalar_select %p321, %s322, %s323
      %p327 = pneg %p321
      %p328 = scmp.eq.s32.totalorder %s20, 1
      %p329 = por %p327, %p328
      %p330 = scmp.ne.s32.totalorder %s322, %s325
      %p331 = scmp.eq.s32.totalorder %s20, 0
      %p332 = por %p330, %p331
      %p333 = scmp.ne.s32.totalorder %s322, %s325
      %p334 = scmp.eq.s32.totalorder %s25, 1
      %p335 = por %p333, %p334
      %p336 = scmp.ne.s32.totalorder %s325, %s326
      %p337 = scmp.eq.s32.totalorder %s25, 0
      %p338 = por %p336, %p337
      %p339 = scmp.ne.s32.totalorder %s325, %s326
      %p340 = scmp.eq.s32.totalorder %s26, 1
      %p341 = por %p339, %p340
      %p343 = scmp.ne.s32.totalorder %s326, %s342
      %p344 = scmp.eq.s32.totalorder %s26, 0
      %p345 = por %p343, %p344
      %p346 = scmp.le.s32.totalorder 1, %s20
      %p347 = scmp.lt.s32.totalorder %s20, 3
      %p348 = pnand %p346, %p347
      %p349 = pneg %p348
      // Predicated region
      $region9: #{basic_block_mc_forward.1} parent=5 // pred_check
        _
      $region10: #{basic_block_mc_forward.1} parent=5 // pred_check_branch
        %351 = sbr.rel (%p348) target = $region12
      $region11: #{basic_block_mc_forward.1} parent=5 // pred_region
        %s352 = ssub.s32 %s20, 1
        // Predicated region
        $region13: #{basic_block_mc_forward.1} parent=11 // pred_check
          %p353 = pneg %p41
        $region14: #{basic_block_mc_forward.1} parent=11 // pred_check_branch
          %355 = sbr.rel (%p353) target = $region16
        $region15: #{basic_block_mc_forward.1} parent=11 // pred_region
          %357 = vsyncadd [#allocation4], 0
          %s359 = sshll.u32 %s0, 4
          %s360 = int_to_ptr.vmem [resolvable:$true] %s359
          %362 = dma.vmem_to_smem %s360, 16, [#allocation3], [#allocation4]
        $region16: #{basic_block_mc_forward.1} parent=11 // pred_fallthru
          _
        // Predicated region
        $region17: #{basic_block_mc_forward.1} parent=11 // pred_check
          %p363 = pneg %p62
        $region18: #{basic_block_mc_forward.1} parent=11 // pred_check_branch
          %365 = sbr.rel (%p363) target = $region20
        $region19: #{basic_block_mc_forward.1} parent=11 // pred_region
          _
        $region20: #{basic_block_mc_forward.1} parent=11 // pred_fallthru
          _
        // Predicated region
        $region21: #{basic_block_mc_forward.1} parent=11 // pred_check
          %p366 = pneg %p187
        $region22: #{basic_block_mc_forward.1} parent=11 // pred_check_branch
          %368 = sbr.rel (%p366) target = $region24
        $region23: #{basic_block_mc_forward.1} parent=11 // pred_region
          _
        $region24: #{basic_block_mc_forward.1} parent=11 // pred_fallthru
          _
        // Predicated region
        $region25: #{basic_block_mc_forward.1} parent=11 // pred_check
          %p369 = pneg %p208
        $region26: #{basic_block_mc_forward.1} parent=11 // pred_check_branch
          %371 = sbr.rel (%p369) target = $region28
        $region27: #{basic_block_mc_forward.1} parent=11 // pred_region
          _
        $region28: #{basic_block_mc_forward.1} parent=11 // pred_fallthru
          _
      $region12: #{basic_block_mc_forward.1} parent=5 // pred_fallthru
        _
      %p372 = scmp.lt.s32.totalorder %s20, 2
      // Predicated region
      $region29: #{basic_block_mc_forward.1} parent=5 // pred_check
        %p373 = pneg %p372
      $region30: #{basic_block_mc_forward.1} parent=5 // pred_check_branch
        %375 = sbr.rel (%p373) target = $region32
      $region31: #{basic_block_mc_forward.1} parent=5 // pred_region
        // Predicated region
        $region33: #{basic_block_mc_forward.1} parent=31 // pred_check
          %p376 = pneg %p82
        $region34: #{basic_block_mc_forward.1} parent=31 // pred_check_branch
          %378 = sbr.rel (%p376) target = $region36
        $region35: #{basic_block_mc_forward.1} parent=31 // pred_region
          %s379 = sand.u32 %s72, 1
          %s380 = sand.u32 %s72, 1
          %s381 = smul.addr %s380, 16
          %s382 = scalar_lea.vmem [#allocation5], %s381
          %s383 = smul.addr %s20, 2
          %s384 = smul.addr %s383, 4
          %s385 = scalar_lea.vmem %s2, %s384
          // Predicated region
          $region37: #{basic_block_mc_forward.1} parent=35 // pred_check
            _
          $region38: #{basic_block_mc_forward.1} parent=35 // pred_check_branch
            %387 = sbr.rel (0) target = $region40
          $region39: #{basic_block_mc_forward.1} parent=35 // pred_region
            // Predicated region
            $region41: #{basic_block_mc_forward.1} parent=39 // pred_check
              _
            $region42: #{basic_block_mc_forward.1} parent=39 // pred_check_branch
              %389 = sbr.rel (0) target = $region44
            $region43: #{basic_block_mc_forward.1} parent=39 // pred_region
              // Predicated region
              $region56: #{basic_block_mc_forward.1} parent=43 // pred_check
                _
              $region57: #{basic_block_mc_forward.1} parent=43 // pred_check_branch
                %407 = sbr.rel (0) target = $region59
              $region58: #{basic_block_mc_forward.1} parent=43 // pred_region
                loop: start=0, step=1, limit=1
                $region60: #{basic_block_mc_forward.1} parent=58 // loop_pre_header
                  _
                $region61: #{basic_block_mc_forward.1} parent=58 // loop_header
                  %s409 = sphi 0, %s413
                  %p410 = scmp.ge.s32.totalorder %s409, 1
                  %s414 = sphi %s385, %s385
                  %s415 = sphi %s382, %s382
                $region62: #{basic_block_mc_forward.1} parent=58 // loop_header_branch
                  %412 = sbr.rel (%p410) target = $region66
                $region63: #{basic_block_mc_forward.1} parent=58 // loop_body
                  %v416 = vld [vmem:[%s414] sm:$0xff]
                  %417 = vst [vmem:[%s415] sm:$0xff] %v416
                  %v418 = vld [vmem:[%s414 + $0x10] sm:$0xff]
                  %419 = vst [vmem:[%s415 + $0x8] sm:$0xff] %v418
                $region64: #{basic_block_mc_forward.1} parent=58 // loop_footer
                  %s413 = sadd.s32 1, %s409
                $region65: #{basic_block_mc_forward.1} parent=58 // loop_footer_branch
                  %408 = sbr.rel target = $region61
                $region66: #{basic_block_mc_forward.1} parent=58 // loop_exit
                  _
              $region59: #{basic_block_mc_forward.1} parent=43 // pred_fallthru
                _
              // Predicated region
              $region67: #{basic_block_mc_forward.1} parent=43 // pred_check
                _
              $region68: #{basic_block_mc_forward.1} parent=43 // pred_check_branch
                %421 = sbr.rel target = $region70
              $region69: #{basic_block_mc_forward.1} parent=43 // pred_region
                _
              $region70: #{basic_block_mc_forward.1} parent=43 // pred_fallthru
                _
            $region44: #{basic_block_mc_forward.1} parent=39 // pred_fallthru
              _
            // Predicated region
            $region45: #{basic_block_mc_forward.1} parent=39 // pred_check
              _
            $region46: #{basic_block_mc_forward.1} parent=39 // pred_check_branch
              %391 = sbr.rel target = $region48
            $region47: #{basic_block_mc_forward.1} parent=39 // pred_region
              %s393 = ssub.s32 256, 1
              loop: start=0, step=1, limit=1
              $region49: #{basic_block_mc_forward.1} parent=47 // loop_pre_header
                _
              $region50: #{basic_block_mc_forward.1} parent=47 // loop_header
                %s395 = sphi 0, %s399
                %p396 = scmp.ge.s32.totalorder %s395, 1
                %s400 = sphi %s385, %s385
                %s401 = sphi %s382, %s382
              $region51: #{basic_block_mc_forward.1} parent=47 // loop_header_branch
                %398 = sbr.rel (%p396) target = $region55
              $region52: #{basic_block_mc_forward.1} parent=47 // loop_body
                %v402 = vld [vmem:[%s400] sm:%s393]
                %403 = vst [vmem:[%s401] sm:%s393] %v402
                %v404 = vld [vmem:[%s400 + $0x10] sm:%s393]
                %405 = vst [vmem:[%s401 + $0x8] sm:%s393] %v404
              $region53: #{basic_block_mc_forward.1} parent=47 // loop_footer
                %s399 = sadd.s32 1, %s395
              $region54: #{basic_block_mc_forward.1} parent=47 // loop_footer_branch
                %394 = sbr.rel target = $region50
              $region55: #{basic_block_mc_forward.1} parent=47 // loop_exit
                _
            $region48: #{basic_block_mc_forward.1} parent=39 // pred_fallthru
              _
          $region40: #{basic_block_mc_forward.1} parent=35 // pred_fallthru
            _
          %422 = vnop
        $region36: #{basic_block_mc_forward.1} parent=31 // pred_fallthru
          _
        // Predicated region
        $region71: #{basic_block_mc_forward.1} parent=31 // pred_check
          %p423 = pneg %p108
        $region72: #{basic_block_mc_forward.1} parent=31 // pred_check_branch
          %425 = sbr.rel (%p423) target = $region74
        $region73: #{basic_block_mc_forward.1} parent=31 // pred_region
          %p426 = scmp.lt.s32.totalorder %s20, 1
          %s427 = scalar_select %p426, %s20, 1
          %s428 = smul.addr %s427, 2
          %s429 = smul.addr %s428, 4
          %s430 = scalar_lea.vmem %s3, %s429
        $region74: #{basic_block_mc_forward.1} parent=31 // pred_fallthru
          _
        // Predicated region
        $region75: #{basic_block_mc_forward.1} parent=31 // pred_check
          %p431 = pneg %p134
        $region76: #{basic_block_mc_forward.1} parent=31 // pred_check_branch
          %433 = sbr.rel (%p431) target = $region78
        $region77: #{basic_block_mc_forward.1} parent=31 // pred_region
          %p434 = scmp.lt.s32.totalorder %s20, 1
          %s435 = scalar_select %p434, %s20, 1
          %s436 = smul.addr %s435, 2
          %s437 = smul.addr %s436, 4
          %s438 = scalar_lea.vmem %s4, %s437
        $region78: #{basic_block_mc_forward.1} parent=31 // pred_fallthru
          _
        // Predicated region
        $region79: #{basic_block_mc_forward.1} parent=31 // pred_check
          %p439 = pneg %p160
        $region80: #{basic_block_mc_forward.1} parent=31 // pred_check_branch
          %441 = sbr.rel (%p439) target = $region82
        $region81: #{basic_block_mc_forward.1} parent=31 // pred_region
          %p442 = scmp.lt.s32.totalorder %s20, 1
          %s443 = scalar_select %p442, %s20, 1
          %s444 = smul.addr %s443, 2
          %s445 = smul.addr %s444, 4
          %s446 = scalar_lea.vmem %s5, %s445
        $region82: #{basic_block_mc_forward.1} parent=31 // pred_fallthru
          _
      $region32: #{basic_block_mc_forward.1} parent=5 // pred_fallthru
        _
      %p447 = scmp.le.s32.totalorder 1, %s20
      %p448 = scmp.lt.s32.totalorder %s20, 3
      %p449 = pnand %p447, %p448
      %p450 = pneg %p449
      // Predicated region
      $region83: #{basic_block_mc_forward.1} parent=5 // pred_check
        _
      $region84: #{basic_block_mc_forward.1} parent=5 // pred_check_branch
        %452 = sbr.rel (%p449) target = $region86
      $region85: #{basic_block_mc_forward.1} parent=5 // pred_region
        %s453 = ssub.s32 %s20, 1
        // Predicated region
        $region87: #{basic_block_mc_forward.1} parent=85 // pred_check
          %p454 = pneg %p41
        $region88: #{basic_block_mc_forward.1} parent=85 // pred_check_branch
          %456 = sbr.rel (%p454) target = $region90
        $region89: #{basic_block_mc_forward.1} parent=85 // pred_region
          %458 = dma.done [#allocation4], 16
        $region90: #{basic_block_mc_forward.1} parent=85 // pred_fallthru
          _
        %s459 = sand.u32 %s75, 1
        %s460 = sand.u32 %s75, 1
        %s461 = smul.addr %s460, 16
        %s462 = scalar_lea.vmem [#allocation5], %s461
        // Predicated region
        $region91: #{basic_block_mc_forward.1} parent=85 // pred_check
          %p463 = pneg %p88
        $region92: #{basic_block_mc_forward.1} parent=85 // pred_check_branch
          %465 = sbr.rel (%p463) target = $region94
        $region93: #{basic_block_mc_forward.1} parent=85 // pred_region
          _
        $region94: #{basic_block_mc_forward.1} parent=85 // pred_fallthru
          _
        %466 = sfence
        %p467 = pneg %p41
        %p468 = pneg %p38
        %p469 = pneg %p62
        %p470 = pneg %p59
        %s471 = sand.u32 %s75, 1
        %s472 = sand.u32 %s75, 1
        %s473 = smul.addr %s472, 16
        %s474 = scalar_lea.vmem [#allocation5], %s473
        %p475 = pneg %p88
        %p476 = pneg %p85
        %p477 = scmp.lt.s32.totalorder %s25, 1
        %s478 = scalar_select %p477, %s25, 1
        %s479 = smul.addr %s478, 2
        %s480 = smul.addr %s479, 4
        %s481 = scalar_lea.vmem %s3, %s480
        %p482 = pneg %p114
        %p483 = pneg %p111
        %p484 = scmp.lt.s32.totalorder %s25, 1
        %s485 = scalar_select %p484, %s25, 1
        %s486 = smul.addr %s485, 2
        %s487 = smul.addr %s486, 4
        %s488 = scalar_lea.vmem %s4, %s487
        %p489 = pneg %p140
        %p490 = pneg %p137
        %p491 = scmp.lt.s32.totalorder %s25, 1
        %s492 = scalar_select %p491, %s25, 1
        %s493 = smul.addr %s492, 2
        %s494 = smul.addr %s493, 4
        %s495 = scalar_lea.vmem %s5, %s494
        %p496 = pneg %p166
        %p497 = pneg %p163
        %p498 = pneg %p187
        %p499 = pneg %p184
        %p500 = pneg %p208
        %p501 = pneg %p205
        %p502 = pneg %p234
        %p503 = pneg %p231
        %s504 = sand.u32 %s221, 1
        %s505 = sand.u32 %s221, 1
        %s506 = smul.addr %s505, 16
        %s507 = scalar_lea.vmem [#allocation6], %s506
        %p508 = pneg %p260
        %p509 = pneg %p257
        %p510 = scmp.lt.s32.totalorder %s25, 1
        %s511 = scalar_select %p510, %s25, 1
        %s512 = smul.addr %s511, 2
        %s513 = smul.addr %s512, 4
        %s514 = scalar_lea.vmem %s9, %s513
        %p515 = pneg %p286
        %p516 = pneg %p283
        %p517 = scmp.lt.s32.totalorder %s25, 1
        %s518 = scalar_select %p517, %s25, 1
        %s519 = smul.addr %s518, 2
        %s520 = smul.addr %s519, 4
        %s521 = scalar_lea.vmem %s10, %s520
        %p522 = pneg %p312
        %p523 = pneg %p309
        %p524 = scmp.lt.s32.totalorder %s25, 1
        %s525 = scalar_select %p524, %s25, 1
        %s526 = scalar_lea.vmem %s11, %s525
        %p527 = pneg %p338
        %p528 = pneg %p335
        %p529 = scmp.lt.s32.totalorder %s25, 1
        %s530 = scalar_select %p529, %s25, 1
        %s531 = scalar_lea.vmem %s12, %s530
        %p532 = scmp.lt.s32.totalorder %s25, 1
        %s533 = scalar_select %p532, %s25, 1
        %s534 = smul.addr %s533, 2
        %s535 = smul.addr %s534, 4
        %s536 = scalar_lea.vmem %s3, %s535
        %p537 = scmp.lt.s32.totalorder %s25, 1
        %s538 = scalar_select %p537, %s25, 1
        %s539 = smul.addr %s538, 2
        %s540 = smul.addr %s539, 4
        %s541 = scalar_lea.vmem %s4, %s540
        %p542 = scmp.lt.s32.totalorder %s25, 1
        %s543 = scalar_select %p542, %s25, 1
        %s544 = smul.addr %s543, 2
        %s545 = smul.addr %s544, 4
        %s546 = scalar_lea.vmem %s5, %s545
        %p547 = scmp.lt.s32.totalorder %s25, 1
        %s548 = scalar_select %p547, %s25, 1
        %s549 = smul.addr %s548, 2
        %s550 = smul.addr %s549, 4
        %s551 = scalar_lea.vmem %s9, %s550
        %p552 = scmp.lt.s32.totalorder %s25, 1
        %s553 = scalar_select %p552, %s25, 1
        %s554 = smul.addr %s553, 2
        %s555 = smul.addr %s554, 4
        %s556 = scalar_lea.vmem %s10, %s555
        %p557 = scmp.lt.s32.totalorder %s25, 1
        %s558 = scalar_select %p557, %s25, 1
        %s559 = scalar_lea.vmem %s11, %s558
        %p560 = scmp.lt.s32.totalorder %s25, 1
        %s561 = scalar_select %p560, %s25, 1
        %s562 = scalar_lea.vmem %s12, %s561
        %s563 = sld [smem:[#allocation3]]
        %s564 = sld [smem:[#allocation3 + $0x1]]
        %s565 = sld [smem:[#allocation3 + $0x2]]
        %s566 = sld [smem:[#allocation3 + $0x3]]
        %567 = vst [vmem:[#allocation2] sm:$0xf] 0.0
        %568 = vst [vmem:[#allocation2 + $0xc] sm:$0xf] 0.0
        %v569 = vld [vmem:[%s1] ss:$4 sm:$0x3]
        %s570 = scalar_lea.vmem %s1, 1
        %v571 = vld [vmem:[%s570] ss:$4 sm:$0x3]
        %s572 = scalar_lea.vmem %s1, 2
        %v573 = vld [vmem:[%s572] ss:$4 sm:$0x3]
        %s574 = scalar_lea.vmem %s1, 3
        %v575 = vld [vmem:[%s574] ss:$4 sm:$0x3]
        %v576 = vld [vmem:[%s462] sm:$0xff]
        %s577 = scalar_lea.vmem %s462, 8 [#allocation5]
        %v578 = vld [vmem:[%s577] sm:$0xff]
        %580 = vst [vmem:[#allocation1] ss:$2 sm:$0xff] %v576
        %v581 = vld.sshfl [vmem:[#allocation1] sm:$0xff pattern:$0x75316420]
        %v582 = vld.sshfl [vmem:[#allocation1 + $0x8] sm:$0xff pattern:$0x75316420]
        %vm585 = vcmask 1043456
        %v586 = vsel %vm585, %v581, 0.0
        %v587 = vsel %vm585, %v582, 0.0
        %v588 = vadd.f32 %v586, %v587
        %589 = vadd.xlane.f32.xlu0 %v588
        %v590 = vpop.xlane.xlu0 %589
        %v591 = vrot.slane %v590, 4
        %v592 = vadd.f32 %v590, %v591
        %v593 = vrot.slane %v592, 2
        %v594 = vadd.f32 %v592, %v593
        %v595 = vrot.slane %v594, 1
        %v596 = vadd.f32 %v594, %v595
        %s597 = vtos %v596
        %s598 = sadd.f32 %s597, 0.0
        %600 = vst [vmem:[#allocation1] ss:$2 sm:$0xff] %v578
        %v601 = vld.sshfl [vmem:[#allocation1] sm:$0xff pattern:$0x75316420]
        %v602 = vld.sshfl [vmem:[#allocation1 + $0x8] sm:$0xff pattern:$0x75316420]
        %v605 = vsel %vm585, %v601, 0.0
        %v606 = vsel %vm585, %v602, 0.0
        %v607 = vadd.f32 %v605, %v606
        %608 = vadd.xlane.f32.xlu0 %v607
        %v609 = vpop.xlane.xlu0 %608
        %v610 = vrot.slane %v609, 4
        %v611 = vadd.f32 %v609, %v610
        %v612 = vrot.slane %v611, 2
        %v613 = vadd.f32 %v611, %v612
        %v614 = vrot.slane %v613, 1
        %v615 = vadd.f32 %v613, %v614
        %s616 = vtos %v615
        %s617 = sadd.f32 %s598, %s616
        %v618 = vmul.f32 %v578, 2.0
        %v619 = vadd.f32 %v576, %v618
        %620 = vst [vmem:[#allocation2 + $0x4] sm:$0xff] %v619
        %v621 = vstv %s617
        %622 = vst [vmem:[%s559] sm:$0x1] %v621
        %v623 = vld [vmem:[#allocation2] sm:$0xff]
        %v624 = vld [vmem:[#allocation2 + $0x8] sm:$0xf]
        %v626 = vperm.slane %v569, 0
        %v627 = vperm.slane %v569, 1
        %v628 = vrot.slane %v627, 4
        %v629 = vsel %vm585, %v626, %v628
        %630 = vrot.lane.b32.xlu0 %v629, 111
        %v631 = vpop.permute.xlu0 %630
        %v632 = vrot.slane %v631, 4
        %vm633 = vcmask 908288
        %v634 = vsel %vm633, %v632, %v631
        %v637 = vmul.f32 %v623, %v634
        %v638 = vmul.f32 %v624, %v632
        %v640 = vperm.slane %v573, 0
        %v641 = vperm.slane %v573, 1
        %v642 = vrot.slane %v641, 4
        %v643 = vsel %vm585, %v640, %v642
        %644 = vrot.lane.b32.xlu0 %v643, 111
        %v645 = vpop.permute.xlu0 %644
        %v646 = vrot.slane %v645, 4
        %v647 = vsel %vm633, %v646, %v645
        %v650 = vmul.f32 %v637, %v647
        %v651 = vmul.f32 %v638, %v646
        %v652 = vld [vmem:[%s6] sm:$0xf]
        %653 = vrot.lane.b32.xlu0 %v629, 112
        %v654 = vpop.permute.xlu0 %653
        %v655 = vrot.slane %v654, 4
        %vm656 = vcmask 916480
        %v657 = vsel %vm656, %v655, %v654
        %v660 = vmul.f32 %v623, %v657
        %v661 = vmul.f32 %v624, %v655
        %s662 = scalar_lea.vmem %s6, 4
        %v663 = vld [vmem:[%s662] sm:$0xf]
        %666 = vst [vmem:[#allocation1] ss:$2 sm:$0xff] %v660
        %s667 = scalar_lea.vmem [#allocation1], 16
        %668 = vst [vmem:[%s667] ss:$2 sm:$0xff] %v661
        %v669 = vld.sshfl [vmem:[#allocation1] sm:$0xff pattern:$0x75316420]
        %v670 = vld.sshfl [vmem:[#allocation1 + $0x8] sm:$0xff pattern:$0x75316420]
        %v671 = vld.sshfl [vmem:[#allocation1 + $0x10] sm:$0xff pattern:$0x75316420]
        %672 = vrot.lane.b32.xlu0 %v669, 16
        %v673 = vpop.permute.xlu0 %672
        %674 = vrot.lane.b32.xlu0 %v670, 16
        %v675 = vpop.permute.xlu0 %674
        %676 = vrot.lane.b32.xlu0 %v671, 16
        %v677 = vpop.permute.xlu0 %676
        %vm678 = vcmask 130048
        %v679 = vsel %vm678, %v673, %v675
        %v680 = vsel %vm678, %v675, %v677
        %vm681 = vcmask 31744
        %v683 = vsel %vm681, %v663, 0
        %v685 = vsel %vm585, %v679, 0
        %v687 = vsel %vm585, %v680, 0
        %689 = vmatpush.msra.mxu0 0.0
        %690 = vmatpush.msra.mxu0 0.0
        %691 = vmatpush.msra.mxu0 0.0
        %692 = vmatpush.msra.mxu0 0.0
        %693 = vmatpush.msra.mxu0 0.0
        %694 = vmatpush.msra.mxu0 0.0
        %695 = vmatpush.msra.mxu0 0.0
        %696 = vmatpush.msra.mxu0 0.0
        %697 = vmatpush.msra.mxu0 0.0
        %698 = vmatpush.msra.mxu0 0.0
        %699 = vmatpush.msra.mxu0 0.0
        %700 = vmatpush.msra.mxu0 0.0
        %701 = vmatpush.msra.mxu0 0.0
        %702 = vmatpush.msra.mxu0 0.0
        %703 = vmatpush.msra.mxu0 0.0
        %704 = vmatpush.msra.mxu0 %v685
        %705 = vmatmul.f32.gmra.mxu0 %v683
        %v706 = vpop.f32.mrf.mxu0
        %v707 = vadd.f32 0.0, %v706
        %708 = vdwg.mxu0
        %709 = vmatpush.msra.mxu0 0.0
        %710 = vmatpush.msra.mxu0 0.0
        %711 = vmatpush.msra.mxu0 0.0
        %712 = vmatpush.msra.mxu0 0.0
        %713 = vmatpush.msra.mxu0 0.0
        %714 = vmatpush.msra.mxu0 0.0
        %715 = vmatpush.msra.mxu0 0.0
        %716 = vmatpush.msra.mxu0 0.0
        %717 = vmatpush.msra.mxu0 0.0
        %718 = vmatpush.msra.mxu0 0.0
        %719 = vmatpush.msra.mxu0 0.0
        %720 = vmatpush.msra.mxu0 0.0
        %721 = vmatpush.msra.mxu0 0.0
        %722 = vmatpush.msra.mxu0 0.0
        %723 = vmatpush.msra.mxu0 0.0
        %724 = vmatpush.msra.mxu0 %v687
        %725 = vmatmul.f32.gmra.mxu0 %v683
        %v726 = vpop.f32.mrf.mxu0
        %v727 = vadd.f32 0.0, %v726
        %728 = vdwg.mxu0
        %v729 = vld [vmem:[#allocation2] sm:$0xff]
        %v730 = vld [vmem:[#allocation2 + $0x8] sm:$0xf]
        %731 = vrot.lane.b32.xlu0 %v629, 113
        %v732 = vpop.permute.xlu0 %731
        %v733 = vrot.slane %v732, 4
        %vm734 = vcmask 924672
        %v735 = vsel %vm734, %v733, %v732
        %v738 = vmul.f32 %v729, %v735
        %v739 = vmul.f32 %v730, %v733
        %v741 = vperm.slane %v575, 0
        %v742 = vperm.slane %v575, 1
        %v743 = vrot.slane %v742, 4
        %v744 = vsel %vm585, %v741, %v743
        %745 = vrot.lane.b32.xlu0 %v744, 113
        %v746 = vpop.permute.xlu0 %745
        %v747 = vrot.slane %v746, 4
        %v748 = vsel %vm734, %v747, %v746
        %v751 = vmul.f32 %v738, %v748
        %v752 = vmul.f32 %v739, %v747
        %s753 = scalar_lea.vmem %s6, 8
        %v754 = vld [vmem:[%s753] sm:$0xf]
        %755 = vrot.lane.b32.xlu0 %v643, 127
        %v756 = vpop.permute.xlu0 %755
        %v757 = vrot.slane %v756, 4
        %vm758 = vcmask 1039360
        %v759 = vsel %vm758, %v757, %v756
        %v762 = vmul.f32 %v729, %v759
        %v763 = vmul.f32 %v730, %v757
        %s764 = scalar_lea.vmem %s6, 12
        %v765 = vld [vmem:[%s764] sm:$0xf]
        %768 = vst [vmem:[#allocation1] ss:$2 sm:$0xff] %v762
        %s769 = scalar_lea.vmem [#allocation1], 16
        %770 = vst [vmem:[%s769] ss:$2 sm:$0xff] %v763
        %v771 = vld.sshfl [vmem:[#allocation1] sm:$0xff pattern:$0x75316420]
        %v772 = vld.sshfl [vmem:[#allocation1 + $0x8] sm:$0xff pattern:$0x75316420]
        %v773 = vld.sshfl [vmem:[#allocation1 + $0x10] sm:$0xff pattern:$0x75316420]
        %774 = vrot.lane.b32.xlu0 %v771, 1
        %v775 = vpop.permute.xlu0 %774
        %776 = vrot.lane.b32.xlu0 %v772, 1
        %v777 = vpop.permute.xlu0 %776
        %778 = vrot.lane.b32.xlu0 %v773, 1
        %v779 = vpop.permute.xlu0 %778
        %vm780 = vcmask 7168
        %v781 = vsel %vm780, %v775, %v777
        %v782 = vsel %vm780, %v777, %v779
        %v784 = vsel %vm681, %v765, 0
        %v786 = vsel %vm585, %v781, 0
        %v788 = vsel %vm585, %v782, 0
        %790 = vmatpush.msra.mxu0 0.0
        %791 = vmatpush.msra.mxu0 0.0
        %792 = vmatpush.msra.mxu0 0.0
        %793 = vmatpush.msra.mxu0 0.0
        %794 = vmatpush.msra.mxu0 0.0
        %795 = vmatpush.msra.mxu0 0.0
        %796 = vmatpush.msra.mxu0 0.0
        %797 = vmatpush.msra.mxu0 0.0
        %798 = vmatpush.msra.mxu0 0.0
        %799 = vmatpush.msra.mxu0 0.0
        %800 = vmatpush.msra.mxu0 0.0
        %801 = vmatpush.msra.mxu0 0.0
        %802 = vmatpush.msra.mxu0 0.0
        %803 = vmatpush.msra.mxu0 0.0
        %804 = vmatpush.msra.mxu0 0.0
        %805 = vmatpush.msra.mxu0 %v786
        %806 = vmatmul.f32.gmra.mxu0 %v784
        %v807 = vpop.f32.mrf.mxu0
        %v808 = vadd.f32 0.0, %v807
        %809 = vdwg.mxu0
        %810 = vmatpush.msra.mxu0 0.0
        %811 = vmatpush.msra.mxu0 0.0
        %812 = vmatpush.msra.mxu0 0.0
        %813 = vmatpush.msra.mxu0 0.0
        %814 = vmatpush.msra.mxu0 0.0
        %815 = vmatpush.msra.mxu0 0.0
        %816 = vmatpush.msra.mxu0 0.0
        %817 = vmatpush.msra.mxu0 0.0
        %818 = vmatpush.msra.mxu0 0.0
        %819 = vmatpush.msra.mxu0 0.0
        %820 = vmatpush.msra.mxu0 0.0
        %821 = vmatpush.msra.mxu0 0.0
        %822 = vmatpush.msra.mxu0 0.0
        %823 = vmatpush.msra.mxu0 0.0
        %824 = vmatpush.msra.mxu0 0.0
        %825 = vmatpush.msra.mxu0 %v788
        %826 = vmatmul.f32.gmra.mxu0 %v784
        %v827 = vpop.f32.mrf.mxu0
        %v828 = vadd.f32 0.0, %v827
        %829 = vdwg.mxu0
        %v830 = vld [vmem:[#allocation2 + $0x4] sm:$0xff]
        %s831 = scalar_lea.vmem %s6, 16
        %v832 = vld [vmem:[%s831] sm:$0xf]
        %v833 = vld [vmem:[#allocation2 + $0x4] sm:$0xff]
        %v834 = vld [vmem:[#allocation2 + $0xc] sm:$0xf]
        %835 = vrot.lane.b32.xlu0 %v744, 1
        %v836 = vpop.permute.xlu0 %835
        %v837 = vrot.slane %v836, 4
        %v838 = vsel %vm780, %v837, %v836
        %v841 = vmul.f32 %v833, %v838
        %v842 = vmul.f32 %v834, %v837
        %s843 = scalar_lea.vmem %s6, 20
        %v844 = vld [vmem:[%s843] sm:$0xf]
        %847 = vst [vmem:[#allocation1] ss:$2 sm:$0xff] %v841
        %s848 = scalar_lea.vmem [#allocation1], 16
        %849 = vst [vmem:[%s848] ss:$2 sm:$0xff] %v842
        %v850 = vld.sshfl [vmem:[#allocation1] sm:$0xff pattern:$0x75316420]
        %v851 = vld.sshfl [vmem:[#allocation1 + $0x8] sm:$0xff pattern:$0x75316420]
        %v852 = vld.sshfl [vmem:[#allocation1 + $0x10] sm:$0xff pattern:$0x75316420]
        %853 = vrot.lane.b32.xlu0 %v850, 127
        %v854 = vpop.permute.xlu0 %853
        %855 = vrot.lane.b32.xlu0 %v851, 127
        %v856 = vpop.permute.xlu0 %855
        %857 = vrot.lane.b32.xlu0 %v852, 127
        %v858 = vpop.permute.xlu0 %857
        %v859 = vsel %vm758, %v854, %v856
        %v860 = vsel %vm758, %v856, %v858
        %v862 = vsel %vm681, %v844, 0
        %v864 = vsel %vm585, %v859, 0
        %v866 = vsel %vm585, %v860, 0
        %868 = vmatpush.msra.mxu0 0.0
        %869 = vmatpush.msra.mxu0 0.0
        %870 = vmatpush.msra.mxu0 0.0
        %871 = vmatpush.msra.mxu0 0.0
        %872 = vmatpush.msra.mxu0 0.0
        %873 = vmatpush.msra.mxu0 0.0
        %874 = vmatpush.msra.mxu0 0.0
        %875 = vmatpush.msra.mxu0 0.0
        %876 = vmatpush.msra.mxu0 0.0
        %877 = vmatpush.msra.mxu0 0.0
        %878 = vmatpush.msra.mxu0 0.0
        %879 = vmatpush.msra.mxu0 0.0
        %880 = vmatpush.msra.mxu0 0.0
        %881 = vmatpush.msra.mxu0 0.0
        %882 = vmatpush.msra.mxu0 0.0
        %883 = vmatpush.msra.mxu0 %v864
        %884 = vmatmul.f32.gmra.mxu0 %v862
        %v885 = vpop.f32.mrf.mxu0
        %v886 = vadd.f32 0.0, %v885
        %887 = vdwg.mxu0
        %888 = vmatpush.msra.mxu0 0.0
        %889 = vmatpush.msra.mxu0 0.0
        %890 = vmatpush.msra.mxu0 0.0
        %891 = vmatpush.msra.mxu0 0.0
        %892 = vmatpush.msra.mxu0 0.0
        %893 = vmatpush.msra.mxu0 0.0
        %894 = vmatpush.msra.mxu0 0.0
        %895 = vmatpush.msra.mxu0 0.0
        %896 = vmatpush.msra.mxu0 0.0
        %897 = vmatpush.msra.mxu0 0.0
        %898 = vmatpush.msra.mxu0 0.0
        %899 = vmatpush.msra.mxu0 0.0
        %900 = vmatpush.msra.mxu0 0.0
        %901 = vmatpush.msra.mxu0 0.0
        %902 = vmatpush.msra.mxu0 0.0
        %903 = vmatpush.msra.mxu0 %v866
        %904 = vmatmul.f32.gmra.mxu0 %v862
        %v905 = vpop.f32.mrf.mxu0
        %v906 = vadd.f32 0.0, %v905
        %907 = vdwg.mxu0
        %v908 = vld [vmem:[#allocation2 + $0x4] sm:$0xff]
        %v909 = vld [vmem:[#allocation2 + $0xc] sm:$0xf]
        %v911 = vperm.slane %v571, 0
        %v912 = vperm.slane %v571, 1
        %v913 = vrot.slane %v912, 4
        %v914 = vsel %vm585, %v911, %v913
        %915 = vrot.lane.b32.xlu0 %v914, 15
        %v916 = vpop.permute.xlu0 %915
        %v917 = vrot.slane %v916, 4
        %vm918 = vcmask 121856
        %v919 = vsel %vm918, %v917, %v916
        %v922 = vmul.f32 %v908, %v919
        %v923 = vmul.f32 %v909, %v917
        %924 = vrot.lane.b32.xlu0 %v643, 15
        %v925 = vpop.permute.xlu0 %924
        %v926 = vrot.slane %v925, 4
        %v927 = vsel %vm918, %v926, %v925
        %v930 = vmul.f32 %v922, %v927
        %v931 = vmul.f32 %v923, %v926
        %s932 = scalar_lea.vmem %s6, 24
        %v933 = vld [vmem:[%s932] sm:$0xf]
        %934 = vrot.lane.b32.xlu0 %v914, 16
        %v935 = vpop.permute.xlu0 %934
        %v936 = vrot.slane %v935, 4
        %v937 = vsel %vm678, %v936, %v935
        %v940 = vmul.f32 %v908, %v937
        %v941 = vmul.f32 %v909, %v936
        %s942 = scalar_lea.vmem %s6, 28
        %v943 = vld [vmem:[%s942] sm:$0xf]
        %946 = vst [vmem:[#allocation1] ss:$2 sm:$0xff] %v940
        %s947 = scalar_lea.vmem [#allocation1], 16
        %948 = vst [vmem:[%s947] ss:$2 sm:$0xff] %v941
        %v949 = vld.sshfl [vmem:[#allocation1] sm:$0xff pattern:$0x75316420]
        %v950 = vld.sshfl [vmem:[#allocation1 + $0x8] sm:$0xff pattern:$0x75316420]
        %v951 = vld.sshfl [vmem:[#allocation1 + $0x10] sm:$0xff pattern:$0x75316420]
        %952 = vrot.lane.b32.xlu0 %v949, 112
        %v953 = vpop.permute.xlu0 %952
        %954 = vrot.lane.b32.xlu0 %v950, 112
        %v955 = vpop.permute.xlu0 %954
        %956 = vrot.lane.b32.xlu0 %v951, 112
        %v957 = vpop.permute.xlu0 %956
        %v958 = vsel %vm656, %v953, %v955
        %v959 = vsel %vm656, %v955, %v957
        %v961 = vsel %vm681, %v943, 0
        %v963 = vsel %vm585, %v958, 0
        %v965 = vsel %vm585, %v959, 0
        %967 = vmatpush.msra.mxu0 0.0
        %968 = vmatpush.msra.mxu0 0.0
        %969 = vmatpush.msra.mxu0 0.0
        %970 = vmatpush.msra.mxu0 0.0
        %971 = vmatpush.msra.mxu0 0.0
        %972 = vmatpush.msra.mxu0 0.0
        %973 = vmatpush.msra.mxu0 0.0
        %974 = vmatpush.msra.mxu0 0.0
        %975 = vmatpush.msra.mxu0 0.0
        %976 = vmatpush.msra.mxu0 0.0
        %977 = vmatpush.msra.mxu0 0.0
        %978 = vmatpush.msra.mxu0 0.0
        %979 = vmatpush.msra.mxu0 0.0
        %980 = vmatpush.msra.mxu0 0.0
        %981 = vmatpush.msra.mxu0 0.0
        %982 = vmatpush.msra.mxu0 %v963
        %983 = vmatmul.f32.gmra.mxu0 %v961
        %v984 = vpop.f32.mrf.mxu0
        %v985 = vadd.f32 0.0, %v984
        %986 = vdwg.mxu0
        %987 = vmatpush.msra.mxu0 0.0
        %988 = vmatpush.msra.mxu0 0.0
        %989 = vmatpush.msra.mxu0 0.0
        %990 = vmatpush.msra.mxu0 0.0
        %991 = vmatpush.msra.mxu0 0.0
        %992 = vmatpush.msra.mxu0 0.0
        %993 = vmatpush.msra.mxu0 0.0
        %994 = vmatpush.msra.mxu0 0.0
        %995 = vmatpush.msra.mxu0 0.0
        %996 = vmatpush.msra.mxu0 0.0
        %997 = vmatpush.msra.mxu0 0.0
        %998 = vmatpush.msra.mxu0 0.0
        %999 = vmatpush.msra.mxu0 0.0
        %1000 = vmatpush.msra.mxu0 0.0
        %1001 = vmatpush.msra.mxu0 0.0
        %1002 = vmatpush.msra.mxu0 %v965
        %1003 = vmatmul.f32.gmra.mxu0 %v961
        %v1004 = vpop.f32.mrf.mxu0
        %v1005 = vadd.f32 0.0, %v1004
        %1006 = vdwg.mxu0
        %v1007 = vld [vmem:[#allocation2 + $0x4] sm:$0xff]
        %v1008 = vld [vmem:[#allocation2 + $0xc] sm:$0xf]
        %1009 = vrot.lane.b32.xlu0 %v914, 17
        %v1010 = vpop.permute.xlu0 %1009
        %v1011 = vrot.slane %v1010, 4
        %vm1012 = vcmask 138240
        %v1013 = vsel %vm1012, %v1011, %v1010
        %v1016 = vmul.f32 %v1007, %v1013
        %v1017 = vmul.f32 %v1008, %v1011
        %1018 = vrot.lane.b32.xlu0 %v744, 17
        %v1019 = vpop.permute.xlu0 %1018
        %v1020 = vrot.slane %v1019, 4
        %v1021 = vsel %vm1012, %v1020, %v1019
        %v1024 = vmul.f32 %v1016, %v1021
        %v1025 = vmul.f32 %v1017, %v1020
        %s1026 = scalar_lea.vmem %s6, 32
        %v1027 = vld [vmem:[%s1026] sm:$0xf]
        %1030 = vst [vmem:[#allocation1] ss:$2 sm:$0xff] %v1024
        %s1031 = scalar_lea.vmem [#allocation1], 16
        %1032 = vst [vmem:[%s1031] ss:$2 sm:$0xff] %v1025
        %v1033 = vld.sshfl [vmem:[#allocation1] sm:$0xff pattern:$0x75316420]
        %v1034 = vld.sshfl [vmem:[#allocation1 + $0x8] sm:$0xff pattern:$0x75316420]
        %v1035 = vld.sshfl [vmem:[#allocation1 + $0x10] sm:$0xff pattern:$0x75316420]
        %1036 = vrot.lane.b32.xlu0 %v1033, 111
        %v1037 = vpop.permute.xlu0 %1036
        %1038 = vrot.lane.b32.xlu0 %v1034, 111
        %v1039 = vpop.permute.xlu0 %1038
        %1040 = vrot.lane.b32.xlu0 %v1035, 111
        %v1041 = vpop.permute.xlu0 %1040
        %v1042 = vsel %vm633, %v1037, %v1039
        %v1043 = vsel %vm633, %v1039, %v1041
        %v1045 = vsel %vm681, %v1027, 0
        %v1047 = vsel %vm585, %v1042, 0
        %v1049 = vsel %vm585, %v1043, 0
        %1051 = vmatpush.msra.mxu0 0.0
        %1052 = vmatpush.msra.mxu0 0.0
        %1053 = vmatpush.msra.mxu0 0.0
        %1054 = vmatpush.msra.mxu0 0.0
        %1055 = vmatpush.msra.mxu0 0.0
        %1056 = vmatpush.msra.mxu0 0.0
        %1057 = vmatpush.msra.mxu0 0.0
        %1058 = vmatpush.msra.mxu0 0.0
        %1059 = vmatpush.msra.mxu0 0.0
        %1060 = vmatpush.msra.mxu0 0.0
        %1061 = vmatpush.msra.mxu0 0.0
        %1062 = vmatpush.msra.mxu0 0.0
        %1063 = vmatpush.msra.mxu0 0.0
        %1064 = vmatpush.msra.mxu0 0.0
        %1065 = vmatpush.msra.mxu0 0.0
        %1066 = vmatpush.msra.mxu0 %v1047
        %1067 = vmatmul.f32.gmra.mxu0 %v1045
        %v1068 = vpop.f32.mrf.mxu0
        %v1069 = vadd.f32 0.0, %v1068
        %1070 = vdwg.mxu0
        %1071 = vmatpush.msra.mxu0 0.0
        %1072 = vmatpush.msra.mxu0 0.0
        %1073 = vmatpush.msra.mxu0 0.0
        %1074 = vmatpush.msra.mxu0 0.0
        %1075 = vmatpush.msra.mxu0 0.0
        %1076 = vmatpush.msra.mxu0 0.0
        %1077 = vmatpush.msra.mxu0 0.0
        %1078 = vmatpush.msra.mxu0 0.0
        %1079 = vmatpush.msra.mxu0 0.0
        %1080 = vmatpush.msra.mxu0 0.0
        %1081 = vmatpush.msra.mxu0 0.0
        %1082 = vmatpush.msra.mxu0 0.0
        %1083 = vmatpush.msra.mxu0 0.0
        %1084 = vmatpush.msra.mxu0 0.0
        %1085 = vmatpush.msra.mxu0 0.0
        %1086 = vmatpush.msra.mxu0 %v1049
        %1087 = vmatmul.f32.gmra.mxu0 %v1045
        %v1088 = vpop.f32.mrf.mxu0
        %v1089 = vadd.f32 0.0, %v1088
        %1090 = vdwg.mxu0
        %1093 = vst [vmem:[#allocation1] ss:$2 sm:$0xff] %v650
        %s1094 = scalar_lea.vmem [#allocation1], 16
        %1095 = vst [vmem:[%s1094] ss:$2 sm:$0xff] %v651
        %v1096 = vld.sshfl [vmem:[#allocation1] sm:$0xff pattern:$0x75316420]
        %v1097 = vld.sshfl [vmem:[#allocation1 + $0x8] sm:$0xff pattern:$0x75316420]
        %v1098 = vld.sshfl [vmem:[#allocation1 + $0x10] sm:$0xff pattern:$0x75316420]
        %1099 = vrot.lane.b32.xlu0 %v1096, 17
        %v1100 = vpop.permute.xlu0 %1099
        %1101 = vrot.lane.b32.xlu0 %v1097, 17
        %v1102 = vpop.permute.xlu0 %1101
        %1103 = vrot.lane.b32.xlu0 %v1098, 17
        %v1104 = vpop.permute.xlu0 %1103
        %v1105 = vsel %vm1012, %v1100, %v1102
        %v1106 = vsel %vm1012, %v1102, %v1104
        %v1108 = vsel %vm681, %v652, 0
        %v1110 = vsel %vm585, %v1105, 0
        %v1112 = vsel %vm585, %v1106, 0
        %1114 = vmatpush.msra.mxu0 0.0
        %1115 = vmatpush.msra.mxu0 0.0
        %1116 = vmatpush.msra.mxu0 0.0
        %1117 = vmatpush.msra.mxu0 0.0
        %1118 = vmatpush.msra.mxu0 0.0
        %1119 = vmatpush.msra.mxu0 0.0
        %1120 = vmatpush.msra.mxu0 0.0
        %1121 = vmatpush.msra.mxu0 0.0
        %1122 = vmatpush.msra.mxu0 0.0
        %1123 = vmatpush.msra.mxu0 0.0
        %1124 = vmatpush.msra.mxu0 0.0
        %1125 = vmatpush.msra.mxu0 0.0
        %1126 = vmatpush.msra.mxu0 0.0
        %1127 = vmatpush.msra.mxu0 0.0
        %1128 = vmatpush.msra.mxu0 0.0
        %1129 = vmatpush.msra.mxu0 %v1110
        %1130 = vmatmul.f32.gmra.mxu0 %v1108
        %v1131 = vpop.f32.mrf.mxu0
        %v1132 = vadd.f32 %v707, %v1131
        %1133 = vdwg.mxu0
        %1134 = vmatpush.msra.mxu0 0.0
        %1135 = vmatpush.msra.mxu0 0.0
        %1136 = vmatpush.msra.mxu0 0.0
        %1137 = vmatpush.msra.mxu0 0.0
        %1138 = vmatpush.msra.mxu0 0.0
        %1139 = vmatpush.msra.mxu0 0.0
        %1140 = vmatpush.msra.mxu0 0.0
        %1141 = vmatpush.msra.mxu0 0.0
        %1142 = vmatpush.msra.mxu0 0.0
        %1143 = vmatpush.msra.mxu0 0.0
        %1144 = vmatpush.msra.mxu0 0.0
        %1145 = vmatpush.msra.mxu0 0.0
        %1146 = vmatpush.msra.mxu0 0.0
        %1147 = vmatpush.msra.mxu0 0.0
        %1148 = vmatpush.msra.mxu0 0.0
        %1149 = vmatpush.msra.mxu0 %v1112
        %1150 = vmatmul.f32.gmra.mxu0 %v1108
        %v1151 = vpop.f32.mrf.mxu0
        %v1152 = vadd.f32 %v727, %v1151
        %1153 = vdwg.mxu0
        %1156 = vst [vmem:[#allocation1] ss:$2 sm:$0xff] %v751
        %s1157 = scalar_lea.vmem [#allocation1], 16
        %1158 = vst [vmem:[%s1157] ss:$2 sm:$0xff] %v752
        %v1159 = vld.sshfl [vmem:[#allocation1] sm:$0xff pattern:$0x75316420]
        %v1160 = vld.sshfl [vmem:[#allocation1 + $0x8] sm:$0xff pattern:$0x75316420]
        %v1161 = vld.sshfl [vmem:[#allocation1 + $0x10] sm:$0xff pattern:$0x75316420]
        %1162 = vrot.lane.b32.xlu0 %v1159, 15
        %v1163 = vpop.permute.xlu0 %1162
        %1164 = vrot.lane.b32.xlu0 %v1160, 15
        %v1165 = vpop.permute.xlu0 %1164
        %1166 = vrot.lane.b32.xlu0 %v1161, 15
        %v1167 = vpop.permute.xlu0 %1166
        %v1168 = vsel %vm918, %v1163, %v1165
        %v1169 = vsel %vm918, %v1165, %v1167
        %v1171 = vsel %vm681, %v754, 0
        %v1173 = vsel %vm585, %v1168, 0
        %v1175 = vsel %vm585, %v1169, 0
        %1177 = vmatpush.msra.mxu0 0.0
        %1178 = vmatpush.msra.mxu0 0.0
        %1179 = vmatpush.msra.mxu0 0.0
        %1180 = vmatpush.msra.mxu0 0.0
        %1181 = vmatpush.msra.mxu0 0.0
        %1182 = vmatpush.msra.mxu0 0.0
        %1183 = vmatpush.msra.mxu0 0.0
        %1184 = vmatpush.msra.mxu0 0.0
        %1185 = vmatpush.msra.mxu0 0.0
        %1186 = vmatpush.msra.mxu0 0.0
        %1187 = vmatpush.msra.mxu0 0.0
        %1188 = vmatpush.msra.mxu0 0.0
        %1189 = vmatpush.msra.mxu0 0.0
        %1190 = vmatpush.msra.mxu0 0.0
        %1191 = vmatpush.msra.mxu0 0.0
        %1192 = vmatpush.msra.mxu0 %v1173
        %1193 = vmatmul.f32.gmra.mxu0 %v1171
        %v1194 = vpop.f32.mrf.mxu0
        %v1195 = vadd.f32 %v808, %v1194
        %1196 = vdwg.mxu0
        %1197 = vmatpush.msra.mxu0 0.0
        %1198 = vmatpush.msra.mxu0 0.0
        %1199 = vmatpush.msra.mxu0 0.0
        %1200 = vmatpush.msra.mxu0 0.0
        %1201 = vmatpush.msra.mxu0 0.0
        %1202 = vmatpush.msra.mxu0 0.0
        %1203 = vmatpush.msra.mxu0 0.0
        %1204 = vmatpush.msra.mxu0 0.0
        %1205 = vmatpush.msra.mxu0 0.0
        %1206 = vmatpush.msra.mxu0 0.0
        %1207 = vmatpush.msra.mxu0 0.0
        %1208 = vmatpush.msra.mxu0 0.0
        %1209 = vmatpush.msra.mxu0 0.0
        %1210 = vmatpush.msra.mxu0 0.0
        %1211 = vmatpush.msra.mxu0 0.0
        %1212 = vmatpush.msra.mxu0 %v1175
        %1213 = vmatmul.f32.gmra.mxu0 %v1171
        %v1214 = vpop.f32.mrf.mxu0
        %v1215 = vadd.f32 %v828, %v1214
        %1216 = vdwg.mxu0
        %1218 = vst [vmem:[#allocation1] ss:$2 sm:$0xff] %v830
        %v1219 = vld.sshfl [vmem:[#allocation1] sm:$0xff pattern:$0x75316420]
        %v1220 = vld.sshfl [vmem:[#allocation1 + $0x8] sm:$0xff pattern:$0x75316420]
        %v1222 = vsel %vm681, %v832, 0
        %v1224 = vsel %vm585, %v1219, 0
        %v1226 = vsel %vm585, %v1220, 0
        %1228 = vmatpush.msra.mxu0 0.0
        %1229 = vmatpush.msra.mxu0 0.0
        %1230 = vmatpush.msra.mxu0 0.0
        %1231 = vmatpush.msra.mxu0 0.0
        %1232 = vmatpush.msra.mxu0 0.0
        %1233 = vmatpush.msra.mxu0 0.0
        %1234 = vmatpush.msra.mxu0 0.0
        %1235 = vmatpush.msra.mxu0 0.0
        %1236 = vmatpush.msra.mxu0 0.0
        %1237 = vmatpush.msra.mxu0 0.0
        %1238 = vmatpush.msra.mxu0 0.0
        %1239 = vmatpush.msra.mxu0 0.0
        %1240 = vmatpush.msra.mxu0 0.0
        %1241 = vmatpush.msra.mxu0 0.0
        %1242 = vmatpush.msra.mxu0 0.0
        %1243 = vmatpush.msra.mxu0 %v1224
        %1244 = vmatmul.f32.gmra.mxu0 %v1222
        %v1245 = vpop.f32.mrf.mxu0
        %v1246 = vadd.f32 %v886, %v1245
        %1247 = vdwg.mxu0
        %1248 = vmatpush.msra.mxu0 0.0
        %1249 = vmatpush.msra.mxu0 0.0
        %1250 = vmatpush.msra.mxu0 0.0
        %1251 = vmatpush.msra.mxu0 0.0
        %1252 = vmatpush.msra.mxu0 0.0
        %1253 = vmatpush.msra.mxu0 0.0
        %1254 = vmatpush.msra.mxu0 0.0
        %1255 = vmatpush.msra.mxu0 0.0
        %1256 = vmatpush.msra.mxu0 0.0
        %1257 = vmatpush.msra.mxu0 0.0
        %1258 = vmatpush.msra.mxu0 0.0
        %1259 = vmatpush.msra.mxu0 0.0
        %1260 = vmatpush.msra.mxu0 0.0
        %1261 = vmatpush.msra.mxu0 0.0
        %1262 = vmatpush.msra.mxu0 0.0
        %1263 = vmatpush.msra.mxu0 %v1226
        %1264 = vmatmul.f32.gmra.mxu0 %v1222
        %v1265 = vpop.f32.mrf.mxu0
        %v1266 = vadd.f32 %v906, %v1265
        %1267 = vdwg.mxu0
        %1270 = vst [vmem:[#allocation1] ss:$2 sm:$0xff] %v930
        %s1271 = scalar_lea.vmem [#allocation1], 16
        %1272 = vst [vmem:[%s1271] ss:$2 sm:$0xff] %v931
        %v1273 = vld.sshfl [vmem:[#allocation1] sm:$0xff pattern:$0x75316420]
        %v1274 = vld.sshfl [vmem:[#allocation1 + $0x8] sm:$0xff pattern:$0x75316420]
        %v1275 = vld.sshfl [vmem:[#allocation1 + $0x10] sm:$0xff pattern:$0x75316420]
        %1276 = vrot.lane.b32.xlu0 %v1273, 113
        %v1277 = vpop.permute.xlu0 %1276
        %1278 = vrot.lane.b32.xlu0 %v1274, 113
        %v1279 = vpop.permute.xlu0 %1278
        %1280 = vrot.lane.b32.xlu0 %v1275, 113
        %v1281 = vpop.permute.xlu0 %1280
        %v1282 = vsel %vm734, %v1277, %v1279
        %v1283 = vsel %vm734, %v1279, %v1281
        %v1285 = vsel %vm681, %v933, 0
        %v1287 = vsel %vm585, %v1282, 0
        %v1289 = vsel %vm585, %v1283, 0
        %1291 = vmatpush.msra.mxu0 0.0
        %1292 = vmatpush.msra.mxu0 0.0
        %1293 = vmatpush.msra.mxu0 0.0
        %1294 = vmatpush.msra.mxu0 0.0
        %1295 = vmatpush.msra.mxu0 0.0
        %1296 = vmatpush.msra.mxu0 0.0
        %1297 = vmatpush.msra.mxu0 0.0
        %1298 = vmatpush.msra.mxu0 0.0
        %1299 = vmatpush.msra.mxu0 0.0
        %1300 = vmatpush.msra.mxu0 0.0
        %1301 = vmatpush.msra.mxu0 0.0
        %1302 = vmatpush.msra.mxu0 0.0
        %1303 = vmatpush.msra.mxu0 0.0
        %1304 = vmatpush.msra.mxu0 0.0
        %1305 = vmatpush.msra.mxu0 0.0
        %1306 = vmatpush.msra.mxu0 %v1287
        %1307 = vmatmul.f32.gmra.mxu0 %v1285
        %v1308 = vpop.f32.mrf.mxu0
        %v1309 = vadd.f32 %v985, %v1308
        %1310 = vdwg.mxu0
        %1311 = vmatpush.msra.mxu0 0.0
        %1312 = vmatpush.msra.mxu0 0.0
        %1313 = vmatpush.msra.mxu0 0.0
        %1314 = vmatpush.msra.mxu0 0.0
        %1315 = vmatpush.msra.mxu0 0.0
        %1316 = vmatpush.msra.mxu0 0.0
        %1317 = vmatpush.msra.mxu0 0.0
        %1318 = vmatpush.msra.mxu0 0.0
        %1319 = vmatpush.msra.mxu0 0.0
        %1320 = vmatpush.msra.mxu0 0.0
        %1321 = vmatpush.msra.mxu0 0.0
        %1322 = vmatpush.msra.mxu0 0.0
        %1323 = vmatpush.msra.mxu0 0.0
        %1324 = vmatpush.msra.mxu0 0.0
        %1325 = vmatpush.msra.mxu0 0.0
        %1326 = vmatpush.msra.mxu0 %v1289
        %1327 = vmatmul.f32.gmra.mxu0 %v1285
        %v1328 = vpop.f32.mrf.mxu0
        %v1329 = vadd.f32 %v1005, %v1328
        %1330 = vdwg.mxu0
        %v1331 = vadd.f32 %v1132, %v1195
        %v1332 = vadd.f32 %v1152, %v1215
        %v1333 = vadd.f32 %v1246, %v1309
        %v1334 = vadd.f32 %v1266, %v1329
        %v1335 = vadd.f32 %v1331, %v1333
        %v1336 = vadd.f32 %v1332, %v1334
        %v1337 = vadd.f32 %v1335, %v1069
        %v1338 = vadd.f32 %v1336, %v1089
        %v1339 = vld [vmem:[%s536] sm:$0xff]
        %v1340 = vstv %s563
        %v1341 = vmul.f32 %v1340, %v1339
        %v1344 = vrot.slane %v1338, 4
        %v1345 = vsel %vm585, %v1337, %v1344
        %v1347 = vadd.f32 %v1341, %v1345
        %v1348 = vstv %s565
        %v1349 = vrcp.pop %v1348
        %v1350 = vmul.f32 %v1348, %v1349
        %v1351 = vsub.f32 1.0, %v1350
        %v1352 = vmul.f32 %v1349, %v1351
        %v1353 = vadd.f32 %v1349, %v1352
        %vm1354 = vweird.f32 %v1348
        %vm1355 = vweird.f32 %v1349
        %vm1356 = vmor %vm1354, %vm1355
        %v1357 = vsel %vm1356, %v1349, %v1353
        %v1358 = vand.u32 2147483647, %v1348
        %vm1359 = vcmp.eq.f32.partialorder %v1358, 8.507059e+37
        %v1360 = vand.u32 %v1348, 2147483648
        %v1361 = vor.u32 1.1754944e-38, %v1360
        %v1362 = vsel %vm1359, %v1361, %v1357
        %v1363 = vmul.f32 %v1347, %v1362
        %v1364 = vsub.f32 %v1363, 1.0
        %vm1365 = vcmp.gt.f32.partialorder %v1364, 0.0
        %s1366 = smul.f32 %s565, 2.0
        %v1367 = vstv %s1366
        %v1368 = vrcp.pop %v1367
        %v1369 = vmul.f32 %v1367, %v1368
        %v1370 = vsub.f32 1.0, %v1369
        %v1371 = vmul.f32 %v1368, %v1370
        %v1372 = vadd.f32 %v1368, %v1371
        %vm1373 = vweird.f32 %v1367
        %vm1374 = vweird.f32 %v1368
        %vm1375 = vmor %vm1373, %vm1374
        %v1376 = vsel %vm1375, %v1368, %v1372
        %v1377 = vand.u32 2147483647, %v1367
        %vm1378 = vcmp.eq.f32.partialorder %v1377, 8.507059e+37
        %v1379 = vand.u32 %v1367, 2147483648
        %v1380 = vor.u32 1.1754944e-38, %v1379
        %v1381 = vsel %vm1378, %v1380, %v1376
        %v1382 = vmul.f32 %v1347, %v1381
        %v1383 = vsub.f32 1.0, %v1382
        %vm1384 = vcmp.ge.f32.partialorder %v1383, 0.0
        %vm1385 = vmand %vm1365, %vm1384
        %v1386 = vsel %vm1385, 1, 0
        %v1387 = vcvt.s32.f32 %v1386
        %v1388 = vsub.f32 %v1382, 1.0
        %vm1389 = vcmp.gt.f32.partialorder %v1388, 0.0
        %v1390 = vsel %vm1389, 1, 0
        %v1391 = vcvt.s32.f32 %v1390
        %v1392 = vmul.f32 %v1391, 2.0
        %v1393 = vadd.f32 %v1387, %v1392
        %v1394 = vmul.f32 %v1393, %v1348
        %v1395 = vsub.f32 %v1347, %v1394
        %1396 = vst [vmem:[%s551] sm:$0xff] %v1395
        %v1397 = vld [vmem:[%s546] sm:$0xff]
        %v1398 = vmul.f32 %v1387, %v1397
        %v1399 = vmul.f32 %v1391, %v1397
        %1401 = vst [vmem:[#allocation1] ss:$2 sm:$0xff] %v1398
        %v1402 = vld.sshfl [vmem:[#allocation1] sm:$0xff pattern:$0x75316420]
        %v1403 = vld.sshfl [vmem:[#allocation1 + $0x8] sm:$0xff pattern:$0x75316420]
        %v1406 = vsel %vm585, %v1402, 0.0
        %v1407 = vsel %vm585, %v1403, 0.0
        %v1408 = vadd.f32 %v1406, %v1407
        %1409 = vadd.xlane.f32.xlu0 %v1408
        %v1410 = vpop.xlane.xlu0 %1409
        %v1411 = vrot.slane %v1410, 4
        %v1412 = vadd.f32 %v1410, %v1411
        %v1413 = vrot.slane %v1412, 2
        %v1414 = vadd.f32 %v1412, %v1413
        %v1415 = vrot.slane %v1414, 1
        %v1416 = vadd.f32 %v1414, %v1415
        %s1417 = vtos %v1416
        %s1418 = sadd.f32 %s1417, 0.0
        %1420 = vst [vmem:[#allocation1] ss:$2 sm:$0xff] %v1399
        %v1421 = vld.sshfl [vmem:[#allocation1] sm:$0xff pattern:$0x75316420]
        %v1422 = vld.sshfl [vmem:[#allocation1 + $0x8] sm:$0xff pattern:$0x75316420]
        %v1425 = vsel %vm585, %v1421, 0.0
        %v1426 = vsel %vm585, %v1422, 0.0
        %v1427 = vadd.f32 %v1425, %v1426
        %1428 = vadd.xlane.f32.xlu0 %v1427
        %v1429 = vpop.xlane.xlu0 %1428
        %v1430 = vrot.slane %v1429, 4
        %v1431 = vadd.f32 %v1429, %v1430
        %v1432 = vrot.slane %v1431, 2
        %v1433 = vadd.f32 %v1431, %v1432
        %v1434 = vrot.slane %v1433, 1
        %v1435 = vadd.f32 %v1433, %v1434
        %s1436 = vtos %v1435
        %s1437 = sadd.f32 %s1418, %s1436
        %v1438 = vmul.f32 %v1399, 2.0
        %v1439 = vadd.f32 %v1398, %v1438
        %1440 = vst [vmem:[#allocation2 + $0x4] sm:$0xff] %v1439
        %v1441 = vstv %s1437
        %1442 = vst [vmem:[%s562] sm:$0x1] %v1441
        %v1443 = vld [vmem:[#allocation2] sm:$0xff]
        %v1444 = vld [vmem:[#allocation2 + $0x8] sm:$0xf]
        %v1445 = vmul.f32 %v1443, %v634
        %v1446 = vmul.f32 %v1444, %v632
        %v1447 = vmul.f32 %v1445, %v647
        %v1448 = vmul.f32 %v1446, %v646
        %v1449 = vld [vmem:[%s7] sm:$0xf]
        %v1450 = vmul.f32 %v1443, %v657
        %v1451 = vmul.f32 %v1444, %v655
        %s1452 = scalar_lea.vmem %s7, 4
        %v1453 = vld [vmem:[%s1452] sm:$0xf]
        %1456 = vst [vmem:[#allocation1] ss:$2 sm:$0xff] %v1450
        %s1457 = scalar_lea.vmem [#allocation1], 16
        %1458 = vst [vmem:[%s1457] ss:$2 sm:$0xff] %v1451
        %v1459 = vld.sshfl [vmem:[#allocation1] sm:$0xff pattern:$0x75316420]
        %v1460 = vld.sshfl [vmem:[#allocation1 + $0x8] sm:$0xff pattern:$0x75316420]
        %v1461 = vld.sshfl [vmem:[#allocation1 + $0x10] sm:$0xff pattern:$0x75316420]
        %1462 = vrot.lane.b32.xlu0 %v1459, 16
        %v1463 = vpop.permute.xlu0 %1462
        %1464 = vrot.lane.b32.xlu0 %v1460, 16
        %v1465 = vpop.permute.xlu0 %1464
        %1466 = vrot.lane.b32.xlu0 %v1461, 16
        %v1467 = vpop.permute.xlu0 %1466
        %v1468 = vsel %vm678, %v1463, %v1465
        %v1469 = vsel %vm678, %v1465, %v1467
        %v1471 = vsel %vm681, %v1453, 0
        %v1473 = vsel %vm585, %v1468, 0
        %v1475 = vsel %vm585, %v1469, 0
        %1477 = vmatpush.msra.mxu0 0.0
        %1478 = vmatpush.msra.mxu0 0.0
        %1479 = vmatpush.msra.mxu0 0.0
        %1480 = vmatpush.msra.mxu0 0.0
        %1481 = vmatpush.msra.mxu0 0.0
        %1482 = vmatpush.msra.mxu0 0.0
        %1483 = vmatpush.msra.mxu0 0.0
        %1484 = vmatpush.msra.mxu0 0.0
        %1485 = vmatpush.msra.mxu0 0.0
        %1486 = vmatpush.msra.mxu0 0.0
        %1487 = vmatpush.msra.mxu0 0.0
        %1488 = vmatpush.msra.mxu0 0.0
        %1489 = vmatpush.msra.mxu0 0.0
        %1490 = vmatpush.msra.mxu0 0.0
        %1491 = vmatpush.msra.mxu0 0.0
        %1492 = vmatpush.msra.mxu0 %v1473
        %1493 = vmatmul.f32.gmra.mxu0 %v1471
        %v1494 = vpop.f32.mrf.mxu0
        %v1495 = vadd.f32 0.0, %v1494
        %1496 = vdwg.mxu0
        %1497 = vmatpush.msra.mxu0 0.0
        %1498 = vmatpush.msra.mxu0 0.0
        %1499 = vmatpush.msra.mxu0 0.0
        %1500 = vmatpush.msra.mxu0 0.0
        %1501 = vmatpush.msra.mxu0 0.0
        %1502 = vmatpush.msra.mxu0 0.0
        %1503 = vmatpush.msra.mxu0 0.0
        %1504 = vmatpush.msra.mxu0 0.0
        %1505 = vmatpush.msra.mxu0 0.0
        %1506 = vmatpush.msra.mxu0 0.0
        %1507 = vmatpush.msra.mxu0 0.0
        %1508 = vmatpush.msra.mxu0 0.0
        %1509 = vmatpush.msra.mxu0 0.0
        %1510 = vmatpush.msra.mxu0 0.0
        %1511 = vmatpush.msra.mxu0 0.0
        %1512 = vmatpush.msra.mxu0 %v1475
        %1513 = vmatmul.f32.gmra.mxu0 %v1471
        %v1514 = vpop.f32.mrf.mxu0
        %v1515 = vadd.f32 0.0, %v1514
        %1516 = vdwg.mxu0
        %v1517 = vld [vmem:[#allocation2] sm:$0xff]
        %v1518 = vld [vmem:[#allocation2 + $0x8] sm:$0xf]
        %v1519 = vmul.f32 %v1517, %v735
        %v1520 = vmul.f32 %v1518, %v733
        %v1521 = vmul.f32 %v1519, %v748
        %v1522 = vmul.f32 %v1520, %v747
        %s1523 = scalar_lea.vmem %s7, 8
        %v1524 = vld [vmem:[%s1523] sm:$0xf]
        %v1525 = vmul.f32 %v1517, %v759
        %v1526 = vmul.f32 %v1518, %v757
        %s1527 = scalar_lea.vmem %s7, 12
        %v1528 = vld [vmem:[%s1527] sm:$0xf]
        %1531 = vst [vmem:[#allocation1] ss:$2 sm:$0xff] %v1525
        %s1532 = scalar_lea.vmem [#allocation1], 16
        %1533 = vst [vmem:[%s1532] ss:$2 sm:$0xff] %v1526
        %v1534 = vld.sshfl [vmem:[#allocation1] sm:$0xff pattern:$0x75316420]
        %v1535 = vld.sshfl [vmem:[#allocation1 + $0x8] sm:$0xff pattern:$0x75316420]
        %v1536 = vld.sshfl [vmem:[#allocation1 + $0x10] sm:$0xff pattern:$0x75316420]
        %1537 = vrot.lane.b32.xlu0 %v1534, 1
        %v1538 = vpop.permute.xlu0 %1537
        %1539 = vrot.lane.b32.xlu0 %v1535, 1
        %v1540 = vpop.permute.xlu0 %1539
        %1541 = vrot.lane.b32.xlu0 %v1536, 1
        %v1542 = vpop.permute.xlu0 %1541
        %v1543 = vsel %vm780, %v1538, %v1540
        %v1544 = vsel %vm780, %v1540, %v1542
        %v1546 = vsel %vm681, %v1528, 0
        %v1548 = vsel %vm585, %v1543, 0
        %v1550 = vsel %vm585, %v1544, 0
        %1552 = vmatpush.msra.mxu0 0.0
        %1553 = vmatpush.msra.mxu0 0.0
        %1554 = vmatpush.msra.mxu0 0.0
        %1555 = vmatpush.msra.mxu0 0.0
        %1556 = vmatpush.msra.mxu0 0.0
        %1557 = vmatpush.msra.mxu0 0.0
        %1558 = vmatpush.msra.mxu0 0.0
        %1559 = vmatpush.msra.mxu0 0.0
        %1560 = vmatpush.msra.mxu0 0.0
        %1561 = vmatpush.msra.mxu0 0.0
        %1562 = vmatpush.msra.mxu0 0.0
        %1563 = vmatpush.msra.mxu0 0.0
        %1564 = vmatpush.msra.mxu0 0.0
        %1565 = vmatpush.msra.mxu0 0.0
        %1566 = vmatpush.msra.mxu0 0.0
        %1567 = vmatpush.msra.mxu0 %v1548
        %1568 = vmatmul.f32.gmra.mxu0 %v1546
        %v1569 = vpop.f32.mrf.mxu0
        %v1570 = vadd.f32 0.0, %v1569
        %1571 = vdwg.mxu0
        %1572 = vmatpush.msra.mxu0 0.0
        %1573 = vmatpush.msra.mxu0 0.0
        %1574 = vmatpush.msra.mxu0 0.0
        %1575 = vmatpush.msra.mxu0 0.0
        %1576 = vmatpush.msra.mxu0 0.0
        %1577 = vmatpush.msra.mxu0 0.0
        %1578 = vmatpush.msra.mxu0 0.0
        %1579 = vmatpush.msra.mxu0 0.0
        %1580 = vmatpush.msra.mxu0 0.0
        %1581 = vmatpush.msra.mxu0 0.0
        %1582 = vmatpush.msra.mxu0 0.0
        %1583 = vmatpush.msra.mxu0 0.0
        %1584 = vmatpush.msra.mxu0 0.0
        %1585 = vmatpush.msra.mxu0 0.0
        %1586 = vmatpush.msra.mxu0 0.0
        %1587 = vmatpush.msra.mxu0 %v1550
        %1588 = vmatmul.f32.gmra.mxu0 %v1546
        %v1589 = vpop.f32.mrf.mxu0
        %v1590 = vadd.f32 0.0, %v1589
        %1591 = vdwg.mxu0
        %v1592 = vld [vmem:[#allocation2 + $0x4] sm:$0xff]
        %s1593 = scalar_lea.vmem %s7, 16
        %v1594 = vld [vmem:[%s1593] sm:$0xf]
        %v1595 = vld [vmem:[#allocation2 + $0x4] sm:$0xff]
        %v1596 = vld [vmem:[#allocation2 + $0xc] sm:$0xf]
        %v1597 = vmul.f32 %v1595, %v838
        %v1598 = vmul.f32 %v1596, %v837
        %s1599 = scalar_lea.vmem %s7, 20
        %v1600 = vld [vmem:[%s1599] sm:$0xf]
        %1603 = vst [vmem:[#allocation1] ss:$2 sm:$0xff] %v1597
        %s1604 = scalar_lea.vmem [#allocation1], 16
        %1605 = vst [vmem:[%s1604] ss:$2 sm:$0xff] %v1598
        %v1606 = vld.sshfl [vmem:[#allocation1] sm:$0xff pattern:$0x75316420]
        %v1607 = vld.sshfl [vmem:[#allocation1 + $0x8] sm:$0xff pattern:$0x75316420]
        %v1608 = vld.sshfl [vmem:[#allocation1 + $0x10] sm:$0xff pattern:$0x75316420]
        %1609 = vrot.lane.b32.xlu0 %v1606, 127
        %v1610 = vpop.permute.xlu0 %1609
        %1611 = vrot.lane.b32.xlu0 %v1607, 127
        %v1612 = vpop.permute.xlu0 %1611
        %1613 = vrot.lane.b32.xlu0 %v1608, 127
        %v1614 = vpop.permute.xlu0 %1613
        %v1615 = vsel %vm758, %v1610, %v1612
        %v1616 = vsel %vm758, %v1612, %v1614
        %v1618 = vsel %vm681, %v1600, 0
        %v1620 = vsel %vm585, %v1615, 0
        %v1622 = vsel %vm585, %v1616, 0
        %1624 = vmatpush.msra.mxu0 0.0
        %1625 = vmatpush.msra.mxu0 0.0
        %1626 = vmatpush.msra.mxu0 0.0
        %1627 = vmatpush.msra.mxu0 0.0
        %1628 = vmatpush.msra.mxu0 0.0
        %1629 = vmatpush.msra.mxu0 0.0
        %1630 = vmatpush.msra.mxu0 0.0
        %1631 = vmatpush.msra.mxu0 0.0
        %1632 = vmatpush.msra.mxu0 0.0
        %1633 = vmatpush.msra.mxu0 0.0
        %1634 = vmatpush.msra.mxu0 0.0
        %1635 = vmatpush.msra.mxu0 0.0
        %1636 = vmatpush.msra.mxu0 0.0
        %1637 = vmatpush.msra.mxu0 0.0
        %1638 = vmatpush.msra.mxu0 0.0
        %1639 = vmatpush.msra.mxu0 %v1620
        %1640 = vmatmul.f32.gmra.mxu0 %v1618
        %v1641 = vpop.f32.mrf.mxu0
        %v1642 = vadd.f32 0.0, %v1641
        %1643 = vdwg.mxu0
        %1644 = vmatpush.msra.mxu0 0.0
        %1645 = vmatpush.msra.mxu0 0.0
        %1646 = vmatpush.msra.mxu0 0.0
        %1647 = vmatpush.msra.mxu0 0.0
        %1648 = vmatpush.msra.mxu0 0.0
        %1649 = vmatpush.msra.mxu0 0.0
        %1650 = vmatpush.msra.mxu0 0.0
        %1651 = vmatpush.msra.mxu0 0.0
        %1652 = vmatpush.msra.mxu0 0.0
        %1653 = vmatpush.msra.mxu0 0.0
        %1654 = vmatpush.msra.mxu0 0.0
        %1655 = vmatpush.msra.mxu0 0.0
        %1656 = vmatpush.msra.mxu0 0.0
        %1657 = vmatpush.msra.mxu0 0.0
        %1658 = vmatpush.msra.mxu0 0.0
        %1659 = vmatpush.msra.mxu0 %v1622
        %1660 = vmatmul.f32.gmra.mxu0 %v1618
        %v1661 = vpop.f32.mrf.mxu0
        %v1662 = vadd.f32 0.0, %v1661
        %1663 = vdwg.mxu0
        %v1664 = vld [vmem:[#allocation2 + $0x4] sm:$0xff]
        %v1665 = vld [vmem:[#allocation2 + $0xc] sm:$0xf]
        %v1666 = vmul.f32 %v1664, %v919
        %v1667 = vmul.f32 %v1665, %v917
        %v1668 = vmul.f32 %v1666, %v927
        %v1669 = vmul.f32 %v1667, %v926
        %s1670 = scalar_lea.vmem %s7, 24
        %v1671 = vld [vmem:[%s1670] sm:$0xf]
        %v1672 = vmul.f32 %v1664, %v937
        %v1673 = vmul.f32 %v1665, %v936
        %s1674 = scalar_lea.vmem %s7, 28
        %v1675 = vld [vmem:[%s1674] sm:$0xf]
        %1678 = vst [vmem:[#allocation1] ss:$2 sm:$0xff] %v1672
        %s1679 = scalar_lea.vmem [#allocation1], 16
        %1680 = vst [vmem:[%s1679] ss:$2 sm:$0xff] %v1673
        %v1681 = vld.sshfl [vmem:[#allocation1] sm:$0xff pattern:$0x75316420]
        %v1682 = vld.sshfl [vmem:[#allocation1 + $0x8] sm:$0xff pattern:$0x75316420]
        %v1683 = vld.sshfl [vmem:[#allocation1 + $0x10] sm:$0xff pattern:$0x75316420]
        %1684 = vrot.lane.b32.xlu0 %v1681, 112
        %v1685 = vpop.permute.xlu0 %1684
        %1686 = vrot.lane.b32.xlu0 %v1682, 112
        %v1687 = vpop.permute.xlu0 %1686
        %1688 = vrot.lane.b32.xlu0 %v1683, 112
        %v1689 = vpop.permute.xlu0 %1688
        %v1690 = vsel %vm656, %v1685, %v1687
        %v1691 = vsel %vm656, %v1687, %v1689
        %v1693 = vsel %vm681, %v1675, 0
        %v1695 = vsel %vm585, %v1690, 0
        %v1697 = vsel %vm585, %v1691, 0
        %1699 = vmatpush.msra.mxu0 0.0
        %1700 = vmatpush.msra.mxu0 0.0
        %1701 = vmatpush.msra.mxu0 0.0
        %1702 = vmatpush.msra.mxu0 0.0
        %1703 = vmatpush.msra.mxu0 0.0
        %1704 = vmatpush.msra.mxu0 0.0
        %1705 = vmatpush.msra.mxu0 0.0
        %1706 = vmatpush.msra.mxu0 0.0
        %1707 = vmatpush.msra.mxu0 0.0
        %1708 = vmatpush.msra.mxu0 0.0
        %1709 = vmatpush.msra.mxu0 0.0
        %1710 = vmatpush.msra.mxu0 0.0
        %1711 = vmatpush.msra.mxu0 0.0
        %1712 = vmatpush.msra.mxu0 0.0
        %1713 = vmatpush.msra.mxu0 0.0
        %1714 = vmatpush.msra.mxu0 %v1695
        %1715 = vmatmul.f32.gmra.mxu0 %v1693
        %v1716 = vpop.f32.mrf.mxu0
        %v1717 = vadd.f32 0.0, %v1716
        %1718 = vdwg.mxu0
        %1719 = vmatpush.msra.mxu0 0.0
        %1720 = vmatpush.msra.mxu0 0.0
        %1721 = vmatpush.msra.mxu0 0.0
        %1722 = vmatpush.msra.mxu0 0.0
        %1723 = vmatpush.msra.mxu0 0.0
        %1724 = vmatpush.msra.mxu0 0.0
        %1725 = vmatpush.msra.mxu0 0.0
        %1726 = vmatpush.msra.mxu0 0.0
        %1727 = vmatpush.msra.mxu0 0.0
        %1728 = vmatpush.msra.mxu0 0.0
        %1729 = vmatpush.msra.mxu0 0.0
        %1730 = vmatpush.msra.mxu0 0.0
        %1731 = vmatpush.msra.mxu0 0.0
        %1732 = vmatpush.msra.mxu0 0.0
        %1733 = vmatpush.msra.mxu0 0.0
        %1734 = vmatpush.msra.mxu0 %v1697
        %1735 = vmatmul.f32.gmra.mxu0 %v1693
        %v1736 = vpop.f32.mrf.mxu0
        %v1737 = vadd.f32 0.0, %v1736
        %1738 = vdwg.mxu0
        %v1739 = vld [vmem:[#allocation2 + $0x4] sm:$0xff]
        %v1740 = vld [vmem:[#allocation2 + $0xc] sm:$0xf]
        %v1741 = vmul.f32 %v1739, %v1013
        %v1742 = vmul.f32 %v1740, %v1011
        %v1743 = vmul.f32 %v1741, %v1021
        %v1744 = vmul.f32 %v1742, %v1020
        %s1745 = scalar_lea.vmem %s7, 32
        %v1746 = vld [vmem:[%s1745] sm:$0xf]
        %1749 = vst [vmem:[#allocation1] ss:$2 sm:$0xff] %v1743
        %s1750 = scalar_lea.vmem [#allocation1], 16
        %1751 = vst [vmem:[%s1750] ss:$2 sm:$0xff] %v1744
        %v1752 = vld.sshfl [vmem:[#allocation1] sm:$0xff pattern:$0x75316420]
        %v1753 = vld.sshfl [vmem:[#allocation1 + $0x8] sm:$0xff pattern:$0x75316420]
        %v1754 = vld.sshfl [vmem:[#allocation1 + $0x10] sm:$0xff pattern:$0x75316420]
        %1755 = vrot.lane.b32.xlu0 %v1752, 111
        %v1756 = vpop.permute.xlu0 %1755
        %1757 = vrot.lane.b32.xlu0 %v1753, 111
        %v1758 = vpop.permute.xlu0 %1757
        %1759 = vrot.lane.b32.xlu0 %v1754, 111
        %v1760 = vpop.permute.xlu0 %1759
        %v1761 = vsel %vm633, %v1756, %v1758
        %v1762 = vsel %vm633, %v1758, %v1760
        %v1764 = vsel %vm681, %v1746, 0
        %v1766 = vsel %vm585, %v1761, 0
        %v1768 = vsel %vm585, %v1762, 0
        %1770 = vmatpush.msra.mxu0 0.0
        %1771 = vmatpush.msra.mxu0 0.0
        %1772 = vmatpush.msra.mxu0 0.0
        %1773 = vmatpush.msra.mxu0 0.0
        %1774 = vmatpush.msra.mxu0 0.0
        %1775 = vmatpush.msra.mxu0 0.0
        %1776 = vmatpush.msra.mxu0 0.0
        %1777 = vmatpush.msra.mxu0 0.0
        %1778 = vmatpush.msra.mxu0 0.0
        %1779 = vmatpush.msra.mxu0 0.0
        %1780 = vmatpush.msra.mxu0 0.0
        %1781 = vmatpush.msra.mxu0 0.0
        %1782 = vmatpush.msra.mxu0 0.0
        %1783 = vmatpush.msra.mxu0 0.0
        %1784 = vmatpush.msra.mxu0 0.0
        %1785 = vmatpush.msra.mxu0 %v1766
        %1786 = vmatmul.f32.gmra.mxu0 %v1764
        %v1787 = vpop.f32.mrf.mxu0
        %v1788 = vadd.f32 0.0, %v1787
        %1789 = vdwg.mxu0
        %1790 = vmatpush.msra.mxu0 0.0
        %1791 = vmatpush.msra.mxu0 0.0
        %1792 = vmatpush.msra.mxu0 0.0
        %1793 = vmatpush.msra.mxu0 0.0
        %1794 = vmatpush.msra.mxu0 0.0
        %1795 = vmatpush.msra.mxu0 0.0
        %1796 = vmatpush.msra.mxu0 0.0
        %1797 = vmatpush.msra.mxu0 0.0
        %1798 = vmatpush.msra.mxu0 0.0
        %1799 = vmatpush.msra.mxu0 0.0
        %1800 = vmatpush.msra.mxu0 0.0
        %1801 = vmatpush.msra.mxu0 0.0
        %1802 = vmatpush.msra.mxu0 0.0
        %1803 = vmatpush.msra.mxu0 0.0
        %1804 = vmatpush.msra.mxu0 0.0
        %1805 = vmatpush.msra.mxu0 %v1768
        %1806 = vmatmul.f32.gmra.mxu0 %v1764
        %v1807 = vpop.f32.mrf.mxu0
        %v1808 = vadd.f32 0.0, %v1807
        %1809 = vdwg.mxu0
        %1812 = vst [vmem:[#allocation1] ss:$2 sm:$0xff] %v1447
        %s1813 = scalar_lea.vmem [#allocation1], 16
        %1814 = vst [vmem:[%s1813] ss:$2 sm:$0xff] %v1448
        %v1815 = vld.sshfl [vmem:[#allocation1] sm:$0xff pattern:$0x75316420]
        %v1816 = vld.sshfl [vmem:[#allocation1 + $0x8] sm:$0xff pattern:$0x75316420]
        %v1817 = vld.sshfl [vmem:[#allocation1 + $0x10] sm:$0xff pattern:$0x75316420]
        %1818 = vrot.lane.b32.xlu0 %v1815, 17
        %v1819 = vpop.permute.xlu0 %1818
        %1820 = vrot.lane.b32.xlu0 %v1816, 17
        %v1821 = vpop.permute.xlu0 %1820
        %1822 = vrot.lane.b32.xlu0 %v1817, 17
        %v1823 = vpop.permute.xlu0 %1822
        %v1824 = vsel %vm1012, %v1819, %v1821
        %v1825 = vsel %vm1012, %v1821, %v1823
        %v1827 = vsel %vm681, %v1449, 0
        %v1829 = vsel %vm585, %v1824, 0
        %v1831 = vsel %vm585, %v1825, 0
        %1833 = vmatpush.msra.mxu0 0.0
        %1834 = vmatpush.msra.mxu0 0.0
        %1835 = vmatpush.msra.mxu0 0.0
        %1836 = vmatpush.msra.mxu0 0.0
        %1837 = vmatpush.msra.mxu0 0.0
        %1838 = vmatpush.msra.mxu0 0.0
        %1839 = vmatpush.msra.mxu0 0.0
        %1840 = vmatpush.msra.mxu0 0.0
        %1841 = vmatpush.msra.mxu0 0.0
        %1842 = vmatpush.msra.mxu0 0.0
        %1843 = vmatpush.msra.mxu0 0.0
        %1844 = vmatpush.msra.mxu0 0.0
        %1845 = vmatpush.msra.mxu0 0.0
        %1846 = vmatpush.msra.mxu0 0.0
        %1847 = vmatpush.msra.mxu0 0.0
        %1848 = vmatpush.msra.mxu0 %v1829
        %1849 = vmatmul.f32.gmra.mxu0 %v1827
        %v1850 = vpop.f32.mrf.mxu0
        %v1851 = vadd.f32 %v1495, %v1850
        %1852 = vdwg.mxu0
        %1853 = vmatpush.msra.mxu0 0.0
        %1854 = vmatpush.msra.mxu0 0.0
        %1855 = vmatpush.msra.mxu0 0.0
        %1856 = vmatpush.msra.mxu0 0.0
        %1857 = vmatpush.msra.mxu0 0.0
        %1858 = vmatpush.msra.mxu0 0.0
        %1859 = vmatpush.msra.mxu0 0.0
        %1860 = vmatpush.msra.mxu0 0.0
        %1861 = vmatpush.msra.mxu0 0.0
        %1862 = vmatpush.msra.mxu0 0.0
        %1863 = vmatpush.msra.mxu0 0.0
        %1864 = vmatpush.msra.mxu0 0.0
        %1865 = vmatpush.msra.mxu0 0.0
        %1866 = vmatpush.msra.mxu0 0.0
        %1867 = vmatpush.msra.mxu0 0.0
        %1868 = vmatpush.msra.mxu0 %v1831
        %1869 = vmatmul.f32.gmra.mxu0 %v1827
        %v1870 = vpop.f32.mrf.mxu0
        %v1871 = vadd.f32 %v1515, %v1870
        %1872 = vdwg.mxu0
        %1875 = vst [vmem:[#allocation1] ss:$2 sm:$0xff] %v1521
        %s1876 = scalar_lea.vmem [#allocation1], 16
        %1877 = vst [vmem:[%s1876] ss:$2 sm:$0xff] %v1522
        %v1878 = vld.sshfl [vmem:[#allocation1] sm:$0xff pattern:$0x75316420]
        %v1879 = vld.sshfl [vmem:[#allocation1 + $0x8] sm:$0xff pattern:$0x75316420]
        %v1880 = vld.sshfl [vmem:[#allocation1 + $0x10] sm:$0xff pattern:$0x75316420]
        %1881 = vrot.lane.b32.xlu0 %v1878, 15
        %v1882 = vpop.permute.xlu0 %1881
        %1883 = vrot.lane.b32.xlu0 %v1879, 15
        %v1884 = vpop.permute.xlu0 %1883
        %1885 = vrot.lane.b32.xlu0 %v1880, 15
        %v1886 = vpop.permute.xlu0 %1885
        %v1887 = vsel %vm918, %v1882, %v1884
        %v1888 = vsel %vm918, %v1884, %v1886
        %v1890 = vsel %vm681, %v1524, 0
        %v1892 = vsel %vm585, %v1887, 0
        %v1894 = vsel %vm585, %v1888, 0
        %1896 = vmatpush.msra.mxu0 0.0
        %1897 = vmatpush.msra.mxu0 0.0
        %1898 = vmatpush.msra.mxu0 0.0
        %1899 = vmatpush.msra.mxu0 0.0
        %1900 = vmatpush.msra.mxu0 0.0
        %1901 = vmatpush.msra.mxu0 0.0
        %1902 = vmatpush.msra.mxu0 0.0
        %1903 = vmatpush.msra.mxu0 0.0
        %1904 = vmatpush.msra.mxu0 0.0
        %1905 = vmatpush.msra.mxu0 0.0
        %1906 = vmatpush.msra.mxu0 0.0
        %1907 = vmatpush.msra.mxu0 0.0
        %1908 = vmatpush.msra.mxu0 0.0
        %1909 = vmatpush.msra.mxu0 0.0
        %1910 = vmatpush.msra.mxu0 0.0
        %1911 = vmatpush.msra.mxu0 %v1892
        %1912 = vmatmul.f32.gmra.mxu0 %v1890
        %v1913 = vpop.f32.mrf.mxu0
        %v1914 = vadd.f32 %v1570, %v1913
        %1915 = vdwg.mxu0
        %1916 = vmatpush.msra.mxu0 0.0
        %1917 = vmatpush.msra.mxu0 0.0
        %1918 = vmatpush.msra.mxu0 0.0
        %1919 = vmatpush.msra.mxu0 0.0
        %1920 = vmatpush.msra.mxu0 0.0
        %1921 = vmatpush.msra.mxu0 0.0
        %1922 = vmatpush.msra.mxu0 0.0
        %1923 = vmatpush.msra.mxu0 0.0
        %1924 = vmatpush.msra.mxu0 0.0
        %1925 = vmatpush.msra.mxu0 0.0
        %1926 = vmatpush.msra.mxu0 0.0
        %1927 = vmatpush.msra.mxu0 0.0
        %1928 = vmatpush.msra.mxu0 0.0
        %1929 = vmatpush.msra.mxu0 0.0
        %1930 = vmatpush.msra.mxu0 0.0
        %1931 = vmatpush.msra.mxu0 %v1894
        %1932 = vmatmul.f32.gmra.mxu0 %v1890
        %v1933 = vpop.f32.mrf.mxu0
        %v1934 = vadd.f32 %v1590, %v1933
        %1935 = vdwg.mxu0
        %1937 = vst [vmem:[#allocation1] ss:$2 sm:$0xff] %v1592
        %v1938 = vld.sshfl [vmem:[#allocation1] sm:$0xff pattern:$0x75316420]
        %v1939 = vld.sshfl [vmem:[#allocation1 + $0x8] sm:$0xff pattern:$0x75316420]
        %v1941 = vsel %vm681, %v1594, 0
        %v1943 = vsel %vm585, %v1938, 0
        %v1945 = vsel %vm585, %v1939, 0
        %1947 = vmatpush.msra.mxu0 0.0
        %1948 = vmatpush.msra.mxu0 0.0
        %1949 = vmatpush.msra.mxu0 0.0
        %1950 = vmatpush.msra.mxu0 0.0
        %1951 = vmatpush.msra.mxu0 0.0
        %1952 = vmatpush.msra.mxu0 0.0
        %1953 = vmatpush.msra.mxu0 0.0
        %1954 = vmatpush.msra.mxu0 0.0
        %1955 = vmatpush.msra.mxu0 0.0
        %1956 = vmatpush.msra.mxu0 0.0
        %1957 = vmatpush.msra.mxu0 0.0
        %1958 = vmatpush.msra.mxu0 0.0
        %1959 = vmatpush.msra.mxu0 0.0
        %1960 = vmatpush.msra.mxu0 0.0
        %1961 = vmatpush.msra.mxu0 0.0
        %1962 = vmatpush.msra.mxu0 %v1943
        %1963 = vmatmul.f32.gmra.mxu0 %v1941
        %v1964 = vpop.f32.mrf.mxu0
        %v1965 = vadd.f32 %v1642, %v1964
        %1966 = vdwg.mxu0
        %1967 = vmatpush.msra.mxu0 0.0
        %1968 = vmatpush.msra.mxu0 0.0
        %1969 = vmatpush.msra.mxu0 0.0
        %1970 = vmatpush.msra.mxu0 0.0
        %1971 = vmatpush.msra.mxu0 0.0
        %1972 = vmatpush.msra.mxu0 0.0
        %1973 = vmatpush.msra.mxu0 0.0
        %1974 = vmatpush.msra.mxu0 0.0
        %1975 = vmatpush.msra.mxu0 0.0
        %1976 = vmatpush.msra.mxu0 0.0
        %1977 = vmatpush.msra.mxu0 0.0
        %1978 = vmatpush.msra.mxu0 0.0
        %1979 = vmatpush.msra.mxu0 0.0
        %1980 = vmatpush.msra.mxu0 0.0
        %1981 = vmatpush.msra.mxu0 0.0
        %1982 = vmatpush.msra.mxu0 %v1945
        %1983 = vmatmul.f32.gmra.mxu0 %v1941
        %v1984 = vpop.f32.mrf.mxu0
        %v1985 = vadd.f32 %v1662, %v1984
        %1986 = vdwg.mxu0
        %1989 = vst [vmem:[#allocation1] ss:$2 sm:$0xff] %v1668
        %s1990 = scalar_lea.vmem [#allocation1], 16
        %1991 = vst [vmem:[%s1990] ss:$2 sm:$0xff] %v1669
        %v1992 = vld.sshfl [vmem:[#allocation1] sm:$0xff pattern:$0x75316420]
        %v1993 = vld.sshfl [vmem:[#allocation1 + $0x8] sm:$0xff pattern:$0x75316420]
        %v1994 = vld.sshfl [vmem:[#allocation1 + $0x10] sm:$0xff pattern:$0x75316420]
        %1995 = vrot.lane.b32.xlu0 %v1992, 113
        %v1996 = vpop.permute.xlu0 %1995
        %1997 = vrot.lane.b32.xlu0 %v1993, 113
        %v1998 = vpop.permute.xlu0 %1997
        %1999 = vrot.lane.b32.xlu0 %v1994, 113
        %v2000 = vpop.permute.xlu0 %1999
        %v2001 = vsel %vm734, %v1996, %v1998
        %v2002 = vsel %vm734, %v1998, %v2000
        %v2004 = vsel %vm681, %v1671, 0
        %v2006 = vsel %vm585, %v2001, 0
        %v2008 = vsel %vm585, %v2002, 0
        %2010 = vmatpush.msra.mxu0 0.0
        %2011 = vmatpush.msra.mxu0 0.0
        %2012 = vmatpush.msra.mxu0 0.0
        %2013 = vmatpush.msra.mxu0 0.0
        %2014 = vmatpush.msra.mxu0 0.0
        %2015 = vmatpush.msra.mxu0 0.0
        %2016 = vmatpush.msra.mxu0 0.0
        %2017 = vmatpush.msra.mxu0 0.0
        %2018 = vmatpush.msra.mxu0 0.0
        %2019 = vmatpush.msra.mxu0 0.0
        %2020 = vmatpush.msra.mxu0 0.0
        %2021 = vmatpush.msra.mxu0 0.0
        %2022 = vmatpush.msra.mxu0 0.0
        %2023 = vmatpush.msra.mxu0 0.0
        %2024 = vmatpush.msra.mxu0 0.0
        %2025 = vmatpush.msra.mxu0 %v2006
        %2026 = vmatmul.f32.gmra.mxu0 %v2004
        %v2027 = vpop.f32.mrf.mxu0
        %v2028 = vadd.f32 %v1717, %v2027
        %2029 = vdwg.mxu0
        %2030 = vmatpush.msra.mxu0 0.0
        %2031 = vmatpush.msra.mxu0 0.0
        %2032 = vmatpush.msra.mxu0 0.0
        %2033 = vmatpush.msra.mxu0 0.0
        %2034 = vmatpush.msra.mxu0 0.0
        %2035 = vmatpush.msra.mxu0 0.0
        %2036 = vmatpush.msra.mxu0 0.0
        %2037 = vmatpush.msra.mxu0 0.0
        %2038 = vmatpush.msra.mxu0 0.0
        %2039 = vmatpush.msra.mxu0 0.0
        %2040 = vmatpush.msra.mxu0 0.0
        %2041 = vmatpush.msra.mxu0 0.0
        %2042 = vmatpush.msra.mxu0 0.0
        %2043 = vmatpush.msra.mxu0 0.0
        %2044 = vmatpush.msra.mxu0 0.0
        %2045 = vmatpush.msra.mxu0 %v2008
        %2046 = vmatmul.f32.gmra.mxu0 %v2004
        %v2047 = vpop.f32.mrf.mxu0
        %v2048 = vadd.f32 %v1737, %v2047
        %2049 = vdwg.mxu0
        %v2050 = vadd.f32 %v1851, %v1914
        %v2051 = vadd.f32 %v1871, %v1934
        %v2052 = vadd.f32 %v1965, %v2028
        %v2053 = vadd.f32 %v1985, %v2048
        %v2054 = vadd.f32 %v2050, %v2052
        %v2055 = vadd.f32 %v2051, %v2053
        %v2056 = vadd.f32 %v2054, %v1788
        %v2057 = vadd.f32 %v2055, %v1808
        %v2058 = vld [vmem:[%s462] sm:$0xff]
        %v2059 = vld [vmem:[%s577] sm:$0xff]
        %v2060 = vmul.f32 %v2059, 2.0
        %v2061 = vadd.f32 %v2058, %v2060
        %v2062 = vld [vmem:[%s541] sm:$0xff]
        %v2063 = vstv %s564
        %v2064 = vmul.f32 %v2063, %v2062
        %v2067 = vrot.slane %v2057, 4
        %v2068 = vsel %vm585, %v2056, %v2067
        %v2070 = vadd.f32 %v2064, %v2068
        %v2071 = vadd.f32 %v2070, %v2061
        %v2072 = vstv %s566
        %v2073 = vrcp.pop %v2072
        %v2074 = vmul.f32 %v2072, %v2073
        %v2075 = vsub.f32 1.0, %v2074
        %v2076 = vmul.f32 %v2073, %v2075
        %v2077 = vadd.f32 %v2073, %v2076
        %vm2078 = vweird.f32 %v2072
        %vm2079 = vweird.f32 %v2073
        %vm2080 = vmor %vm2078, %vm2079
        %v2081 = vsel %vm2080, %v2073, %v2077
        %v2082 = vand.u32 2147483647, %v2072
        %vm2083 = vcmp.eq.f32.partialorder %v2082, 8.507059e+37
        %v2084 = vand.u32 %v2072, 2147483648
        %v2085 = vor.u32 1.1754944e-38, %v2084
        %v2086 = vsel %vm2083, %v2085, %v2081
        %v2087 = vmul.f32 %v2071, %v2086
        %v2088 = vsub.f32 %v2087, 1.0
        %vm2089 = vcmp.gt.f32.partialorder %v2088, 0.0
        %s2090 = smul.f32 %s566, 2.0
        %v2091 = vstv %s2090
        %v2092 = vrcp.pop %v2091
        %v2093 = vmul.f32 %v2091, %v2092
        %v2094 = vsub.f32 1.0, %v2093
        %v2095 = vmul.f32 %v2092, %v2094
        %v2096 = vadd.f32 %v2092, %v2095
        %vm2097 = vweird.f32 %v2091
        %vm2098 = vweird.f32 %v2092
        %vm2099 = vmor %vm2097, %vm2098
        %v2100 = vsel %vm2099, %v2092, %v2096
        %v2101 = vand.u32 2147483647, %v2091
        %vm2102 = vcmp.eq.f32.partialorder %v2101, 8.507059e+37
        %v2103 = vand.u32 %v2091, 2147483648
        %v2104 = vor.u32 1.1754944e-38, %v2103
        %v2105 = vsel %vm2102, %v2104, %v2100
        %v2106 = vmul.f32 %v2071, %v2105
        %v2107 = vsub.f32 1.0, %v2106
        %vm2108 = vcmp.ge.f32.partialorder %v2107, 0.0
        %vm2109 = vmand %vm2089, %vm2108
        %v2110 = vsel %vm2109, 1, 0
        %v2111 = vcvt.s32.f32 %v2110
        %v2112 = vsub.f32 %v2106, 1.0
        %vm2113 = vcmp.gt.f32.partialorder %v2112, 0.0
        %v2114 = vsel %vm2113, 1, 0
        %v2115 = vcvt.s32.f32 %v2114
        %v2116 = vmul.f32 %v2115, 2.0
        %v2117 = vadd.f32 %v2111, %v2116
        %v2118 = vmul.f32 %v2117, %v2072
        %v2119 = vsub.f32 %v2071, %v2118
        %2120 = vst [vmem:[%s556] sm:$0xff] %v2119
        %2121 = vst [vmem:[%s507] sm:$0xff] %v2111
        %s2122 = scalar_lea.vmem %s507, 8 [#allocation6]
        %2123 = vst [vmem:[%s2122] sm:$0xff] %v2115
        %s2124 = sand.u32 %s221, 1
        %s2125 = sand.u32 %s221, 1
        %s2126 = smul.addr %s2125, 16
        %s2127 = scalar_lea.vmem [#allocation6], %s2126
        %p2128 = scmp.lt.s32.totalorder %s25, 1
        %s2129 = scalar_select %p2128, %s25, 1
        %s2130 = smul.addr %s2129, 2
        %s2131 = smul.addr %s2130, 4
        %s2132 = scalar_lea.vmem %s9, %s2131
        %p2133 = scmp.lt.s32.totalorder %s25, 1
        %s2134 = scalar_select %p2133, %s25, 1
        %s2135 = smul.addr %s2134, 2
        %s2136 = smul.addr %s2135, 4
        %s2137 = scalar_lea.vmem %s10, %s2136
        %p2138 = scmp.lt.s32.totalorder %s25, 1
        %s2139 = scalar_select %p2138, %s25, 1
        %s2140 = scalar_lea.vmem %s11, %s2139
        %p2141 = scmp.lt.s32.totalorder %s25, 1
        %s2142 = scalar_select %p2141, %s25, 1
        %s2143 = scalar_lea.vmem %s12, %s2142
        // Predicated region
        $region95: #{basic_block_mc_forward.1} parent=85 // pred_check
          %p2144 = pneg %p231
        $region96: #{basic_block_mc_forward.1} parent=85 // pred_check_branch
          %2146 = sbr.rel (%p2144) target = $region98
        $region97: #{basic_block_mc_forward.1} parent=85 // pred_region
          %s2147 = smul.addr %s25, 2
          %s2148 = smul.addr %s2147, 4
          %s2149 = scalar_lea.vmem %s8, %s2148
          // Predicated region
          $region99: #{basic_block_mc_forward.1} parent=97 // pred_check
            _
          $region100: #{basic_block_mc_forward.1} parent=97 // pred_check_branch
            %2151 = sbr.rel (0) target = $region102
          $region101: #{basic_block_mc_forward.1} parent=97 // pred_region
            // Predicated region
            $region103: #{basic_block_mc_forward.1} parent=101 // pred_check
              _
            $region104: #{basic_block_mc_forward.1} parent=101 // pred_check_branch
              %2153 = sbr.rel (0) target = $region106
            $region105: #{basic_block_mc_forward.1} parent=101 // pred_region
              // Predicated region
              $region118: #{basic_block_mc_forward.1} parent=105 // pred_check
                _
              $region119: #{basic_block_mc_forward.1} parent=105 // pred_check_branch
                %2171 = sbr.rel (0) target = $region121
              $region120: #{basic_block_mc_forward.1} parent=105 // pred_region
                loop: start=0, step=1, limit=1
                $region122: #{basic_block_mc_forward.1} parent=120 // loop_pre_header
                  _
                $region123: #{basic_block_mc_forward.1} parent=120 // loop_header
                  %s2173 = sphi 0, %s2177
                  %p2174 = scmp.ge.s32.totalorder %s2173, 1
                  %s2178 = sphi %s2127, %s2127
                  %s2179 = sphi %s2149, %s2149
                $region124: #{basic_block_mc_forward.1} parent=120 // loop_header_branch
                  %2176 = sbr.rel (%p2174) target = $region128
                $region125: #{basic_block_mc_forward.1} parent=120 // loop_body
                  %v2180 = vld [vmem:[%s2178] sm:$0xff]
                  %2181 = vst [vmem:[%s2179] sm:$0xff] %v2180
                  %v2182 = vld [vmem:[%s2178 + $0x8] sm:$0xff]
                  %2183 = vst [vmem:[%s2179 + $0x10] sm:$0xff] %v2182
                $region126: #{basic_block_mc_forward.1} parent=120 // loop_footer
                  %s2177 = sadd.s32 1, %s2173
                $region127: #{basic_block_mc_forward.1} parent=120 // loop_footer_branch
                  %2172 = sbr.rel target = $region123
                $region128: #{basic_block_mc_forward.1} parent=120 // loop_exit
                  _
              $region121: #{basic_block_mc_forward.1} parent=105 // pred_fallthru
                _
              // Predicated region
              $region129: #{basic_block_mc_forward.1} parent=105 // pred_check
                _
              $region130: #{basic_block_mc_forward.1} parent=105 // pred_check_branch
                %2185 = sbr.rel target = $region132
              $region131: #{basic_block_mc_forward.1} parent=105 // pred_region
                _
              $region132: #{basic_block_mc_forward.1} parent=105 // pred_fallthru
                _
            $region106: #{basic_block_mc_forward.1} parent=101 // pred_fallthru
              _
            // Predicated region
            $region107: #{basic_block_mc_forward.1} parent=101 // pred_check
              _
            $region108: #{basic_block_mc_forward.1} parent=101 // pred_check_branch
              %2155 = sbr.rel target = $region110
            $region109: #{basic_block_mc_forward.1} parent=101 // pred_region
              %s2157 = ssub.s32 256, 1
              loop: start=0, step=1, limit=1
              $region111: #{basic_block_mc_forward.1} parent=109 // loop_pre_header
                _
              $region112: #{basic_block_mc_forward.1} parent=109 // loop_header
                %s2159 = sphi 0, %s2163
                %p2160 = scmp.ge.s32.totalorder %s2159, 1
                %s2164 = sphi %s2127, %s2127
                %s2165 = sphi %s2149, %s2149
              $region113: #{basic_block_mc_forward.1} parent=109 // loop_header_branch
                %2162 = sbr.rel (%p2160) target = $region117
              $region114: #{basic_block_mc_forward.1} parent=109 // loop_body
                %v2166 = vld [vmem:[%s2164] sm:%s2157]
                %2167 = vst [vmem:[%s2165] sm:%s2157] %v2166
                %v2168 = vld [vmem:[%s2164 + $0x8] sm:%s2157]
                %2169 = vst [vmem:[%s2165 + $0x10] sm:%s2157] %v2168
              $region115: #{basic_block_mc_forward.1} parent=109 // loop_footer
                %s2163 = sadd.s32 1, %s2159
              $region116: #{basic_block_mc_forward.1} parent=109 // loop_footer_branch
                %2158 = sbr.rel target = $region112
              $region117: #{basic_block_mc_forward.1} parent=109 // loop_exit
                _
            $region110: #{basic_block_mc_forward.1} parent=101 // pred_fallthru
              _
          $region102: #{basic_block_mc_forward.1} parent=97 // pred_fallthru
            _
          %2186 = vnop
        $region98: #{basic_block_mc_forward.1} parent=85 // pred_fallthru
          _
        // Predicated region
        $region133: #{basic_block_mc_forward.1} parent=85 // pred_check
          %p2187 = pneg %p257
        $region134: #{basic_block_mc_forward.1} parent=85 // pred_check_branch
          %2189 = sbr.rel (%p2187) target = $region136
        $region135: #{basic_block_mc_forward.1} parent=85 // pred_region
          _
        $region136: #{basic_block_mc_forward.1} parent=85 // pred_fallthru
          _
        // Predicated region
        $region137: #{basic_block_mc_forward.1} parent=85 // pred_check
          %p2190 = pneg %p283
        $region138: #{basic_block_mc_forward.1} parent=85 // pred_check_branch
          %2192 = sbr.rel (%p2190) target = $region140
        $region139: #{basic_block_mc_forward.1} parent=85 // pred_region
          _
        $region140: #{basic_block_mc_forward.1} parent=85 // pred_fallthru
          _
        // Predicated region
        $region141: #{basic_block_mc_forward.1} parent=85 // pred_check
          %p2193 = pneg %p309
        $region142: #{basic_block_mc_forward.1} parent=85 // pred_check_branch
          %2195 = sbr.rel (%p2193) target = $region144
        $region143: #{basic_block_mc_forward.1} parent=85 // pred_region
          _
        $region144: #{basic_block_mc_forward.1} parent=85 // pred_fallthru
          _
        // Predicated region
        $region145: #{basic_block_mc_forward.1} parent=85 // pred_check
          %p2196 = pneg %p335
        $region146: #{basic_block_mc_forward.1} parent=85 // pred_check_branch
          %2198 = sbr.rel (%p2196) target = $region148
        $region147: #{basic_block_mc_forward.1} parent=85 // pred_region
          _
        $region148: #{basic_block_mc_forward.1} parent=85 // pred_fallthru
          _
      $region86: #{basic_block_mc_forward.1} parent=5 // pred_fallthru
        _
      %p2199 = scmp.le.s32.totalorder 2, %s20
      // Predicated region
      $region149: #{basic_block_mc_forward.1} parent=5 // pred_check
        %p2200 = pneg %p2199
      $region150: #{basic_block_mc_forward.1} parent=5 // pred_check_branch
        %2202 = sbr.rel (%p2200) target = $region152
      $region151: #{basic_block_mc_forward.1} parent=5 // pred_region
        %s2203 = ssub.s32 %s20, 2
        // Predicated region
        $region153: #{basic_block_mc_forward.1} parent=151 // pred_check
          %p2204 = pneg %p237
        $region154: #{basic_block_mc_forward.1} parent=151 // pred_check_branch
          %2206 = sbr.rel (%p2204) target = $region156
        $region155: #{basic_block_mc_forward.1} parent=151 // pred_region
          %s2207 = sand.u32 %s222, 1
          %s2208 = sand.u32 %s222, 1
          %s2209 = smul.addr %s2208, 16
          %s2210 = scalar_lea.vmem [#allocation6], %s2209
        $region156: #{basic_block_mc_forward.1} parent=151 // pred_fallthru
          _
        // Predicated region
        $region157: #{basic_block_mc_forward.1} parent=151 // pred_check
          %p2211 = pneg %p263
        $region158: #{basic_block_mc_forward.1} parent=151 // pred_check_branch
          %2213 = sbr.rel (%p2211) target = $region160
        $region159: #{basic_block_mc_forward.1} parent=151 // pred_region
          %p2214 = scmp.lt.s32.totalorder %s26, 1
          %s2215 = scalar_select %p2214, %s26, 1
          %s2216 = smul.addr %s2215, 2
          %s2217 = smul.addr %s2216, 4
          %s2218 = scalar_lea.vmem %s9, %s2217
        $region160: #{basic_block_mc_forward.1} parent=151 // pred_fallthru
          _
        // Predicated region
        $region161: #{basic_block_mc_forward.1} parent=151 // pred_check
          %p2219 = pneg %p289
        $region162: #{basic_block_mc_forward.1} parent=151 // pred_check_branch
          %2221 = sbr.rel (%p2219) target = $region164
        $region163: #{basic_block_mc_forward.1} parent=151 // pred_region
          %p2222 = scmp.lt.s32.totalorder %s26, 1
          %s2223 = scalar_select %p2222, %s26, 1
          %s2224 = smul.addr %s2223, 2
          %s2225 = smul.addr %s2224, 4
          %s2226 = scalar_lea.vmem %s10, %s2225
        $region164: #{basic_block_mc_forward.1} parent=151 // pred_fallthru
          _
        // Predicated region
        $region165: #{basic_block_mc_forward.1} parent=151 // pred_check
          %p2227 = pneg %p315
        $region166: #{basic_block_mc_forward.1} parent=151 // pred_check_branch
          %2229 = sbr.rel (%p2227) target = $region168
        $region167: #{basic_block_mc_forward.1} parent=151 // pred_region
          %p2230 = scmp.lt.s32.totalorder %s26, 1
          %s2231 = scalar_select %p2230, %s26, 1
          %s2232 = scalar_lea.vmem %s11, %s2231
        $region168: #{basic_block_mc_forward.1} parent=151 // pred_fallthru
          _
        // Predicated region
        $region169: #{basic_block_mc_forward.1} parent=151 // pred_check
          %p2233 = pneg %p341
        $region170: #{basic_block_mc_forward.1} parent=151 // pred_check_branch
          %2235 = sbr.rel (%p2233) target = $region172
        $region171: #{basic_block_mc_forward.1} parent=151 // pred_region
          %p2236 = scmp.lt.s32.totalorder %s26, 1
          %s2237 = scalar_select %p2236, %s26, 1
          %s2238 = scalar_lea.vmem %s12, %s2237
        $region172: #{basic_block_mc_forward.1} parent=151 // pred_fallthru
          _
      $region152: #{basic_block_mc_forward.1} parent=5 // pred_fallthru
        _
    $region6: #{basic_block_mc_forward.1} parent=1 // loop_footer
      %s24 = sadd.s32 1, %s20
    $region7: #{basic_block_mc_forward.1} parent=1 // loop_footer_branch
      %19 = sbr.rel target = $region3
    $region8: #{basic_block_mc_forward.1} parent=1 // loop_exit
      _
    %2239 = vsyncpa [#allocation4], 1
    %s2240 = scalar_lea.sflag [#allocation4], 1
    %2241 = vsyncpa %s2240, 1

</llo_original>
